<compile_context>
chip_gen: v5e
topology: v5e:2x2
jax: 0.10.0
libtpu: 0.0.40
codegen_flags: <defaults>
</compile_context>

<pallas_src>
import functools

import jax
import jax.numpy as jnp
from jax.experimental import pallas as pl
from jax.experimental.pallas import tpu as pltpu

NOIF = 140
BASE = 64
BN_EPS = 1e-5
LEAKY_SLOPE = 0.2
LANE = 128


def _leaky_relu(x):
    return jnp.where(x > 0, x, LEAKY_SLOPE * x)


def _batchnorm_train(x, gamma, beta):
    # nn.BatchNorm1d training-mode forward (biased batch variance), fused into
    # a single scale+shift pass.
    mean = jnp.mean(x, axis=0, keepdims=True)
    mean_sq = jnp.mean(x * x, axis=0, keepdims=True)
    var = jnp.maximum(mean_sq - mean * mean, 0.0)
    inv = jax.lax.rsqrt(var + BN_EPS)
    scale = gamma * inv
    shift = beta - mean * scale
    return x * scale + shift


def _gen_kernel(
    labels_ref,                      # SMEM (B,) int32
    noiz_ref,                        # VMEM (B, NOIF) f32
    e1_ref,                          # VMEM (classes, H1) f32  (emb folded through w1)
    w1n_ref, b1_ref,                 # VMEM bf16 / f32
    w2_ref, g2_ref, be2_ref,         # VMEM
    w3_hbm, g3_ref, be3_ref,         # w3 stays in HBM (pl.ANY)
    w4_hbm, g4_ref, be4_ref,         # w4 stays in HBM
    w5_hbm, b5_ref,                  # w5 stays in HBM
    out_ref,                         # VMEM (B, out_pad) f32
    e1_scr, w3_buf, w4_buf, w5_buf, dma_sems,
):
    # Kick off streaming of the three largest weight matrices immediately so
    # the HBM->VMEM transfers overlap the embedding gather and layer-1/2 work.
    cp3 = pltpu.make_async_copy(w3_hbm, w3_buf, dma_sems.at[0]); cp3.start()
    cp4 = pltpu.make_async_copy(w4_hbm, w4_buf, dma_sems.at[1]); cp4.start()
    cp5 = pltpu.make_async_copy(w5_hbm, w5_buf, dma_sems.at[2]); cp5.start()

    # Fused embedding lookup: gather rows of E1 = emb @ w1[:classes] by label.
    # B is small (sampling batch); per-row dynamic-sliced copies are cheap.
    # TODO(synk): switch to a one-hot matmul gather for large batches.
    batch = noiz_ref.shape[0]
    for b in range(batch):
        lab = labels_ref[b]
        e1_scr[pl.ds(b, 1), :] = e1_ref[pl.ds(lab, 1), :]

    # block 1: Linear + LeakyReLU (no BN). bf16 x bf16 on MXU, f32 accumulate.
    x = noiz_ref[...].astype(jnp.bfloat16)
    h = jnp.dot(x, w1n_ref[...], preferred_element_type=jnp.float32)
    h = _leaky_relu(h + e1_scr[...] + b1_ref[...])

    # block 2: Linear + BN + LeakyReLU (pre-BN bias cancelled by BN -> dropped)
    h = jnp.dot(h.astype(jnp.bfloat16), w2_ref[...],
                preferred_element_type=jnp.float32)
    h = _leaky_relu(_batchnorm_train(h, g2_ref[...], be2_ref[...]))

    # block 3
    cp3.wait()
    h = jnp.dot(h.astype(jnp.bfloat16), w3_buf[...],
                preferred_element_type=jnp.float32)
    h = _leaky_relu(_batchnorm_train(h, g3_ref[...], be3_ref[...]))

    # block 4
    cp4.wait()
    h = jnp.dot(h.astype(jnp.bfloat16), w4_buf[...],
                preferred_element_type=jnp.float32)
    h = _leaky_relu(_batchnorm_train(h, g4_ref[...], be4_ref[...]))

    # output head: Linear + Tanh (f32 tanh on the EUP), lane-dense store.
    cp5.wait()
    o = jnp.dot(h.astype(jnp.bfloat16), w5_buf[...],
                preferred_element_type=jnp.float32) + b5_ref[...]
    out_ref[...] = jnp.tanh(o)


def init_params(key, classes, imshape):
    """Deterministic synthetic parameter init (PyTorch-like shapes, f32)."""
    out_dim = 1
    for d in imshape:
        out_dim *= d

    dims = [
        (classes + NOIF, BASE * 2),   # layer 1 (no BN)
        (BASE * 2, BASE * 4),         # layer 2 (+BN)
        (BASE * 4, BASE * 8),         # layer 3 (+BN)
        (BASE * 8, BASE * 16),        # layer 4 (+BN)
        (BASE * 16, out_dim),         # output layer
    ]

    keys = jax.random.split(key, 2 * len(dims) + 1)
    params = {"emb": jax.random.normal(keys[0], (classes, classes), jnp.float32)}

    lin = []
    for i, (ic, oc) in enumerate(dims):
        bound = 1.0 / jnp.sqrt(jnp.float32(ic))
        w = jax.random.uniform(keys[1 + 2 * i], (ic, oc), jnp.float32, -bound, bound)
        b = jax.random.uniform(keys[2 + 2 * i], (1, oc), jnp.float32, -bound, bound)
        lin.append((w, b))
    params["linears"] = lin

    # BatchNorm affine params (gamma=1, beta=0) for layers 2..4.
    params["bn"] = [
        (jnp.ones((1, dims[i][1]), jnp.float32), jnp.zeros((1, dims[i][1]), jnp.float32))
        for i in (1, 2, 3)
    ]
    return params


def prepare_params(params):
    """One-time prep:
      * fold emb through the label columns of w1: E1 = emb @ w1[:classes] (f32),
      * keep only the 140-row noise part of w1 (bf16),
      * drop b2/b3/b4 (exactly cancelled by training-mode BatchNorm),
      * pad the output dim of w5/b5 to a lane (128) multiple,
      * cast the streamed weight matrices to bf16 (biases / BN affine stay f32).
    """
    (w1, b1), (w2, _b2), (w3, _b3), (w4, _b4), (w5, b5) = params["linears"]
    (g2, be2), (g3, be3), (g4, be4) = params["bn"]

    classes = params["emb"].shape[0]
    e1 = params["emb"] @ w1[:classes, :]              # (classes, H1) f32, exact fold
    w1n = w1[classes:, :].astype(jnp.bfloat16)        # (NOIF, H1) bf16

    out_dim = w5.shape[1]
    out_pad = ((out_dim + LANE - 1) // LANE) * LANE
    if out_pad > out_dim:
        w5 = jnp.pad(w5, ((0, 0), (0, out_pad - out_dim)))
        b5 = jnp.pad(b5, ((0, 0), (0, out_pad - out_dim)))

    bf = lambda w: w.astype(jnp.bfloat16)
    flat = (
        e1, w1n, b1,
        bf(w2), g2, be2,
        bf(w3), g3, be3,
        bf(w4), g4, be4,
        bf(w5), b5,
    )
    return {"flat": flat}


@functools.partial(jax.jit, static_argnames=("imshape",))
def conditional_num_g_forward(noiz, labels, prepared, imshape):
    """noiz: (B, 140) f32, labels: (B,) int32 -> (B, *imshape) f32."""
    labels = labels.astype(jnp.int32)
    (e1, w1n, b1, w2, g2, be2, w3, g3, be3, w4, g4, be4, w5, b5) = prepared["flat"]

    batch = noiz.shape[0]
    h1, h2, h3, h4 = w1n.shape[1], w2.shape[1], w3.shape[1], w4.shape[1]
    out_pad = w5.shape[1]
    out_dim = 1
    for d in imshape:
        out_dim *= d

    def nbytes(a):
        return int(a.size) * a.dtype.itemsize

    # VMEM budget: resident inputs + manual weight buffers + f32/bf16
    # activations + output, with ~1.5x headroom (gridless => single-buffered).
    vmem_inputs = sum(nbytes(a) for a in
                      (noiz, e1, w1n, b1, w2, g2, be2, g3, be3, g4, be4, b5))
    scratch_bytes = batch * h1 * 4 + nbytes(w3) + nbytes(w4) + nbytes(w5)
    act_bytes = batch * ((h1 + h2 + h3 + h4 + out_pad) * 4      # f32 activations
                         + (h1 + h2 + h3 + h4) * 2)             # bf16 recasts
    out_bytes = batch * out_pad * 4
    total = vmem_inputs + scratch_bytes + 2 * act_bytes + out_bytes
    # TODO(synk): batch/out tiled variant once this guard trips (v7x: 64 MiB).
    assert total < (40 << 20), "operands exceed gridless VMEM budget; tile the kernel"
    vmem_limit = int(min(max(int(1.5 * total), 8 << 20), 48 << 20))

    vmem = pl.BlockSpec(memory_space=pltpu.MemorySpace.VMEM)
    smem = pl.BlockSpec(memory_space=pltpu.MemorySpace.SMEM)
    hbm = pl.BlockSpec(memory_space=pl.ANY)

    out = pl.pallas_call(
        _gen_kernel,
        out_shape=jax.ShapeDtypeStruct((batch, out_pad), jnp.float32),
        in_specs=[
            smem,                      # labels
            vmem,                      # noiz
            vmem, vmem, vmem,          # e1, w1n, b1
            vmem, vmem, vmem,          # w2, g2, be2
            hbm, vmem, vmem,           # w3 (HBM), g3, be3
            hbm, vmem, vmem,           # w4 (HBM), g4, be4
            hbm, vmem,                 # w5 (HBM), b5
        ],
        out_specs=vmem,
        scratch_shapes=[
            pltpu.VMEM((batch, h1), jnp.float32),       # gathered E1 rows
            pltpu.VMEM(w3.shape, jnp.bfloat16),         # streamed w3
            pltpu.VMEM(w4.shape, jnp.bfloat16),         # streamed w4
            pltpu.VMEM(w5.shape, jnp.bfloat16),         # streamed w5
            pltpu.SemaphoreType.DMA((3,)),
        ],
        compiler_params=pltpu.CompilerParams(vmem_limit_bytes=vmem_limit),
    )(labels, noiz, *prepared["flat"])

    if out_pad > out_dim:
        out = out[:, :out_dim]
    return out.reshape(batch, *imshape)


def reference_forward(noiz, labels, prepared, imshape):
    """Pure-JAX mirror of the kernel math (same prepared params / dtypes)."""
    (e1, w1n, b1, w2, g2, be2, w3, g3, be3, w4, g4, be4, w5, b5) = prepared["flat"]

    h = jnp.dot(noiz.astype(jnp.bfloat16), w1n, preferred_element_type=jnp.float32)
    h = _leaky_relu(h + e1[labels] + b1)
    h = _leaky_relu(_batchnorm_train(
        jnp.dot(h.astype(jnp.bfloat16), w2, preferred_element_type=jnp.float32), g2, be2))
    h = _leaky_relu(_batchnorm_train(
        jnp.dot(h.astype(jnp.bfloat16), w3, preferred_element_type=jnp.float32), g3, be3))
    h = _leaky_relu(_batchnorm_train(
        jnp.dot(h.astype(jnp.bfloat16), w4, preferred_element_type=jnp.float32), g4, be4))
    o = jnp.tanh(jnp.dot(h.astype(jnp.bfloat16), w5,
                         preferred_element_type=jnp.float32) + b5)
    out_dim = 1
    for d in imshape:
        out_dim *= d
    return o[:, :out_dim].reshape(noiz.shape[0], *imshape)


if __name__ == "__main__":
    classes = 10
    imshape = (1, 16, 16)   # prod = 256 output features (lane-aligned)
    batch = 8

    key = jax.random.PRNGKey(0)
    k_param, k_noise, k_label = jax.random.split(key, 3)

    params = init_params(k_param, classes, imshape)
    prepared = prepare_params(params)

    noiz = jax.random.normal(k_noise, (batch, NOIF), jnp.float32)
    labels = jax.random.randint(k_label, (batch,), 0, classes, jnp.int32)

    out = conditional_num_g_forward(noiz, labels, prepared, imshape)
    out = jax.block_until_ready(out)

    assert out.shape == (batch,) + imshape, out.shape
    assert bool(jnp.all(jnp.isfinite(out)))
    assert bool(jnp.all(jnp.abs(out) <= 1.0 + 1e-6))  # tanh range

    ref = reference_forward(noiz, labels, prepared, imshape)
    assert bool(jnp.allclose(out, ref, atol=2e-2, rtol=2e-2)), \
        float(jnp.max(jnp.abs(out - ref)))

    print("KERNEL_OK")
</pallas_src>

<mosaic_0001>
module attributes {stable_mosaic.version = 11 : i64} {
  func.func @_gen_kernel(%arg0: memref<8xi32, #tpu.memory_space<smem>>, %arg1: memref<8x140xf32, #tpu.memory_space<vmem>>, %arg2: memref<10x128xf32, #tpu.memory_space<vmem>>, %arg3: memref<140x128xbf16, #tpu.memory_space<vmem>>, %arg4: memref<1x128xf32, #tpu.memory_space<vmem>>, %arg5: memref<128x256xbf16, #tpu.memory_space<vmem>>, %arg6: memref<1x256xf32, #tpu.memory_space<vmem>>, %arg7: memref<1x256xf32, #tpu.memory_space<vmem>>, %arg8: memref<256x512xbf16, #tpu.memory_space<any>>, %arg9: memref<1x512xf32, #tpu.memory_space<vmem>>, %arg10: memref<1x512xf32, #tpu.memory_space<vmem>>, %arg11: memref<512x1024xbf16, #tpu.memory_space<any>>, %arg12: memref<1x1024xf32, #tpu.memory_space<vmem>>, %arg13: memref<1x1024xf32, #tpu.memory_space<vmem>>, %arg14: memref<1024x256xbf16, #tpu.memory_space<any>>, %arg15: memref<1x256xf32, #tpu.memory_space<vmem>>, %arg16: memref<8x256xf32, #tpu.memory_space<vmem>>, %arg17: memref<8x128xf32, #tpu.memory_space<vmem>>, %arg18: memref<256x512xbf16, #tpu.memory_space<vmem>>, %arg19: memref<512x1024xbf16, #tpu.memory_space<vmem>>, %arg20: memref<1024x256xbf16, #tpu.memory_space<vmem>>, %arg21: memref<3x!tpu.dma_semaphore, #tpu.memory_space<semaphore_mem>>) attributes {dimension_semantics = [], scalar_prefetch = 0 : i64, scratch_operands = 5 : i64, tpu.core_type = #tpu.core_type<tc>} {
    %c0_i32 = arith.constant 0 : i32
    %0 = tpu.memref_slice %arg21[%c0_i32] : memref<3x!tpu.dma_semaphore, #tpu.memory_space<semaphore_mem>> -> memref<1x!tpu.dma_semaphore, #tpu.memory_space<semaphore_mem>>
    %1 = tpu.memref_squeeze %0 : memref<1x!tpu.dma_semaphore, #tpu.memory_space<semaphore_mem>> -> memref<!tpu.dma_semaphore, #tpu.memory_space<semaphore_mem>>
    tpu.enqueue_dma source(%arg8 : memref<256x512xbf16, #tpu.memory_space<any>>) target(%arg18 : memref<256x512xbf16, #tpu.memory_space<vmem>>) target_semaphore(%1 : memref<!tpu.dma_semaphore, #tpu.memory_space<semaphore_mem>>)
    %c1_i32 = arith.constant 1 : i32
    %2 = tpu.memref_slice %arg21[%c1_i32] : memref<3x!tpu.dma_semaphore, #tpu.memory_space<semaphore_mem>> -> memref<1x!tpu.dma_semaphore, #tpu.memory_space<semaphore_mem>>
    %3 = tpu.memref_squeeze %2 : memref<1x!tpu.dma_semaphore, #tpu.memory_space<semaphore_mem>> -> memref<!tpu.dma_semaphore, #tpu.memory_space<semaphore_mem>>
    tpu.enqueue_dma source(%arg11 : memref<512x1024xbf16, #tpu.memory_space<any>>) target(%arg19 : memref<512x1024xbf16, #tpu.memory_space<vmem>>) target_semaphore(%3 : memref<!tpu.dma_semaphore, #tpu.memory_space<semaphore_mem>>)
    %c2_i32 = arith.constant 2 : i32
    %4 = tpu.memref_slice %arg21[%c2_i32] : memref<3x!tpu.dma_semaphore, #tpu.memory_space<semaphore_mem>> -> memref<1x!tpu.dma_semaphore, #tpu.memory_space<semaphore_mem>>
    %5 = tpu.memref_squeeze %4 : memref<1x!tpu.dma_semaphore, #tpu.memory_space<semaphore_mem>> -> memref<!tpu.dma_semaphore, #tpu.memory_space<semaphore_mem>>
    tpu.enqueue_dma source(%arg14 : memref<1024x256xbf16, #tpu.memory_space<any>>) target(%arg20 : memref<1024x256xbf16, #tpu.memory_space<vmem>>) target_semaphore(%5 : memref<!tpu.dma_semaphore, #tpu.memory_space<semaphore_mem>>)
    %c0 = arith.constant 0 : index
    %6 = memref.load %arg0[%c0] : memref<8xi32, #tpu.memory_space<smem>>
    %7 = arith.index_cast %6 : i32 to index
    %c0_0 = arith.constant 0 : index
    %8 = vector.load %arg2[%7, %c0_0] : memref<10x128xf32, #tpu.memory_space<vmem>>, vector<1x128xf32>
    %c0_1 = arith.constant 0 : index
    %c0_2 = arith.constant 0 : index
    %9 = vector.load %arg17[%c0_1, %c0_2] : memref<8x128xf32, #tpu.memory_space<vmem>>, vector<1x128xf32>
    tpu.vector_store %arg17[%c0_1, %c0_2], %8 {strides = array<i32>} : memref<8x128xf32, #tpu.memory_space<vmem>>, vector<1x128xf32>,
    %c1 = arith.constant 1 : index
    %10 = memref.load %arg0[%c1] : memref<8xi32, #tpu.memory_space<smem>>
    %11 = arith.index_cast %10 : i32 to index
    %c0_3 = arith.constant 0 : index
    %12 = vector.load %arg2[%11, %c0_3] : memref<10x128xf32, #tpu.memory_space<vmem>>, vector<1x128xf32>
    %c1_4 = arith.constant 1 : index
    %c0_5 = arith.constant 0 : index
    %13 = vector.load %arg17[%c1_4, %c0_5] : memref<8x128xf32, #tpu.memory_space<vmem>>, vector<1x128xf32>
    tpu.vector_store %arg17[%c1_4, %c0_5], %12 {strides = array<i32>} : memref<8x128xf32, #tpu.memory_space<vmem>>, vector<1x128xf32>,
    %c2 = arith.constant 2 : index
    %14 = memref.load %arg0[%c2] : memref<8xi32, #tpu.memory_space<smem>>
    %15 = arith.index_cast %14 : i32 to index
    %c0_6 = arith.constant 0 : index
    %16 = vector.load %arg2[%15, %c0_6] : memref<10x128xf32, #tpu.memory_space<vmem>>, vector<1x128xf32>
    %c2_7 = arith.constant 2 : index
    %c0_8 = arith.constant 0 : index
    %17 = vector.load %arg17[%c2_7, %c0_8] : memref<8x128xf32, #tpu.memory_space<vmem>>, vector<1x128xf32>
    tpu.vector_store %arg17[%c2_7, %c0_8], %16 {strides = array<i32>} : memref<8x128xf32, #tpu.memory_space<vmem>>, vector<1x128xf32>,
    %c3 = arith.constant 3 : index
    %18 = memref.load %arg0[%c3] : memref<8xi32, #tpu.memory_space<smem>>
    %19 = arith.index_cast %18 : i32 to index
    %c0_9 = arith.constant 0 : index
    %20 = vector.load %arg2[%19, %c0_9] : memref<10x128xf32, #tpu.memory_space<vmem>>, vector<1x128xf32>
    %c3_10 = arith.constant 3 : index
    %c0_11 = arith.constant 0 : index
    %21 = vector.load %arg17[%c3_10, %c0_11] : memref<8x128xf32, #tpu.memory_space<vmem>>, vector<1x128xf32>
    tpu.vector_store %arg17[%c3_10, %c0_11], %20 {strides = array<i32>} : memref<8x128xf32, #tpu.memory_space<vmem>>, vector<1x128xf32>,
    %c4 = arith.constant 4 : index
    %22 = memref.load %arg0[%c4] : memref<8xi32, #tpu.memory_space<smem>>
    %23 = arith.index_cast %22 : i32 to index
    %c0_12 = arith.constant 0 : index
    %24 = vector.load %arg2[%23, %c0_12] : memref<10x128xf32, #tpu.memory_space<vmem>>, vector<1x128xf32>
    %c4_13 = arith.constant 4 : index
    %c0_14 = arith.constant 0 : index
    %25 = vector.load %arg17[%c4_13, %c0_14] : memref<8x128xf32, #tpu.memory_space<vmem>>, vector<1x128xf32>
    tpu.vector_store %arg17[%c4_13, %c0_14], %24 {strides = array<i32>} : memref<8x128xf32, #tpu.memory_space<vmem>>, vector<1x128xf32>,
    %c5 = arith.constant 5 : index
    %26 = memref.load %arg0[%c5] : memref<8xi32, #tpu.memory_space<smem>>
    %27 = arith.index_cast %26 : i32 to index
    %c0_15 = arith.constant 0 : index
    %28 = vector.load %arg2[%27, %c0_15] : memref<10x128xf32, #tpu.memory_space<vmem>>, vector<1x128xf32>
    %c5_16 = arith.constant 5 : index
    %c0_17 = arith.constant 0 : index
    %29 = vector.load %arg17[%c5_16, %c0_17] : memref<8x128xf32, #tpu.memory_space<vmem>>, vector<1x128xf32>
    tpu.vector_store %arg17[%c5_16, %c0_17], %28 {strides = array<i32>} : memref<8x128xf32, #tpu.memory_space<vmem>>, vector<1x128xf32>,
    %c6 = arith.constant 6 : index
    %30 = memref.load %arg0[%c6] : memref<8xi32, #tpu.memory_space<smem>>
    %31 = arith.index_cast %30 : i32 to index
    %c0_18 = arith.constant 0 : index
    %32 = vector.load %arg2[%31, %c0_18] : memref<10x128xf32, #tpu.memory_space<vmem>>, vector<1x128xf32>
    %c6_19 = arith.constant 6 : index
    %c0_20 = arith.constant 0 : index
    %33 = vector.load %arg17[%c6_19, %c0_20] : memref<8x128xf32, #tpu.memory_space<vmem>>, vector<1x128xf32>
    tpu.vector_store %arg17[%c6_19, %c0_20], %32 {strides = array<i32>} : memref<8x128xf32, #tpu.memory_space<vmem>>, vector<1x128xf32>,
    %c7 = arith.constant 7 : index
    %34 = memref.load %arg0[%c7] : memref<8xi32, #tpu.memory_space<smem>>
    %35 = arith.index_cast %34 : i32 to index
    %c0_21 = arith.constant 0 : index
    %36 = vector.load %arg2[%35, %c0_21] : memref<10x128xf32, #tpu.memory_space<vmem>>, vector<1x128xf32>
    %c7_22 = arith.constant 7 : index
    %c0_23 = arith.constant 0 : index
    %37 = vector.load %arg17[%c7_22, %c0_23] : memref<8x128xf32, #tpu.memory_space<vmem>>, vector<1x128xf32>
    tpu.vector_store %arg17[%c7_22, %c0_23], %36 {strides = array<i32>} : memref<8x128xf32, #tpu.memory_space<vmem>>, vector<1x128xf32>,
    %c0_24 = arith.constant 0 : index
    %c0_25 = arith.constant 0 : index
    %38 = vector.load %arg1[%c0_24, %c0_25] : memref<8x140xf32, #tpu.memory_space<vmem>>, vector<8x140xf32>
    %39 = arith.truncf %38 : vector<8x140xf32> to vector<8x140xbf16>
    %c0_26 = arith.constant 0 : index
    %c0_27 = arith.constant 0 : index
    %40 = vector.load %arg3[%c0_26, %c0_27] : memref<140x128xbf16, #tpu.memory_space<vmem>>, vector<140x128xbf16>
    %cst = arith.constant dense<0.000000e+00> : vector<8x128xf32>
    %41 = tpu.matmul %39, %40, %cst {dimension_numbers = #tpu.dot_dimension_numbers<[1], [0], [0], [1], [0, 0, 1, 1], [], []>} : vector<8x140xbf16>, vector<140x128xbf16>, vector<8x128xf32> -> vector<8x128xf32>
    %c0_28 = arith.constant 0 : index
    %c0_29 = arith.constant 0 : index
    %42 = vector.load %arg17[%c0_28, %c0_29] : memref<8x128xf32, #tpu.memory_space<vmem>>, vector<8x128xf32>
    %43 = arith.addf %41, %42 : vector<8x128xf32>
    %c0_30 = arith.constant 0 : index
    %c0_31 = arith.constant 0 : index
    %44 = vector.load %arg4[%c0_30, %c0_31] : memref<1x128xf32, #tpu.memory_space<vmem>>, vector<1x128xf32>
    %45 = vector.broadcast %44 : vector<1x128xf32> to vector<8x128xf32>
    %46 = arith.addf %43, %45 : vector<8x128xf32>
    %cst_32 = arith.constant 0.000000e+00 : f32
    %47 = vector.broadcast %cst_32 : f32 to vector<8x128xf32>
    %48 = arith.cmpf ogt, %46, %47 : vector<8x128xf32>
    %cst_33 = arith.constant 2.000000e-01 : f32
    %49 = vector.broadcast %cst_33 : f32 to vector<8x128xf32>
    %50 = arith.mulf %49, %46 : vector<8x128xf32>
    %51 = arith.select %48, %46, %50 : vector<8x128xi1>, vector<8x128xf32>
    %52 = arith.truncf %51 : vector<8x128xf32> to vector<8x128xbf16>
    %c0_34 = arith.constant 0 : index
    %c0_35 = arith.constant 0 : index
    %53 = vector.load %arg5[%c0_34, %c0_35] : memref<128x256xbf16, #tpu.memory_space<vmem>>, vector<128x256xbf16>
    %cst_36 = arith.constant dense<0.000000e+00> : vector<8x256xf32>
    %54 = tpu.matmul %52, %53, %cst_36 {dimension_numbers = #tpu.dot_dimension_numbers<[1], [0], [0], [1], [0, 0, 1, 1], [], []>} : vector<8x128xbf16>, vector<128x256xbf16>, vector<8x256xf32> -> vector<8x256xf32>
    %c0_37 = arith.constant 0 : index
    %c0_38 = arith.constant 0 : index
    %55 = vector.load %arg6[%c0_37, %c0_38] : memref<1x256xf32, #tpu.memory_space<vmem>>, vector<1x256xf32>
    %c0_39 = arith.constant 0 : index
    %c0_40 = arith.constant 0 : index
    %56 = vector.load %arg7[%c0_39, %c0_40] : memref<1x256xf32, #tpu.memory_space<vmem>>, vector<1x256xf32>
    %cst_41 = arith.constant dense<0.000000e+00> : vector<256xf32>
    %57 = vector.multi_reduction <add>, %54, %cst_41 [0] : vector<8x256xf32> to vector<256xf32>
    %58 = vector.shape_cast %57 : vector<256xf32> to vector<1x256xf32>
    %cst_42 = arith.constant 8.000000e+00 : f32
    %59 = vector.broadcast %cst_42 : f32 to vector<1x256xf32>
    %60 = arith.divf %58, %59 : vector<1x256xf32>
    %61 = arith.mulf %54, %54 : vector<8x256xf32>
    %cst_43 = arith.constant dense<0.000000e+00> : vector<256xf32>
    %62 = vector.multi_reduction <add>, %61, %cst_43 [0] : vector<8x256xf32> to vector<256xf32>
    %63 = vector.shape_cast %62 : vector<256xf32> to vector<1x256xf32>
    %cst_44 = arith.constant 8.000000e+00 : f32
    %64 = vector.broadcast %cst_44 : f32 to vector<1x256xf32>
    %65 = arith.divf %63, %64 : vector<1x256xf32>
    %66 = arith.mulf %60, %60 : vector<1x256xf32>
    %67 = arith.subf %65, %66 : vector<1x256xf32>
    %cst_45 = arith.constant 0.000000e+00 : f32
    %68 = vector.broadcast %cst_45 : f32 to vector<1x256xf32>
    %69 = arith.maximumf %67, %68 : vector<1x256xf32>
    %cst_46 = arith.constant 9.99999974E-6 : f32
    %70 = vector.broadcast %cst_46 : f32 to vector<1x256xf32>
    %71 = arith.addf %69, %70 : vector<1x256xf32>
    %72 = math.rsqrt %71 : vector<1x256xf32>
    %73 = arith.mulf %55, %72 : vector<1x256xf32>
    %74 = arith.mulf %60, %73 : vector<1x256xf32>
    %75 = arith.subf %56, %74 : vector<1x256xf32>
    %76 = vector.broadcast %73 : vector<1x256xf32> to vector<8x256xf32>
    %77 = arith.mulf %54, %76 : vector<8x256xf32>
    %78 = vector.broadcast %75 : vector<1x256xf32> to vector<8x256xf32>
    %79 = arith.addf %77, %78 : vector<8x256xf32>
    %cst_47 = arith.constant 0.000000e+00 : f32
    %80 = vector.broadcast %cst_47 : f32 to vector<8x256xf32>
    %81 = arith.cmpf ogt, %79, %80 : vector<8x256xf32>
    %cst_48 = arith.constant 2.000000e-01 : f32
    %82 = vector.broadcast %cst_48 : f32 to vector<8x256xf32>
    %83 = arith.mulf %82, %79 : vector<8x256xf32>
    %84 = arith.select %81, %79, %83 : vector<8x256xi1>, vector<8x256xf32>
    %c0_i32_49 = arith.constant 0 : i32
    %85 = tpu.memref_slice %arg21[%c0_i32_49] : memref<3x!tpu.dma_semaphore, #tpu.memory_space<semaphore_mem>> -> memref<1x!tpu.dma_semaphore, #tpu.memory_space<semaphore_mem>>
    %86 = tpu.memref_squeeze %85 : memref<1x!tpu.dma_semaphore, #tpu.memory_space<semaphore_mem>> -> memref<!tpu.dma_semaphore, #tpu.memory_space<semaphore_mem>>
    tpu.wait_dma2 semaphore(%86 : memref<!tpu.dma_semaphore, #tpu.memory_space<semaphore_mem>>) src(%arg8 : memref<256x512xbf16, #tpu.memory_space<any>>) dst(%arg18 : memref<256x512xbf16, #tpu.memory_space<vmem>>)
    %87 = arith.truncf %84 : vector<8x256xf32> to vector<8x256xbf16>
    %c0_50 = arith.constant 0 : index
    %c0_51 = arith.constant 0 : index
    %88 = vector.load %arg18[%c0_50, %c0_51] : memref<256x512xbf16, #tpu.memory_space<vmem>>, vector<256x512xbf16>
    %cst_52 = arith.constant dense<0.000000e+00> : vector<8x512xf32>
    %89 = tpu.matmul %87, %88, %cst_52 {dimension_numbers = #tpu.dot_dimension_numbers<[1], [0], [0], [1], [0, 0, 1, 1], [], []>} : vector<8x256xbf16>, vector<256x512xbf16>, vector<8x512xf32> -> vector<8x512xf32>
    %c0_53 = arith.constant 0 : index
    %c0_54 = arith.constant 0 : index
    %90 = vector.load %arg9[%c0_53, %c0_54] : memref<1x512xf32, #tpu.memory_space<vmem>>, vector<1x512xf32>
    %c0_55 = arith.constant 0 : index
    %c0_56 = arith.constant 0 : index
    %91 = vector.load %arg10[%c0_55, %c0_56] : memref<1x512xf32, #tpu.memory_space<vmem>>, vector<1x512xf32>
    %cst_57 = arith.constant dense<0.000000e+00> : vector<512xf32>
    %92 = vector.multi_reduction <add>, %89, %cst_57 [0] : vector<8x512xf32> to vector<512xf32>
    %93 = vector.shape_cast %92 : vector<512xf32> to vector<1x512xf32>
    %cst_58 = arith.constant 8.000000e+00 : f32
    %94 = vector.broadcast %cst_58 : f32 to vector<1x512xf32>
    %95 = arith.divf %93, %94 : vector<1x512xf32>
    %96 = arith.mulf %89, %89 : vector<8x512xf32>
    %cst_59 = arith.constant dense<0.000000e+00> : vector<512xf32>
    %97 = vector.multi_reduction <add>, %96, %cst_59 [0] : vector<8x512xf32> to vector<512xf32>
    %98 = vector.shape_cast %97 : vector<512xf32> to vector<1x512xf32>
    %cst_60 = arith.constant 8.000000e+00 : f32
    %99 = vector.broadcast %cst_60 : f32 to vector<1x512xf32>
    %100 = arith.divf %98, %99 : vector<1x512xf32>
    %101 = arith.mulf %95, %95 : vector<1x512xf32>
    %102 = arith.subf %100, %101 : vector<1x512xf32>
    %cst_61 = arith.constant 0.000000e+00 : f32
    %103 = vector.broadcast %cst_61 : f32 to vector<1x512xf32>
    %104 = arith.maximumf %102, %103 : vector<1x512xf32>
    %cst_62 = arith.constant 9.99999974E-6 : f32
    %105 = vector.broadcast %cst_62 : f32 to vector<1x512xf32>
    %106 = arith.addf %104, %105 : vector<1x512xf32>
    %107 = math.rsqrt %106 : vector<1x512xf32>
    %108 = arith.mulf %90, %107 : vector<1x512xf32>
    %109 = arith.mulf %95, %108 : vector<1x512xf32>
    %110 = arith.subf %91, %109 : vector<1x512xf32>
    %111 = vector.broadcast %108 : vector<1x512xf32> to vector<8x512xf32>
    %112 = arith.mulf %89, %111 : vector<8x512xf32>
    %113 = vector.broadcast %110 : vector<1x512xf32> to vector<8x512xf32>
    %114 = arith.addf %112, %113 : vector<8x512xf32>
    %cst_63 = arith.constant 0.000000e+00 : f32
    %115 = vector.broadcast %cst_63 : f32 to vector<8x512xf32>
    %116 = arith.cmpf ogt, %114, %115 : vector<8x512xf32>
    %cst_64 = arith.constant 2.000000e-01 : f32
    %117 = vector.broadcast %cst_64 : f32 to vector<8x512xf32>
    %118 = arith.mulf %117, %114 : vector<8x512xf32>
    %119 = arith.select %116, %114, %118 : vector<8x512xi1>, vector<8x512xf32>
    %c1_i32_65 = arith.constant 1 : i32
    %120 = tpu.memref_slice %arg21[%c1_i32_65] : memref<3x!tpu.dma_semaphore, #tpu.memory_space<semaphore_mem>> -> memref<1x!tpu.dma_semaphore, #tpu.memory_space<semaphore_mem>>
    %121 = tpu.memref_squeeze %120 : memref<1x!tpu.dma_semaphore, #tpu.memory_space<semaphore_mem>> -> memref<!tpu.dma_semaphore, #tpu.memory_space<semaphore_mem>>
    tpu.wait_dma2 semaphore(%121 : memref<!tpu.dma_semaphore, #tpu.memory_space<semaphore_mem>>) src(%arg11 : memref<512x1024xbf16, #tpu.memory_space<any>>) dst(%arg19 : memref<512x1024xbf16, #tpu.memory_space<vmem>>)
    %122 = arith.truncf %119 : vector<8x512xf32> to vector<8x512xbf16>
    %c0_66 = arith.constant 0 : index
    %c0_67 = arith.constant 0 : index
    %123 = vector.load %arg19[%c0_66, %c0_67] : memref<512x1024xbf16, #tpu.memory_space<vmem>>, vector<512x1024xbf16>
    %cst_68 = arith.constant dense<0.000000e+00> : vector<8x1024xf32>
    %124 = tpu.matmul %122, %123, %cst_68 {dimension_numbers = #tpu.dot_dimension_numbers<[1], [0], [0], [1], [0, 0, 1, 1], [], []>} : vector<8x512xbf16>, vector<512x1024xbf16>, vector<8x1024xf32> -> vector<8x1024xf32>
    %c0_69 = arith.constant 0 : index
    %c0_70 = arith.constant 0 : index
    %125 = vector.load %arg12[%c0_69, %c0_70] : memref<1x1024xf32, #tpu.memory_space<vmem>>, vector<1x1024xf32>
    %c0_71 = arith.constant 0 : index
    %c0_72 = arith.constant 0 : index
    %126 = vector.load %arg13[%c0_71, %c0_72] : memref<1x1024xf32, #tpu.memory_space<vmem>>, vector<1x1024xf32>
    %cst_73 = arith.constant dense<0.000000e+00> : vector<1024xf32>
    %127 = vector.multi_reduction <add>, %124, %cst_73 [0] : vector<8x1024xf32> to vector<1024xf32>
    %128 = vector.shape_cast %127 : vector<1024xf32> to vector<1x1024xf32>
    %cst_74 = arith.constant 8.000000e+00 : f32
    %129 = vector.broadcast %cst_74 : f32 to vector<1x1024xf32>
    %130 = arith.divf %128, %129 : vector<1x1024xf32>
    %131 = arith.mulf %124, %124 : vector<8x1024xf32>
    %cst_75 = arith.constant dense<0.000000e+00> : vector<1024xf32>
    %132 = vector.multi_reduction <add>, %131, %cst_75 [0] : vector<8x1024xf32> to vector<1024xf32>
    %133 = vector.shape_cast %132 : vector<1024xf32> to vector<1x1024xf32>
    %cst_76 = arith.constant 8.000000e+00 : f32
    %134 = vector.broadcast %cst_76 : f32 to vector<1x1024xf32>
    %135 = arith.divf %133, %134 : vector<1x1024xf32>
    %136 = arith.mulf %130, %130 : vector<1x1024xf32>
    %137 = arith.subf %135, %136 : vector<1x1024xf32>
    %cst_77 = arith.constant 0.000000e+00 : f32
    %138 = vector.broadcast %cst_77 : f32 to vector<1x1024xf32>
    %139 = arith.maximumf %137, %138 : vector<1x1024xf32>
    %cst_78 = arith.constant 9.99999974E-6 : f32
    %140 = vector.broadcast %cst_78 : f32 to vector<1x1024xf32>
    %141 = arith.addf %139, %140 : vector<1x1024xf32>
    %142 = math.rsqrt %141 : vector<1x1024xf32>
    %143 = arith.mulf %125, %142 : vector<1x1024xf32>
    %144 = arith.mulf %130, %143 : vector<1x1024xf32>
    %145 = arith.subf %126, %144 : vector<1x1024xf32>
    %146 = vector.broadcast %143 : vector<1x1024xf32> to vector<8x1024xf32>
    %147 = arith.mulf %124, %146 : vector<8x1024xf32>
    %148 = vector.broadcast %145 : vector<1x1024xf32> to vector<8x1024xf32>
    %149 = arith.addf %147, %148 : vector<8x1024xf32>
    %cst_79 = arith.constant 0.000000e+00 : f32
    %150 = vector.broadcast %cst_79 : f32 to vector<8x1024xf32>
    %151 = arith.cmpf ogt, %149, %150 : vector<8x1024xf32>
    %cst_80 = arith.constant 2.000000e-01 : f32
    %152 = vector.broadcast %cst_80 : f32 to vector<8x1024xf32>
    %153 = arith.mulf %152, %149 : vector<8x1024xf32>
    %154 = arith.select %151, %149, %153 : vector<8x1024xi1>, vector<8x1024xf32>
    %c2_i32_81 = arith.constant 2 : i32
    %155 = tpu.memref_slice %arg21[%c2_i32_81] : memref<3x!tpu.dma_semaphore, #tpu.memory_space<semaphore_mem>> -> memref<1x!tpu.dma_semaphore, #tpu.memory_space<semaphore_mem>>
    %156 = tpu.memref_squeeze %155 : memref<1x!tpu.dma_semaphore, #tpu.memory_space<semaphore_mem>> -> memref<!tpu.dma_semaphore, #tpu.memory_space<semaphore_mem>>
    tpu.wait_dma2 semaphore(%156 : memref<!tpu.dma_semaphore, #tpu.memory_space<semaphore_mem>>) src(%arg14 : memref<1024x256xbf16, #tpu.memory_space<any>>) dst(%arg20 : memref<1024x256xbf16, #tpu.memory_space<vmem>>)
    %157 = arith.truncf %154 : vector<8x1024xf32> to vector<8x1024xbf16>
    %c0_82 = arith.constant 0 : index
    %c0_83 = arith.constant 0 : index
    %158 = vector.load %arg20[%c0_82, %c0_83] : memref<1024x256xbf16, #tpu.memory_space<vmem>>, vector<1024x256xbf16>
    %cst_84 = arith.constant dense<0.000000e+00> : vector<8x256xf32>
    %159 = tpu.matmul %157, %158, %cst_84 {dimension_numbers = #tpu.dot_dimension_numbers<[1], [0], [0], [1], [0, 0, 1, 1], [], []>} : vector<8x1024xbf16>, vector<1024x256xbf16>, vector<8x256xf32> -> vector<8x256xf32>
    %c0_85 = arith.constant 0 : index
    %c0_86 = arith.constant 0 : index
    %160 = vector.load %arg15[%c0_85, %c0_86] : memref<1x256xf32, #tpu.memory_space<vmem>>, vector<1x256xf32>
    %161 = vector.broadcast %160 : vector<1x256xf32> to vector<8x256xf32>
    %162 = arith.addf %159, %161 : vector<8x256xf32>
    %163 = math.tanh %162 : vector<8x256xf32>
    %c0_87 = arith.constant 0 : index
    %c0_88 = arith.constant 0 : index
    %164 = vector.load %arg16[%c0_87, %c0_88] : memref<8x256xf32, #tpu.memory_space<vmem>>, vector<8x256xf32>
    tpu.vector_store %arg16[%c0_87, %c0_88], %163 {strides = array<i32>} : memref<8x256xf32, #tpu.memory_space<vmem>>, vector<8x256xf32>,
    return
  }
}

</mosaic_0001>

<llo_original>
// kernel: conditional_num_g_forward.1
$region0: #{conditional_num_g_forward.1}
  #allocation0 [shape = 'u32[]', space=smem, size = 0x4, offset = 0x4, fixed_abs, tag = 'smem constant byte address 0x4 - core index']
  #allocation1 [shape = 'u32[72,128]{1,0:T(1,128)}', space=vmem, size = 0x9000, scoped, tag = 'internal scratch']
  #allocation2 [shape = 'f32[8,128]{1,0:T(8,128)}', space=vmem, size = 0x1000, scoped, tag = 'scratch operand']
  #allocation3 [shape = 'bf16[256,512]{1,0:T(8,128)(2,1)}', space=vmem, size = 0x40000, scoped, tag = 'scratch operand']
  #allocation4 [shape = 'bf16[512,1024]{1,0:T(8,128)(2,1)}', space=vmem, size = 0x100000, scoped, tag = 'scratch operand']
  #allocation5 [shape = 'bf16[1024,256]{1,0:T(8,128)(2,1)}', space=vmem, size = 0x80000, scoped, tag = 'scratch operand']
  #allocation6 [shape = 's32[3]{0}', space=sflag, size = 0xc, scoped, tag = 'scratch operand']
  #allocation23 [shape = 's32[]', space=sflag, size = 0x4, offset = 0, fixed_abs, tag = 'sflag constant byte address 0x0 - dummy sync flag']
  #allocation24 [shape = 's32[]', space=sflag, size = 0x4, offset = 0, fixed_abs, tag = 'sflag constant byte address 0x0 - dummy sync flag']
  #allocation25 [shape = 'u32[]', space=smem, size = 0x4, offset = 0x44, fixed_abs, tag = 'smem constant byte address 0x44 - assertion arg 0']
  #allocation26 [shape = 'u32[]', space=smem, size = 0x4, offset = 0x48, fixed_abs, tag = 'smem constant byte address 0x48 - assertion arg 1']
  #allocation27 [shape = 's32[]', space=sflag, size = 0x4, offset = 0, fixed_abs, tag = 'sflag constant byte address 0x0 - dummy sync flag']
  #allocation28 [shape = 's32[]', space=sflag, size = 0x4, offset = 0, fixed_abs, tag = 'sflag constant byte address 0x0 - dummy sync flag']
  #allocation29 [shape = 's32[]', space=sflag, size = 0x4, offset = 0, fixed_abs, tag = 'sflag constant byte address 0x0 - dummy sync flag']
  #allocation30 [shape = 's32[]', space=sflag, size = 0x4, offset = 0, fixed_abs, tag = 'sflag constant byte address 0x0 - dummy sync flag']
  %s0 = inlined_call_operand.hbm [shape: s32[8], index: 0, kind: input, shape index: {}]
  %s1 = inlined_call_operand.hbm [shape: f32[8,140], index: 1, kind: input, shape index: {}]
  %s2 = inlined_call_operand.hbm [shape: f32[10,128], index: 2, kind: input, shape index: {}]
  %s3 = inlined_call_operand.hbm [shape: bf16[140,128], index: 3, kind: input, shape index: {}]
  %s4 = inlined_call_operand.hbm [shape: f32[1,128], index: 4, kind: input, shape index: {}]
  %s5 = inlined_call_operand.hbm [shape: bf16[128,256], index: 5, kind: input, shape index: {}]
  %s6 = inlined_call_operand.vmem [shape: f32[1,256], index: 6, kind: input, shape index: {}]
  %s7 = inlined_call_operand.hbm [shape: f32[1,256], index: 7, kind: input, shape index: {}]
  %s8 = inlined_call_operand.hbm [shape: bf16[256,512], index: 8, kind: input, shape index: {}]
  %s9 = inlined_call_operand.hbm [shape: f32[1,512], index: 9, kind: input, shape index: {}]
  %s10 = inlined_call_operand.hbm [shape: f32[1,512], index: 10, kind: input, shape index: {}]
  %s11 = inlined_call_operand.hbm [shape: bf16[512,1024], index: 11, kind: input, shape index: {}]
  %s12 = inlined_call_operand.vmem [shape: f32[1,1024], index: 12, kind: input, shape index: {}]
  %s13 = inlined_call_operand.hbm [shape: f32[1,1024], index: 13, kind: input, shape index: {}]
  %s14 = inlined_call_operand.hbm [shape: bf16[1024,256], index: 14, kind: input, shape index: {}]
  %s15 = inlined_call_operand.vmem [shape: f32[1,256], index: 15, kind: input, shape index: {}]
  %s16 = inlined_call_operand.vmem [shape: f32[8,256], index: 16, kind: output, shape index: {}]
  %s17 = sld [smem:[#allocation0]]
  $region114: #{conditional_num_g_forward.1} parent=0
    _
  %s19 = ssub.s32 1, %s17
  %s20 = scalar_select 0, %s19, %s17
  $region1: #{conditional_num_g_forward.1} parent=0
    #allocation7 [shape = 'u8[512]{0}', space=smem, size = 0x200, scoped, tag = 'input window, operand 0, single buffered']
    #allocation8 [shape = 's32[1]{0}', space=sflag, size = 0x4, scoped, tag = 'scoped memory for conditional_num_g_forward.1']
    #allocation9 [shape = 's32[1]{0}', space=sflag, size = 0x4, scoped, tag = 'scoped memory for conditional_num_g_forward.1']
    #allocation10 [shape = 'u8[8192]{0}', space=vmem, size = 0x2000, scoped, tag = 'input window, operand 1, single buffered']
    #allocation11 [shape = 'u8[8192]{0}', space=vmem, size = 0x2000, scoped, tag = 'input window, operand 2, single buffered']
    #allocation12 [shape = 's32[1]{0}', space=sflag, size = 0x4, scoped, tag = 'scoped memory for conditional_num_g_forward.1']
    #allocation13 [shape = 'u8[36864]{0}', space=vmem, size = 0x9000, scoped, tag = 'input window, operand 3, single buffered']
    #allocation14 [shape = 'u8[512]{0}', space=vmem, size = 0x400, scoped, tag = 'input window, operand 4, single buffered']
    #allocation15 [shape = 's32[1]{0}', space=sflag, size = 0x4, scoped, tag = 'scoped memory for conditional_num_g_forward.1']
    #allocation16 [shape = 'u8[65536]{0}', space=vmem, size = 0x10000, scoped, tag = 'input window, operand 5, single buffered']
    #allocation17 [shape = 'u8[1024]{0}', space=vmem, size = 0x400, scoped, tag = 'input window, operand 7, single buffered']
    #allocation18 [shape = 's32[1]{0}', space=sflag, size = 0x4, scoped, tag = 'scoped memory for conditional_num_g_forward.1']
    #allocation19 [shape = 'u8[2048]{0}', space=vmem, size = 0x800, scoped, tag = 'input window, operand 9, single buffered']
    #allocation20 [shape = 'u8[2048]{0}', space=vmem, size = 0x800, scoped, tag = 'input window, operand 10, single buffered']
    #allocation21 [shape = 's32[1]{0}', space=sflag, size = 0x4, scoped, tag = 'scoped memory for conditional_num_g_forward.1']
    #allocation22 [shape = 'u8[4096]{0}', space=vmem, size = 0x1000, scoped, tag = 'input window, operand 13, single buffered']
    %21 = vsyncpa [#allocation9], 0
    %22 = vsyncpa [#allocation8], 0
    %23 = vsyncpa [#allocation12], 0
    %24 = vsyncpa [#allocation15], 0
    %25 = vsyncpa [#allocation18], 0
    %26 = vsyncpa [#allocation21], 0
    // Predicated region
    $region2: #{conditional_num_g_forward.1} parent=1 // pred_check
      _
    $region3: #{conditional_num_g_forward.1} parent=1 // pred_check_branch
      %28 = sbr.rel (0) target = $region5
    $region4: #{conditional_num_g_forward.1} parent=1 // pred_region
      %30 = vsyncadd [#allocation9], 0
      %s32 = sshll.u32 %s0, 4
      %s33 = int_to_ptr.hbm [resolvable:$true] %s32
      %35 = dma.hbm_to_smem %s33, 16, [#allocation7], [#allocation9]
    $region5: #{conditional_num_g_forward.1} parent=1 // pred_fallthru
      _
    // Predicated region
    $region6: #{conditional_num_g_forward.1} parent=1 // pred_check
      _
    $region7: #{conditional_num_g_forward.1} parent=1 // pred_check_branch
      %37 = sbr.rel (0) target = $region9
    $region8: #{conditional_num_g_forward.1} parent=1 // pred_region
      %39 = vsyncadd [#allocation8], 0
      %s41 = sshll.u32 %s1, 4
      %s42 = int_to_ptr.hbm [resolvable:$true] %s41
      %s43 = sshll.u32 [#allocation10], 4
      %s44 = int_to_ptr.vmem [resolvable:$true] %s43
      %46 = dma.hbm_to_vmem [thread:$0]  %s42, 256, %s44, [#allocation8]
    $region9: #{conditional_num_g_forward.1} parent=1 // pred_fallthru
      _
    // Predicated region
    $region10: #{conditional_num_g_forward.1} parent=1 // pred_check
      _
    $region11: #{conditional_num_g_forward.1} parent=1 // pred_check_branch
      %48 = sbr.rel (0) target = $region13
    $region12: #{conditional_num_g_forward.1} parent=1 // pred_region
      %50 = vsyncadd [#allocation12], 0
      %s51 = sshll.u32 %s2, 4
      %s52 = int_to_ptr.hbm [resolvable:$true] %s51
      %s53 = sshll.u32 [#allocation11], 4
      %s54 = int_to_ptr.vmem [resolvable:$true] %s53
      %59 = dma.hbm_to_vmem [thread:$0]  %s52, 256, %s54, [#allocation12], 128, 128, 8
    $region13: #{conditional_num_g_forward.1} parent=1 // pred_fallthru
      _
    // Predicated region
    $region14: #{conditional_num_g_forward.1} parent=1 // pred_check
      _
    $region15: #{conditional_num_g_forward.1} parent=1 // pred_check_branch
      %61 = sbr.rel (0) target = $region17
    $region16: #{conditional_num_g_forward.1} parent=1 // pred_region
      %63 = vsyncadd [#allocation12], 0
      %s64 = sshll.u32 %s3, 4
      %s65 = int_to_ptr.hbm [resolvable:$true] %s64
      %s66 = sshll.u32 [#allocation13], 4
      %s67 = int_to_ptr.vmem [resolvable:$true] %s66
      %72 = dma.hbm_to_vmem [thread:$0]  %s65, 1152, %s67, [#allocation12], 64, 64, 4
    $region17: #{conditional_num_g_forward.1} parent=1 // pred_fallthru
      _
    // Predicated region
    $region18: #{conditional_num_g_forward.1} parent=1 // pred_check
      _
    $region19: #{conditional_num_g_forward.1} parent=1 // pred_check_branch
      %74 = sbr.rel (0) target = $region21
    $region20: #{conditional_num_g_forward.1} parent=1 // pred_region
      %76 = vsyncadd [#allocation15], 0
      %s78 = sshll.u32 %s4, 4
      %s79 = int_to_ptr.hbm [resolvable:$true] %s78
      %s80 = sshll.u32 [#allocation14], 4
      %s81 = int_to_ptr.vmem [resolvable:$true] %s80
      %83 = dma.hbm_to_vmem [thread:$0]  %s79, 16, %s81, [#allocation15]
    $region21: #{conditional_num_g_forward.1} parent=1 // pred_fallthru
      _
    // Predicated region
    $region22: #{conditional_num_g_forward.1} parent=1 // pred_check
      _
    $region23: #{conditional_num_g_forward.1} parent=1 // pred_check_branch
      %85 = sbr.rel (0) target = $region25
    $region24: #{conditional_num_g_forward.1} parent=1 // pred_region
      %87 = vsyncadd [#allocation15], 0
      %s88 = sshll.u32 %s5, 4
      %s89 = int_to_ptr.hbm [resolvable:$true] %s88
      %s90 = sshll.u32 [#allocation16], 4
      %s91 = int_to_ptr.vmem [resolvable:$true] %s90
      %96 = dma.hbm_to_vmem [thread:$0]  %s89, 2048, %s91, [#allocation15], 128, 128, 8
    $region25: #{conditional_num_g_forward.1} parent=1 // pred_fallthru
      _
    // Predicated region
    $region26: #{conditional_num_g_forward.1} parent=1 // pred_check
      _
    $region27: #{conditional_num_g_forward.1} parent=1 // pred_check_branch
      %98 = sbr.rel (0) target = $region29
    $region28: #{conditional_num_g_forward.1} parent=1 // pred_region
      _
    $region29: #{conditional_num_g_forward.1} parent=1 // pred_fallthru
      _
    // Predicated region
    $region30: #{conditional_num_g_forward.1} parent=1 // pred_check
      _
    $region31: #{conditional_num_g_forward.1} parent=1 // pred_check_branch
      %100 = sbr.rel (0) target = $region33
    $region32: #{conditional_num_g_forward.1} parent=1 // pred_region
      %102 = vsyncadd [#allocation18], 0
      %s104 = sshll.u32 %s7, 4
      %s105 = int_to_ptr.hbm [resolvable:$true] %s104
      %s106 = sshll.u32 [#allocation17], 4
      %s107 = int_to_ptr.vmem [resolvable:$true] %s106
      %109 = dma.hbm_to_vmem [thread:$0]  %s105, 32, %s107, [#allocation18]
    $region33: #{conditional_num_g_forward.1} parent=1 // pred_fallthru
      _
    // Predicated region
    $region34: #{conditional_num_g_forward.1} parent=1 // pred_check
      _
    $region35: #{conditional_num_g_forward.1} parent=1 // pred_check_branch
      %111 = sbr.rel (0) target = $region37
    $region36: #{conditional_num_g_forward.1} parent=1 // pred_region
      %113 = vsyncadd [#allocation18], 0
      %s115 = sshll.u32 %s9, 4
      %s116 = int_to_ptr.hbm [resolvable:$true] %s115
      %s117 = sshll.u32 [#allocation19], 4
      %s118 = int_to_ptr.vmem [resolvable:$true] %s117
      %120 = dma.hbm_to_vmem [thread:$0]  %s116, 64, %s118, [#allocation18]
    $region37: #{conditional_num_g_forward.1} parent=1 // pred_fallthru
      _
    // Predicated region
    $region38: #{conditional_num_g_forward.1} parent=1 // pred_check
      _
    $region39: #{conditional_num_g_forward.1} parent=1 // pred_check_branch
      %122 = sbr.rel (0) target = $region41
    $region40: #{conditional_num_g_forward.1} parent=1 // pred_region
      %124 = vsyncadd [#allocation21], 0
      %s126 = sshll.u32 %s10, 4
      %s127 = int_to_ptr.hbm [resolvable:$true] %s126
      %s128 = sshll.u32 [#allocation20], 4
      %s129 = int_to_ptr.vmem [resolvable:$true] %s128
      %131 = dma.hbm_to_vmem [thread:$0]  %s127, 64, %s129, [#allocation21]
    $region41: #{conditional_num_g_forward.1} parent=1 // pred_fallthru
      _
    // Predicated region
    $region42: #{conditional_num_g_forward.1} parent=1 // pred_check
      _
    $region43: #{conditional_num_g_forward.1} parent=1 // pred_check_branch
      %133 = sbr.rel (0) target = $region45
    $region44: #{conditional_num_g_forward.1} parent=1 // pred_region
      _
    $region45: #{conditional_num_g_forward.1} parent=1 // pred_fallthru
      _
    // Predicated region
    $region46: #{conditional_num_g_forward.1} parent=1 // pred_check
      _
    $region47: #{conditional_num_g_forward.1} parent=1 // pred_check_branch
      %135 = sbr.rel (0) target = $region49
    $region48: #{conditional_num_g_forward.1} parent=1 // pred_region
      %137 = vsyncadd [#allocation21], 0
      %s139 = sshll.u32 %s13, 4
      %s140 = int_to_ptr.hbm [resolvable:$true] %s139
      %s141 = sshll.u32 [#allocation22], 4
      %s142 = int_to_ptr.vmem [resolvable:$true] %s141
      %144 = dma.hbm_to_vmem [thread:$0]  %s140, 128, %s142, [#allocation21]
    $region49: #{conditional_num_g_forward.1} parent=1 // pred_fallthru
      _
    // Predicated region
    $region50: #{conditional_num_g_forward.1} parent=1 // pred_check
      _
    $region51: #{conditional_num_g_forward.1} parent=1 // pred_check_branch
      %146 = sbr.rel (0) target = $region53
    $region52: #{conditional_num_g_forward.1} parent=1 // pred_region
      _
    $region53: #{conditional_num_g_forward.1} parent=1 // pred_fallthru
      _
    // Predicated region
    $region54: #{conditional_num_g_forward.1} parent=1 // pred_check
      _
    $region55: #{conditional_num_g_forward.1} parent=1 // pred_check_branch
      %148 = sbr.rel (0) target = $region57
    $region56: #{conditional_num_g_forward.1} parent=1 // pred_region
      %150 = dma.done [#allocation9], 16
    $region57: #{conditional_num_g_forward.1} parent=1 // pred_fallthru
      _
    // Predicated region
    $region58: #{conditional_num_g_forward.1} parent=1 // pred_check
      _
    $region59: #{conditional_num_g_forward.1} parent=1 // pred_check_branch
      %152 = sbr.rel (0) target = $region61
    $region60: #{conditional_num_g_forward.1} parent=1 // pred_region
      %154 = dma.done [#allocation8], 256
    $region61: #{conditional_num_g_forward.1} parent=1 // pred_fallthru
      _
    // Predicated region
    $region62: #{conditional_num_g_forward.1} parent=1 // pred_check
      _
    $region63: #{conditional_num_g_forward.1} parent=1 // pred_check_branch
      %156 = sbr.rel (0) target = $region65
    $region64: #{conditional_num_g_forward.1} parent=1 // pred_region
      %158 = dma.done [#allocation12], 256
    $region65: #{conditional_num_g_forward.1} parent=1 // pred_fallthru
      _
    // Predicated region
    $region66: #{conditional_num_g_forward.1} parent=1 // pred_check
      _
    $region67: #{conditional_num_g_forward.1} parent=1 // pred_check_branch
      %160 = sbr.rel (0) target = $region69
    $region68: #{conditional_num_g_forward.1} parent=1 // pred_region
      %162 = dma.done [#allocation12], 1152
    $region69: #{conditional_num_g_forward.1} parent=1 // pred_fallthru
      _
    // Predicated region
    $region70: #{conditional_num_g_forward.1} parent=1 // pred_check
      _
    $region71: #{conditional_num_g_forward.1} parent=1 // pred_check_branch
      %164 = sbr.rel (0) target = $region73
    $region72: #{conditional_num_g_forward.1} parent=1 // pred_region
      %166 = dma.done [#allocation15], 16
    $region73: #{conditional_num_g_forward.1} parent=1 // pred_fallthru
      _
    // Predicated region
    $region74: #{conditional_num_g_forward.1} parent=1 // pred_check
      _
    $region75: #{conditional_num_g_forward.1} parent=1 // pred_check_branch
      %168 = sbr.rel (0) target = $region77
    $region76: #{conditional_num_g_forward.1} parent=1 // pred_region
      %170 = dma.done [#allocation15], 2048
    $region77: #{conditional_num_g_forward.1} parent=1 // pred_fallthru
      _
    // Predicated region
    $region78: #{conditional_num_g_forward.1} parent=1 // pred_check
      _
    $region79: #{conditional_num_g_forward.1} parent=1 // pred_check_branch
      %172 = sbr.rel (0) target = $region81
    $region80: #{conditional_num_g_forward.1} parent=1 // pred_region
      %174 = dma.done [#allocation18], 32
    $region81: #{conditional_num_g_forward.1} parent=1 // pred_fallthru
      _
    // Predicated region
    $region82: #{conditional_num_g_forward.1} parent=1 // pred_check
      _
    $region83: #{conditional_num_g_forward.1} parent=1 // pred_check_branch
      %176 = sbr.rel (0) target = $region85
    $region84: #{conditional_num_g_forward.1} parent=1 // pred_region
      %178 = dma.done [#allocation18], 64
    $region85: #{conditional_num_g_forward.1} parent=1 // pred_fallthru
      _
    // Predicated region
    $region86: #{conditional_num_g_forward.1} parent=1 // pred_check
      _
    $region87: #{conditional_num_g_forward.1} parent=1 // pred_check_branch
      %180 = sbr.rel (0) target = $region89
    $region88: #{conditional_num_g_forward.1} parent=1 // pred_region
      %182 = dma.done [#allocation21], 64
    $region89: #{conditional_num_g_forward.1} parent=1 // pred_fallthru
      _
    // Predicated region
    $region90: #{conditional_num_g_forward.1} parent=1 // pred_check
      _
    $region91: #{conditional_num_g_forward.1} parent=1 // pred_check_branch
      %184 = sbr.rel (0) target = $region93
    $region92: #{conditional_num_g_forward.1} parent=1 // pred_region
      %186 = dma.done [#allocation21], 128
    $region93: #{conditional_num_g_forward.1} parent=1 // pred_fallthru
      _
    %187 = sfence
    // Predicated region
    $region94: #{conditional_num_g_forward.1} parent=1 // pred_check
      _
    $region95: #{conditional_num_g_forward.1} parent=1 // pred_check_branch
      %190 = sbr.rel target = $region97
    $region96: #{conditional_num_g_forward.1} parent=1 // pred_region
      %191 = sst [smem:[#allocation25]] [#allocation24]
      %192 = sst [smem:[#allocation26]] [#allocation23]
    $region97: #{conditional_num_g_forward.1} parent=1 // pred_fallthru
      _
    %194 = shalt.err (0)
    %s196 = sshll.u32 %s8, 4
    %s197 = int_to_ptr.hbm [resolvable:$true] %s196
    %s198 = sshll.u32 [#allocation3], 4
    %s199 = int_to_ptr.vmem [resolvable:$true] %s198
    %201 = dma.hbm_to_vmem [thread:$0]  %s197, 8192, %s199, [#allocation6]
    %s202 = scalar_lea.sflag [#allocation6], 1
    // Predicated region
    $region98: #{conditional_num_g_forward.1} parent=1 // pred_check
      _
    $region99: #{conditional_num_g_forward.1} parent=1 // pred_check_branch
      %204 = sbr.rel target = $region101
    $region100: #{conditional_num_g_forward.1} parent=1 // pred_region
      %205 = sst [smem:[#allocation25]] [#allocation28]
      %206 = sst [smem:[#allocation26]] [#allocation27]
    $region101: #{conditional_num_g_forward.1} parent=1 // pred_fallthru
      _
    %208 = shalt.err (0)
    %s210 = sshll.u32 %s11, 4
    %s211 = int_to_ptr.hbm [resolvable:$true] %s210
    %s212 = sshll.u32 [#allocation4], 4
    %s213 = int_to_ptr.vmem [resolvable:$true] %s212
    %215 = dma.hbm_to_vmem [thread:$0]  %s211, 32768, %s213, %s202
    %s216 = scalar_lea.sflag [#allocation6], 2
    // Predicated region
    $region102: #{conditional_num_g_forward.1} parent=1 // pred_check
      _
    $region103: #{conditional_num_g_forward.1} parent=1 // pred_check_branch
      %218 = sbr.rel target = $region105
    $region104: #{conditional_num_g_forward.1} parent=1 // pred_region
      %219 = sst [smem:[#allocation25]] [#allocation30]
      %220 = sst [smem:[#allocation26]] [#allocation29]
    $region105: #{conditional_num_g_forward.1} parent=1 // pred_fallthru
      _
    %222 = shalt.err (0)
    %s224 = sshll.u32 %s14, 4
    %s225 = int_to_ptr.hbm [resolvable:$true] %s224
    %s226 = sshll.u32 [#allocation5], 4
    %s227 = int_to_ptr.vmem [resolvable:$true] %s226
    %229 = dma.hbm_to_vmem [thread:$0]  %s225, 16384, %s227, %s216
    %s230 = sld [smem:[#allocation7]]
    %s231 = scalar_lea.vmem [#allocation11], %s230
    %v232 = vld [vmem:[%s231] sm:$0x1]
    %233 = vst [vmem:[#allocation2] sm:$0x1] %v232
    %s234 = sld [smem:[#allocation7 + $0x1]]
    %s235 = scalar_lea.vmem [#allocation11], %s234
    %v236 = vld [vmem:[%s235] sm:$0x1]
    %237 = vst [vmem:[#allocation2 + $0x1] sm:$0x1] %v236
    %s238 = sld [smem:[#allocation7 + $0x2]]
    %s239 = scalar_lea.vmem [#allocation11], %s238
    %v240 = vld [vmem:[%s239] sm:$0x1]
    %241 = vst [vmem:[#allocation2 + $0x2] sm:$0x1] %v240
    %s242 = sld [smem:[#allocation7 + $0x3]]
    %s243 = scalar_lea.vmem [#allocation11], %s242
    %v244 = vld [vmem:[%s243] sm:$0x1]
    %245 = vst [vmem:[#allocation2 + $0x3] sm:$0x1] %v244
    %s246 = sld [smem:[#allocation7 + $0x4]]
    %s247 = scalar_lea.vmem [#allocation11], %s246
    %v248 = vld [vmem:[%s247] sm:$0x1]
    %249 = vst [vmem:[#allocation2 + $0x4] sm:$0x1] %v248
    %s250 = sld [smem:[#allocation7 + $0x5]]
    %s251 = scalar_lea.vmem [#allocation11], %s250
    %v252 = vld [vmem:[%s251] sm:$0x1]
    %253 = vst [vmem:[#allocation2 + $0x5] sm:$0x1] %v252
    %s254 = sld [smem:[#allocation7 + $0x6]]
    %s255 = scalar_lea.vmem [#allocation11], %s254
    %v256 = vld [vmem:[%s255] sm:$0x1]
    %257 = vst [vmem:[#allocation2 + $0x6] sm:$0x1] %v256
    %s258 = sld [smem:[#allocation7 + $0x7]]
    %s259 = scalar_lea.vmem [#allocation11], %s258
    %v260 = vld [vmem:[%s259] sm:$0x1]
    %261 = vst [vmem:[#allocation2 + $0x7] sm:$0x1] %v260
    %v262 = vld [vmem:[#allocation10] sm:$0xff]
    %v263 = vld [vmem:[#allocation10 + $0x8] sm:$0xff]
    %v264 = vpack.c.bf16 %v262, %v262
    %v265 = vpack.c.bf16 %v263, %v263
    %v266 = vld [vmem:[#allocation13] sm:$0xf]
    %v267 = vld [vmem:[#allocation13 + $0x4] sm:$0xf]
    %v268 = vld [vmem:[#allocation13 + $0x8] sm:$0xf]
    %v269 = vld [vmem:[#allocation13 + $0xc] sm:$0xf]
    %v270 = vld [vmem:[#allocation13 + $0x10] sm:$0xf]
    %v271 = vld [vmem:[#allocation13 + $0x14] sm:$0xf]
    %v272 = vld [vmem:[#allocation13 + $0x18] sm:$0xf]
    %v273 = vld [vmem:[#allocation13 + $0x1c] sm:$0xf]
    %v274 = vld [vmem:[#allocation13 + $0x20] sm:$0xf]
    %v275 = vld [vmem:[#allocation13 + $0x24] sm:$0xf]
    %v276 = vld [vmem:[#allocation13 + $0x28] sm:$0xf]
    %v277 = vld [vmem:[#allocation13 + $0x2c] sm:$0xf]
    %v278 = vld [vmem:[#allocation13 + $0x30] sm:$0xf]
    %v279 = vld [vmem:[#allocation13 + $0x34] sm:$0xf]
    %v280 = vld [vmem:[#allocation13 + $0x38] sm:$0xf]
    %v281 = vld [vmem:[#allocation13 + $0x3c] sm:$0xf]
    %v282 = vld [vmem:[#allocation13 + $0x40] sm:$0xf]
    %v283 = vld [vmem:[#allocation13 + $0x44] sm:$0x3]
    %v284 = vld [vmem:[#allocation2] sm:$0xff]
    %v303 = vunpack.c.l.b16 %v266
    %v304 = vunpack.c.l.b16 %v267
    %v305 = vunpack.c.l.b16 %v268
    %v306 = vunpack.c.l.b16 %v269
    %v307 = vunpack.c.l.b16 %v270
    %v308 = vunpack.c.l.b16 %v271
    %v309 = vunpack.c.l.b16 %v272
    %v310 = vunpack.c.l.b16 %v273
    %v311 = vunpack.c.l.b16 %v274
    %v312 = vunpack.c.l.b16 %v275
    %v313 = vunpack.c.l.b16 %v276
    %v314 = vunpack.c.l.b16 %v277
    %v315 = vunpack.c.l.b16 %v278
    %v316 = vunpack.c.l.b16 %v279
    %v317 = vunpack.c.l.b16 %v280
    %v318 = vunpack.c.l.b16 %v281
    %v319 = vunpack.c.l.b16 %v282
    %v320 = vunpack.c.l.b16 %v283
    %v321 = vpack.c.b16 %v304, %v303
    %v322 = vpack.c.b16 %v306, %v305
    %v323 = vpack.c.b16 %v308, %v307
    %v324 = vpack.c.b16 %v310, %v309
    %v325 = vpack.c.b16 %v312, %v311
    %v326 = vpack.c.b16 %v314, %v313
    %v327 = vpack.c.b16 %v316, %v315
    %v328 = vpack.c.b16 %v318, %v317
    %v329 = vpack.c.b16 %v320, %v319
    %vm338 = vcmask 97280
    %v340 = vsel %vm338, %v265, 0
    %vm342 = vcmask 1045504
    %v344 = vsel %vm342, %v329, 0
    %346 = vmatpush.bf16.msra.mxu0 %v328
    %347 = vmatpush.bf16.msra.mxu0 %v327
    %348 = vmatpush.bf16.msra.mxu0 %v326
    %349 = vmatpush.bf16.msra.mxu0 %v325
    %350 = vmatpush.bf16.msra.mxu0 %v324
    %351 = vmatpush.bf16.msra.mxu0 %v323
    %352 = vmatpush.bf16.msra.mxu0 %v322
    %353 = vmatpush.bf16.msra.mxu0 %v321
    %354 = vmatmul.bf16.gmra.mxu0 %v264
    %v355 = vpop.f32.mrf.mxu0
    %v356 = vadd.f32 %v284, %v355
    %v357 = vpop.f32.mrf.mxu0
    %358 = vdwg.mxu0
    %359 = vmatpush.bf16.msra.mxu0 0
    %360 = vmatpush.bf16.msra.mxu0 0
    %361 = vmatpush.bf16.msra.mxu0 0
    %362 = vmatpush.bf16.msra.mxu0 0
    %363 = vmatpush.bf16.msra.mxu0 0
    %364 = vmatpush.bf16.msra.mxu0 0
    %365 = vmatpush.bf16.msra.mxu0 0
    %366 = vmatpush.bf16.msra.mxu0 %v344
    %367 = vmatmul.bf16.gmra.mxu0 %v340
    %v368 = vpop.f32.mrf.mxu0
    %v369 = vadd.f32 %v356, %v368
    %v370 = vpop.f32.mrf.mxu0
    %371 = vdwg.mxu0
    %v372 = vld [vmem:[#allocation14] sm:$0x1]
    %v374 = vperm.slane %v372, 0
    %v376 = vadd.f32 %v369, %v374
    %vm377 = vcmp.gt.f32.partialorder %v376, 0.0
    %v378 = vmul.f32 %v376, 0.2
    %v379 = vsel %vm377, %v376, %v378
    %v380 = vpack.c.bf16 %v379, %v379
    %v381 = vld [vmem:[#allocation16] sm:$0xff]
    %v382 = vld [vmem:[#allocation16 + $0x8] sm:$0xff]
    %v383 = vld [vmem:[#allocation16 + $0x10] sm:$0xff]
    %v384 = vld [vmem:[#allocation16 + $0x18] sm:$0xff]
    %v385 = vld [vmem:[#allocation16 + $0x20] sm:$0xff]
    %v386 = vld [vmem:[#allocation16 + $0x28] sm:$0xff]
    %v387 = vld [vmem:[#allocation16 + $0x30] sm:$0xff]
    %v388 = vld [vmem:[#allocation16 + $0x38] sm:$0xff]
    %v389 = vld [vmem:[#allocation16 + $0x40] sm:$0xff]
    %v390 = vld [vmem:[#allocation16 + $0x48] sm:$0xff]
    %v391 = vld [vmem:[#allocation16 + $0x50] sm:$0xff]
    %v392 = vld [vmem:[#allocation16 + $0x58] sm:$0xff]
    %v393 = vld [vmem:[#allocation16 + $0x60] sm:$0xff]
    %v394 = vld [vmem:[#allocation16 + $0x68] sm:$0xff]
    %v395 = vld [vmem:[#allocation16 + $0x70] sm:$0xff]
    %v396 = vld [vmem:[#allocation16 + $0x78] sm:$0xff]
    %v413 = vunpack.c.l.b16 %v381
    %v414 = vunpack.c.h.b16 %v381
    %v415 = vunpack.c.l.b16 %v382
    %v416 = vunpack.c.h.b16 %v382
    %v417 = vunpack.c.l.b16 %v383
    %v418 = vunpack.c.h.b16 %v383
    %v419 = vunpack.c.l.b16 %v384
    %v420 = vunpack.c.h.b16 %v384
    %v421 = vunpack.c.l.b16 %v385
    %v422 = vunpack.c.h.b16 %v385
    %v423 = vunpack.c.l.b16 %v386
    %v424 = vunpack.c.h.b16 %v386
    %v425 = vunpack.c.l.b16 %v387
    %v426 = vunpack.c.h.b16 %v387
    %v427 = vunpack.c.l.b16 %v388
    %v428 = vunpack.c.h.b16 %v388
    %v429 = vunpack.c.l.b16 %v389
    %v430 = vunpack.c.h.b16 %v389
    %v431 = vunpack.c.l.b16 %v390
    %v432 = vunpack.c.h.b16 %v390
    %v433 = vunpack.c.l.b16 %v391
    %v434 = vunpack.c.h.b16 %v391
    %v435 = vunpack.c.l.b16 %v392
    %v436 = vunpack.c.h.b16 %v392
    %v437 = vunpack.c.l.b16 %v393
    %v438 = vunpack.c.h.b16 %v393
    %v439 = vunpack.c.l.b16 %v394
    %v440 = vunpack.c.h.b16 %v394
    %v441 = vunpack.c.l.b16 %v395
    %v442 = vunpack.c.h.b16 %v395
    %v443 = vunpack.c.l.b16 %v396
    %v444 = vunpack.c.h.b16 %v396
    %v445 = vpack.c.b16 %v415, %v413
    %v446 = vpack.c.b16 %v416, %v414
    %v447 = vpack.c.b16 %v419, %v417
    %v448 = vpack.c.b16 %v420, %v418
    %v449 = vpack.c.b16 %v423, %v421
    %v450 = vpack.c.b16 %v424, %v422
    %v451 = vpack.c.b16 %v427, %v425
    %v452 = vpack.c.b16 %v428, %v426
    %v453 = vpack.c.b16 %v431, %v429
    %v454 = vpack.c.b16 %v432, %v430
    %v455 = vpack.c.b16 %v435, %v433
    %v456 = vpack.c.b16 %v436, %v434
    %v457 = vpack.c.b16 %v439, %v437
    %v458 = vpack.c.b16 %v440, %v438
    %v459 = vpack.c.b16 %v443, %v441
    %v460 = vpack.c.b16 %v444, %v442
    %477 = vmatpush.bf16.msra.mxu0 %v459
    %478 = vmatpush.bf16.msra.mxu0 %v457
    %479 = vmatpush.bf16.msra.mxu0 %v455
    %480 = vmatpush.bf16.msra.mxu0 %v453
    %481 = vmatpush.bf16.msra.mxu0 %v451
    %482 = vmatpush.bf16.msra.mxu0 %v449
    %483 = vmatpush.bf16.msra.mxu0 %v447
    %484 = vmatpush.bf16.msra.mxu0 %v445
    %485 = vmatmul.bf16.gmra.mxu0 %v380
    %v486 = vpop.f32.mrf.mxu0
    %v487 = vadd.f32 0.0, %v486
    %v488 = vpop.f32.mrf.mxu0
    %489 = vdwg.mxu0
    %490 = vmatpush.bf16.msra.mxu0 %v460
    %491 = vmatpush.bf16.msra.mxu0 %v458
    %492 = vmatpush.bf16.msra.mxu0 %v456
    %493 = vmatpush.bf16.msra.mxu0 %v454
    %494 = vmatpush.bf16.msra.mxu0 %v452
    %495 = vmatpush.bf16.msra.mxu0 %v450
    %496 = vmatpush.bf16.msra.mxu0 %v448
    %497 = vmatpush.bf16.msra.mxu0 %v446
    %498 = vmatmul.bf16.gmra.mxu0 %v380
    %v499 = vpop.f32.mrf.mxu0
    %v500 = vadd.f32 0.0, %v499
    %v501 = vpop.f32.mrf.mxu0
    %502 = vdwg.mxu0
    %v503 = vld [vmem:[%s6] sm:$0x3]
    %v504 = vld [vmem:[#allocation17] sm:$0x3]
    %v505 = vrot.slane %v487, 4
    %v506 = vadd.f32 %v487, %v505
    %v507 = vrot.slane %v506, 2
    %v508 = vadd.f32 %v506, %v507
    %v509 = vrot.slane %v508, 1
    %v510 = vadd.f32 %v508, %v509
    %v511 = vrot.slane %v500, 4
    %v512 = vadd.f32 %v500, %v511
    %v513 = vrot.slane %v512, 2
    %v514 = vadd.f32 %v512, %v513
    %v515 = vrot.slane %v514, 1
    %v516 = vadd.f32 %v514, %v515
    %v517 = vrcp.pop 8.0
    %v518 = vmul.f32 8.0, %v517
    %v519 = vsub.f32 1.0, %v518
    %v520 = vmul.f32 %v517, %v519
    %v521 = vadd.f32 %v517, %v520
    %vm522 = vweird.f32 %v517
    %v523 = vsel %vm522, %v517, %v521
    %v524 = vmul.f32 %v510, %v523
    %v525 = vmul.f32 %v516, %v523
    %v526 = vmul.f32 %v487, %v487
    %v527 = vmul.f32 %v500, %v500
    %v528 = vrot.slane %v526, 4
    %v529 = vadd.f32 %v526, %v528
    %v530 = vrot.slane %v529, 2
    %v531 = vadd.f32 %v529, %v530
    %v532 = vrot.slane %v531, 1
    %v533 = vadd.f32 %v531, %v532
    %v534 = vrot.slane %v527, 4
    %v535 = vadd.f32 %v527, %v534
    %v536 = vrot.slane %v535, 2
    %v537 = vadd.f32 %v535, %v536
    %v538 = vrot.slane %v537, 1
    %v539 = vadd.f32 %v537, %v538
    %v540 = vmul.f32 %v533, %v523
    %v541 = vmul.f32 %v539, %v523
    %v542 = vmul.f32 %v524, %v524
    %v543 = vmul.f32 %v525, %v525
    %v544 = vsub.f32 %v540, %v542
    %v545 = vsub.f32 %v541, %v543
    %v546 = vmax.f32 %v544, 0.0
    %v547 = vmax.f32 %v545, 0.0
    %v548 = vadd.f32 %v546, 1e-05
    %v549 = vadd.f32 %v547, 1e-05
    %v550 = vrsqrt.pop %v548
    %v551 = vmul.f32 %v550, %v548
    %v552 = vmul.f32 %v551, %v550
    %v553 = vmul.f32 0.5, %v552
    %v554 = vsub.f32 1.5, %v553
    %v555 = vmul.f32 %v550, %v554
    %vm556 = vweird.f32 %v548
    %vm557 = vweird.f32 %v550
    %vm558 = vmor %vm556, %vm557
    %v559 = vsel %vm558, %v550, %v555
    %v560 = vrsqrt.pop %v549
    %v561 = vmul.f32 %v560, %v549
    %v562 = vmul.f32 %v561, %v560
    %v563 = vmul.f32 0.5, %v562
    %v564 = vsub.f32 1.5, %v563
    %v565 = vmul.f32 %v560, %v564
    %vm566 = vweird.f32 %v549
    %vm567 = vweird.f32 %v560
    %vm568 = vmor %vm566, %vm567
    %v569 = vsel %vm568, %v560, %v565
    %v572 = vrot.slane %v569, 7
    %vm573 = vcmask 1040384
    %v574 = vsel %vm573, %v559, %v572
    %v576 = vmul.f32 %v503, %v574
    %v578 = vperm.slane %v576, 0
    %v579 = vperm.slane %v576, 1
    %v582 = vmul.f32 %v524, %v578
    %v583 = vmul.f32 %v525, %v579
    %v586 = vrot.slane %v583, 7
    %v587 = vsel %vm573, %v582, %v586
    %v589 = vsub.f32 %v504, %v587
    %v590 = vmul.f32 %v487, %v578
    %v591 = vmul.f32 %v500, %v579
    %v593 = vperm.slane %v589, 0
    %v594 = vperm.slane %v589, 1
    %v597 = vadd.f32 %v590, %v593
    %v598 = vadd.f32 %v591, %v594
    %vm599 = vcmp.gt.f32.partialorder %v597, 0.0
    %vm600 = vcmp.gt.f32.partialorder %v598, 0.0
    %v601 = vmul.f32 %v597, 0.2
    %v602 = vmul.f32 %v598, 0.2
    %v603 = vsel %vm599, %v597, %v601
    %v604 = vsel %vm600, %v598, %v602
    %s605 = smul.u32 4, 32
    %s606 = smul.u32 %s605, 4
    %s607 = sshll.u32 %s606, 4
    %608 = dma.done [#allocation6], %s607
    %v609 = vpack.c.bf16 %v603, %v603
    %v610 = vpack.c.bf16 %v604, %v604
    %v611 = vld [vmem:[#allocation3] sm:$0xff]
    %v612 = vld [vmem:[#allocation3 + $0x8] sm:$0xff]
    %v613 = vld [vmem:[#allocation3 + $0x10] sm:$0xff]
    %v614 = vld [vmem:[#allocation3 + $0x18] sm:$0xff]
    %v615 = vld [vmem:[#allocation3 + $0x20] sm:$0xff]
    %v616 = vld [vmem:[#allocation3 + $0x28] sm:$0xff]
    %v617 = vld [vmem:[#allocation3 + $0x30] sm:$0xff]
    %v618 = vld [vmem:[#allocation3 + $0x38] sm:$0xff]
    %v619 = vld [vmem:[#allocation3 + $0x40] sm:$0xff]
    %v620 = vld [vmem:[#allocation3 + $0x48] sm:$0xff]
    %v621 = vld [vmem:[#allocation3 + $0x50] sm:$0xff]
    %v622 = vld [vmem:[#allocation3 + $0x58] sm:$0xff]
    %v623 = vld [vmem:[#allocation3 + $0x60] sm:$0xff]
    %v624 = vld [vmem:[#allocation3 + $0x68] sm:$0xff]
    %v625 = vld [vmem:[#allocation3 + $0x70] sm:$0xff]
    %v626 = vld [vmem:[#allocation3 + $0x78] sm:$0xff]
    %v627 = vld [vmem:[#allocation3 + $0x80] sm:$0xff]
    %v628 = vld [vmem:[#allocation3 + $0x88] sm:$0xff]
    %v629 = vld [vmem:[#allocation3 + $0x90] sm:$0xff]
    %v630 = vld [vmem:[#allocation3 + $0x98] sm:$0xff]
    %v631 = vld [vmem:[#allocation3 + $0xa0] sm:$0xff]
    %v632 = vld [vmem:[#allocation3 + $0xa8] sm:$0xff]
    %v633 = vld [vmem:[#allocation3 + $0xb0] sm:$0xff]
    %v634 = vld [vmem:[#allocation3 + $0xb8] sm:$0xff]
    %v635 = vld [vmem:[#allocation3 + $0xc0] sm:$0xff]
    %v636 = vld [vmem:[#allocation3 + $0xc8] sm:$0xff]
    %v637 = vld [vmem:[#allocation3 + $0xd0] sm:$0xff]
    %v638 = vld [vmem:[#allocation3 + $0xd8] sm:$0xff]
    %v639 = vld [vmem:[#allocation3 + $0xe0] sm:$0xff]
    %v640 = vld [vmem:[#allocation3 + $0xe8] sm:$0xff]
    %v641 = vld [vmem:[#allocation3 + $0xf0] sm:$0xff]
    %v642 = vld [vmem:[#allocation3 + $0xf8] sm:$0xff]
    %v643 = vld [vmem:[#allocation3 + $0x100] sm:$0xff]
    %v644 = vld [vmem:[#allocation3 + $0x108] sm:$0xff]
    %v645 = vld [vmem:[#allocation3 + $0x110] sm:$0xff]
    %v646 = vld [vmem:[#allocation3 + $0x118] sm:$0xff]
    %v647 = vld [vmem:[#allocation3 + $0x120] sm:$0xff]
    %v648 = vld [vmem:[#allocation3 + $0x128] sm:$0xff]
    %v649 = vld [vmem:[#allocation3 + $0x130] sm:$0xff]
    %v650 = vld [vmem:[#allocation3 + $0x138] sm:$0xff]
    %v651 = vld [vmem:[#allocation3 + $0x140] sm:$0xff]
    %v652 = vld [vmem:[#allocation3 + $0x148] sm:$0xff]
    %v653 = vld [vmem:[#allocation3 + $0x150] sm:$0xff]
    %v654 = vld [vmem:[#allocation3 + $0x158] sm:$0xff]
    %v655 = vld [vmem:[#allocation3 + $0x160] sm:$0xff]
    %v656 = vld [vmem:[#allocation3 + $0x168] sm:$0xff]
    %v657 = vld [vmem:[#allocation3 + $0x170] sm:$0xff]
    %v658 = vld [vmem:[#allocation3 + $0x178] sm:$0xff]
    %v659 = vld [vmem:[#allocation3 + $0x180] sm:$0xff]
    %v660 = vld [vmem:[#allocation3 + $0x188] sm:$0xff]
    %v661 = vld [vmem:[#allocation3 + $0x190] sm:$0xff]
    %v662 = vld [vmem:[#allocation3 + $0x198] sm:$0xff]
    %v663 = vld [vmem:[#allocation3 + $0x1a0] sm:$0xff]
    %v664 = vld [vmem:[#allocation3 + $0x1a8] sm:$0xff]
    %v665 = vld [vmem:[#allocation3 + $0x1b0] sm:$0xff]
    %v666 = vld [vmem:[#allocation3 + $0x1b8] sm:$0xff]
    %v667 = vld [vmem:[#allocation3 + $0x1c0] sm:$0xff]
    %v668 = vld [vmem:[#allocation3 + $0x1c8] sm:$0xff]
    %v669 = vld [vmem:[#allocation3 + $0x1d0] sm:$0xff]
    %v670 = vld [vmem:[#allocation3 + $0x1d8] sm:$0xff]
    %v671 = vld [vmem:[#allocation3 + $0x1e0] sm:$0xff]
    %v672 = vld [vmem:[#allocation3 + $0x1e8] sm:$0xff]
    %v673 = vld [vmem:[#allocation3 + $0x1f0] sm:$0xff]
    %v674 = vld [vmem:[#allocation3 + $0x1f8] sm:$0xff]
    %v739 = vunpack.c.l.b16 %v611
    %v740 = vunpack.c.h.b16 %v611
    %v741 = vunpack.c.l.b16 %v612
    %v742 = vunpack.c.h.b16 %v612
    %v743 = vunpack.c.l.b16 %v613
    %v744 = vunpack.c.h.b16 %v613
    %v745 = vunpack.c.l.b16 %v614
    %v746 = vunpack.c.h.b16 %v614
    %v747 = vunpack.c.l.b16 %v615
    %v748 = vunpack.c.h.b16 %v615
    %v749 = vunpack.c.l.b16 %v616
    %v750 = vunpack.c.h.b16 %v616
    %v751 = vunpack.c.l.b16 %v617
    %v752 = vunpack.c.h.b16 %v617
    %v753 = vunpack.c.l.b16 %v618
    %v754 = vunpack.c.h.b16 %v618
    %v755 = vunpack.c.l.b16 %v619
    %v756 = vunpack.c.h.b16 %v619
    %v757 = vunpack.c.l.b16 %v620
    %v758 = vunpack.c.h.b16 %v620
    %v759 = vunpack.c.l.b16 %v621
    %v760 = vunpack.c.h.b16 %v621
    %v761 = vunpack.c.l.b16 %v622
    %v762 = vunpack.c.h.b16 %v622
    %v763 = vunpack.c.l.b16 %v623
    %v764 = vunpack.c.h.b16 %v623
    %v765 = vunpack.c.l.b16 %v624
    %v766 = vunpack.c.h.b16 %v624
    %v767 = vunpack.c.l.b16 %v625
    %v768 = vunpack.c.h.b16 %v625
    %v769 = vunpack.c.l.b16 %v626
    %v770 = vunpack.c.h.b16 %v626
    %v771 = vunpack.c.l.b16 %v627
    %v772 = vunpack.c.h.b16 %v627
    %v773 = vunpack.c.l.b16 %v628
    %v774 = vunpack.c.h.b16 %v628
    %v775 = vunpack.c.l.b16 %v629
    %v776 = vunpack.c.h.b16 %v629
    %v777 = vunpack.c.l.b16 %v630
    %v778 = vunpack.c.h.b16 %v630
    %v779 = vunpack.c.l.b16 %v631
    %v780 = vunpack.c.h.b16 %v631
    %v781 = vunpack.c.l.b16 %v632
    %v782 = vunpack.c.h.b16 %v632
    %v783 = vunpack.c.l.b16 %v633
    %v784 = vunpack.c.h.b16 %v633
    %v785 = vunpack.c.l.b16 %v634
    %v786 = vunpack.c.h.b16 %v634
    %v787 = vunpack.c.l.b16 %v635
    %v788 = vunpack.c.h.b16 %v635
    %v789 = vunpack.c.l.b16 %v636
    %v790 = vunpack.c.h.b16 %v636
    %v791 = vunpack.c.l.b16 %v637
    %v792 = vunpack.c.h.b16 %v637
    %v793 = vunpack.c.l.b16 %v638
    %v794 = vunpack.c.h.b16 %v638
    %v795 = vunpack.c.l.b16 %v639
    %v796 = vunpack.c.h.b16 %v639
    %v797 = vunpack.c.l.b16 %v640
    %v798 = vunpack.c.h.b16 %v640
    %v799 = vunpack.c.l.b16 %v641
    %v800 = vunpack.c.h.b16 %v641
    %v801 = vunpack.c.l.b16 %v642
    %v802 = vunpack.c.h.b16 %v642
    %v803 = vunpack.c.l.b16 %v643
    %v804 = vunpack.c.h.b16 %v643
    %v805 = vunpack.c.l.b16 %v644
    %v806 = vunpack.c.h.b16 %v644
    %v807 = vunpack.c.l.b16 %v645
    %v808 = vunpack.c.h.b16 %v645
    %v809 = vunpack.c.l.b16 %v646
    %v810 = vunpack.c.h.b16 %v646
    %v811 = vunpack.c.l.b16 %v647
    %v812 = vunpack.c.h.b16 %v647
    %v813 = vunpack.c.l.b16 %v648
    %v814 = vunpack.c.h.b16 %v648
    %v815 = vunpack.c.l.b16 %v649
    %v816 = vunpack.c.h.b16 %v649
    %v817 = vunpack.c.l.b16 %v650
    %v818 = vunpack.c.h.b16 %v650
    %v819 = vunpack.c.l.b16 %v651
    %v820 = vunpack.c.h.b16 %v651
    %v821 = vunpack.c.l.b16 %v652
    %v822 = vunpack.c.h.b16 %v652
    %v823 = vunpack.c.l.b16 %v653
    %v824 = vunpack.c.h.b16 %v653
    %v825 = vunpack.c.l.b16 %v654
    %v826 = vunpack.c.h.b16 %v654
    %v827 = vunpack.c.l.b16 %v655
    %v828 = vunpack.c.h.b16 %v655
    %v829 = vunpack.c.l.b16 %v656
    %v830 = vunpack.c.h.b16 %v656
    %v831 = vunpack.c.l.b16 %v657
    %v832 = vunpack.c.h.b16 %v657
    %v833 = vunpack.c.l.b16 %v658
    %v834 = vunpack.c.h.b16 %v658
    %v835 = vunpack.c.l.b16 %v659
    %v836 = vunpack.c.h.b16 %v659
    %v837 = vunpack.c.l.b16 %v660
    %v838 = vunpack.c.h.b16 %v660
    %v839 = vunpack.c.l.b16 %v661
    %v840 = vunpack.c.h.b16 %v661
    %v841 = vunpack.c.l.b16 %v662
    %v842 = vunpack.c.h.b16 %v662
    %v843 = vunpack.c.l.b16 %v663
    %v844 = vunpack.c.h.b16 %v663
    %v845 = vunpack.c.l.b16 %v664
    %v846 = vunpack.c.h.b16 %v664
    %v847 = vunpack.c.l.b16 %v665
    %v848 = vunpack.c.h.b16 %v665
    %v849 = vunpack.c.l.b16 %v666
    %v850 = vunpack.c.h.b16 %v666
    %v851 = vunpack.c.l.b16 %v667
    %v852 = vunpack.c.h.b16 %v667
    %v853 = vunpack.c.l.b16 %v668
    %v854 = vunpack.c.h.b16 %v668
    %v855 = vunpack.c.l.b16 %v669
    %v856 = vunpack.c.h.b16 %v669
    %v857 = vunpack.c.l.b16 %v670
    %v858 = vunpack.c.h.b16 %v670
    %v859 = vunpack.c.l.b16 %v671
    %v860 = vunpack.c.h.b16 %v671
    %v861 = vunpack.c.l.b16 %v672
    %v862 = vunpack.c.h.b16 %v672
    %v863 = vunpack.c.l.b16 %v673
    %v864 = vunpack.c.h.b16 %v673
    %v865 = vunpack.c.l.b16 %v674
    %v866 = vunpack.c.h.b16 %v674
    %v867 = vpack.c.b16 %v743, %v739
    %v868 = vpack.c.b16 %v744, %v740
    %v869 = vpack.c.b16 %v745, %v741
    %v870 = vpack.c.b16 %v746, %v742
    %v871 = vpack.c.b16 %v751, %v747
    %v872 = vpack.c.b16 %v752, %v748
    %v873 = vpack.c.b16 %v753, %v749
    %v874 = vpack.c.b16 %v754, %v750
    %v875 = vpack.c.b16 %v759, %v755
    %v876 = vpack.c.b16 %v760, %v756
    %v877 = vpack.c.b16 %v761, %v757
    %v878 = vpack.c.b16 %v762, %v758
    %v879 = vpack.c.b16 %v767, %v763
    %v880 = vpack.c.b16 %v768, %v764
    %v881 = vpack.c.b16 %v769, %v765
    %v882 = vpack.c.b16 %v770, %v766
    %v883 = vpack.c.b16 %v775, %v771
    %v884 = vpack.c.b16 %v776, %v772
    %v885 = vpack.c.b16 %v777, %v773
    %v886 = vpack.c.b16 %v778, %v774
    %v887 = vpack.c.b16 %v783, %v779
    %v888 = vpack.c.b16 %v784, %v780
    %v889 = vpack.c.b16 %v785, %v781
    %v890 = vpack.c.b16 %v786, %v782
    %v891 = vpack.c.b16 %v791, %v787
    %v892 = vpack.c.b16 %v792, %v788
    %v893 = vpack.c.b16 %v793, %v789
    %v894 = vpack.c.b16 %v794, %v790
    %v895 = vpack.c.b16 %v799, %v795
    %v896 = vpack.c.b16 %v800, %v796
    %v897 = vpack.c.b16 %v801, %v797
    %v898 = vpack.c.b16 %v802, %v798
    %v899 = vpack.c.b16 %v807, %v803
    %v900 = vpack.c.b16 %v808, %v804
    %v901 = vpack.c.b16 %v809, %v805
    %v902 = vpack.c.b16 %v810, %v806
    %v903 = vpack.c.b16 %v815, %v811
    %v904 = vpack.c.b16 %v816, %v812
    %v905 = vpack.c.b16 %v817, %v813
    %v906 = vpack.c.b16 %v818, %v814
    %v907 = vpack.c.b16 %v823, %v819
    %v908 = vpack.c.b16 %v824, %v820
    %v909 = vpack.c.b16 %v825, %v821
    %v910 = vpack.c.b16 %v826, %v822
    %v911 = vpack.c.b16 %v831, %v827
    %v912 = vpack.c.b16 %v832, %v828
    %v913 = vpack.c.b16 %v833, %v829
    %v914 = vpack.c.b16 %v834, %v830
    %v915 = vpack.c.b16 %v839, %v835
    %v916 = vpack.c.b16 %v840, %v836
    %v917 = vpack.c.b16 %v841, %v837
    %v918 = vpack.c.b16 %v842, %v838
    %v919 = vpack.c.b16 %v847, %v843
    %v920 = vpack.c.b16 %v848, %v844
    %v921 = vpack.c.b16 %v849, %v845
    %v922 = vpack.c.b16 %v850, %v846
    %v923 = vpack.c.b16 %v855, %v851
    %v924 = vpack.c.b16 %v856, %v852
    %v925 = vpack.c.b16 %v857, %v853
    %v926 = vpack.c.b16 %v858, %v854
    %v927 = vpack.c.b16 %v863, %v859
    %v928 = vpack.c.b16 %v864, %v860
    %v929 = vpack.c.b16 %v865, %v861
    %v930 = vpack.c.b16 %v866, %v862
    %995 = vmatpush.bf16.msra.mxu0 %v895
    %996 = vmatpush.bf16.msra.mxu0 %v891
    %997 = vmatpush.bf16.msra.mxu0 %v887
    %998 = vmatpush.bf16.msra.mxu0 %v883
    %999 = vmatpush.bf16.msra.mxu0 %v879
    %1000 = vmatpush.bf16.msra.mxu0 %v875
    %1001 = vmatpush.bf16.msra.mxu0 %v871
    %1002 = vmatpush.bf16.msra.mxu0 %v867
    %1003 = vmatmul.bf16.gmra.mxu0 %v609
    %v1004 = vpop.f32.mrf.mxu0
    %v1005 = vadd.f32 0.0, %v1004
    %v1006 = vpop.f32.mrf.mxu0
    %1007 = vdwg.mxu0
    %1008 = vmatpush.bf16.msra.mxu0 %v927
    %1009 = vmatpush.bf16.msra.mxu0 %v923
    %1010 = vmatpush.bf16.msra.mxu0 %v919
    %1011 = vmatpush.bf16.msra.mxu0 %v915
    %1012 = vmatpush.bf16.msra.mxu0 %v911
    %1013 = vmatpush.bf16.msra.mxu0 %v907
    %1014 = vmatpush.bf16.msra.mxu0 %v903
    %1015 = vmatpush.bf16.msra.mxu0 %v899
    %1016 = vmatmul.bf16.gmra.mxu0 %v610
    %v1017 = vpop.f32.mrf.mxu0
    %v1018 = vadd.f32 %v1005, %v1017
    %v1019 = vpop.f32.mrf.mxu0
    %1020 = vdwg.mxu0
    %1021 = vmatpush.bf16.msra.mxu0 %v896
    %1022 = vmatpush.bf16.msra.mxu0 %v892
    %1023 = vmatpush.bf16.msra.mxu0 %v888
    %1024 = vmatpush.bf16.msra.mxu0 %v884
    %1025 = vmatpush.bf16.msra.mxu0 %v880
    %1026 = vmatpush.bf16.msra.mxu0 %v876
    %1027 = vmatpush.bf16.msra.mxu0 %v872
    %1028 = vmatpush.bf16.msra.mxu0 %v868
    %1029 = vmatmul.bf16.gmra.mxu0 %v609
    %v1030 = vpop.f32.mrf.mxu0
    %v1031 = vadd.f32 0.0, %v1030
    %v1032 = vpop.f32.mrf.mxu0
    %1033 = vdwg.mxu0
    %1034 = vmatpush.bf16.msra.mxu0 %v928
    %1035 = vmatpush.bf16.msra.mxu0 %v924
    %1036 = vmatpush.bf16.msra.mxu0 %v920
    %1037 = vmatpush.bf16.msra.mxu0 %v916
    %1038 = vmatpush.bf16.msra.mxu0 %v912
    %1039 = vmatpush.bf16.msra.mxu0 %v908
    %1040 = vmatpush.bf16.msra.mxu0 %v904
    %1041 = vmatpush.bf16.msra.mxu0 %v900
    %1042 = vmatmul.bf16.gmra.mxu0 %v610
    %v1043 = vpop.f32.mrf.mxu0
    %v1044 = vadd.f32 %v1031, %v1043
    %v1045 = vpop.f32.mrf.mxu0
    %1046 = vdwg.mxu0
    %1047 = vmatpush.bf16.msra.mxu0 %v897
    %1048 = vmatpush.bf16.msra.mxu0 %v893
    %1049 = vmatpush.bf16.msra.mxu0 %v889
    %1050 = vmatpush.bf16.msra.mxu0 %v885
    %1051 = vmatpush.bf16.msra.mxu0 %v881
    %1052 = vmatpush.bf16.msra.mxu0 %v877
    %1053 = vmatpush.bf16.msra.mxu0 %v873
    %1054 = vmatpush.bf16.msra.mxu0 %v869
    %1055 = vmatmul.bf16.gmra.mxu0 %v609
    %v1056 = vpop.f32.mrf.mxu0
    %v1057 = vadd.f32 0.0, %v1056
    %v1058 = vpop.f32.mrf.mxu0
    %1059 = vdwg.mxu0
    %1060 = vmatpush.bf16.msra.mxu0 %v929
    %1061 = vmatpush.bf16.msra.mxu0 %v925
    %1062 = vmatpush.bf16.msra.mxu0 %v921
    %1063 = vmatpush.bf16.msra.mxu0 %v917
    %1064 = vmatpush.bf16.msra.mxu0 %v913
    %1065 = vmatpush.bf16.msra.mxu0 %v909
    %1066 = vmatpush.bf16.msra.mxu0 %v905
    %1067 = vmatpush.bf16.msra.mxu0 %v901
    %1068 = vmatmul.bf16.gmra.mxu0 %v610
    %v1069 = vpop.f32.mrf.mxu0
    %v1070 = vadd.f32 %v1057, %v1069
    %v1071 = vpop.f32.mrf.mxu0
    %1072 = vdwg.mxu0
    %1073 = vmatpush.bf16.msra.mxu0 %v898
    %1074 = vmatpush.bf16.msra.mxu0 %v894
    %1075 = vmatpush.bf16.msra.mxu0 %v890
    %1076 = vmatpush.bf16.msra.mxu0 %v886
    %1077 = vmatpush.bf16.msra.mxu0 %v882
    %1078 = vmatpush.bf16.msra.mxu0 %v878
    %1079 = vmatpush.bf16.msra.mxu0 %v874
    %1080 = vmatpush.bf16.msra.mxu0 %v870
    %1081 = vmatmul.bf16.gmra.mxu0 %v609
    %v1082 = vpop.f32.mrf.mxu0
    %v1083 = vadd.f32 0.0, %v1082
    %v1084 = vpop.f32.mrf.mxu0
    %1085 = vdwg.mxu0
    %1086 = vmatpush.bf16.msra.mxu0 %v930
    %1087 = vmatpush.bf16.msra.mxu0 %v926
    %1088 = vmatpush.bf16.msra.mxu0 %v922
    %1089 = vmatpush.bf16.msra.mxu0 %v918
    %1090 = vmatpush.bf16.msra.mxu0 %v914
    %1091 = vmatpush.bf16.msra.mxu0 %v910
    %1092 = vmatpush.bf16.msra.mxu0 %v906
    %1093 = vmatpush.bf16.msra.mxu0 %v902
    %1094 = vmatmul.bf16.gmra.mxu0 %v610
    %v1095 = vpop.f32.mrf.mxu0
    %v1096 = vadd.f32 %v1083, %v1095
    %v1097 = vpop.f32.mrf.mxu0
    %1098 = vdwg.mxu0
    %v1099 = vld [vmem:[#allocation19] sm:$0xf]
    %v1100 = vld [vmem:[#allocation20] sm:$0xf]
    %v1101 = vrot.slane %v1018, 4
    %v1102 = vadd.f32 %v1018, %v1101
    %v1103 = vrot.slane %v1102, 2
    %v1104 = vadd.f32 %v1102, %v1103
    %v1105 = vrot.slane %v1104, 1
    %v1106 = vadd.f32 %v1104, %v1105
    %v1107 = vrot.slane %v1044, 4
    %v1108 = vadd.f32 %v1044, %v1107
    %v1109 = vrot.slane %v1108, 2
    %v1110 = vadd.f32 %v1108, %v1109
    %v1111 = vrot.slane %v1110, 1
    %v1112 = vadd.f32 %v1110, %v1111
    %v1113 = vrot.slane %v1070, 4
    %v1114 = vadd.f32 %v1070, %v1113
    %v1115 = vrot.slane %v1114, 2
    %v1116 = vadd.f32 %v1114, %v1115
    %v1117 = vrot.slane %v1116, 1
    %v1118 = vadd.f32 %v1116, %v1117
    %v1119 = vrot.slane %v1096, 4
    %v1120 = vadd.f32 %v1096, %v1119
    %v1121 = vrot.slane %v1120, 2
    %v1122 = vadd.f32 %v1120, %v1121
    %v1123 = vrot.slane %v1122, 1
    %v1124 = vadd.f32 %v1122, %v1123
    %v1125 = vmul.f32 %v1106, %v523
    %v1126 = vmul.f32 %v1112, %v523
    %v1127 = vmul.f32 %v1118, %v523
    %v1128 = vmul.f32 %v1124, %v523
    %v1129 = vmul.f32 %v1018, %v1018
    %v1130 = vmul.f32 %v1044, %v1044
    %v1131 = vmul.f32 %v1070, %v1070
    %v1132 = vmul.f32 %v1096, %v1096
    %v1133 = vrot.slane %v1129, 4
    %v1134 = vadd.f32 %v1129, %v1133
    %v1135 = vrot.slane %v1134, 2
    %v1136 = vadd.f32 %v1134, %v1135
    %v1137 = vrot.slane %v1136, 1
    %v1138 = vadd.f32 %v1136, %v1137
    %v1139 = vrot.slane %v1130, 4
    %v1140 = vadd.f32 %v1130, %v1139
    %v1141 = vrot.slane %v1140, 2
    %v1142 = vadd.f32 %v1140, %v1141
    %v1143 = vrot.slane %v1142, 1
    %v1144 = vadd.f32 %v1142, %v1143
    %v1145 = vrot.slane %v1131, 4
    %v1146 = vadd.f32 %v1131, %v1145
    %v1147 = vrot.slane %v1146, 2
    %v1148 = vadd.f32 %v1146, %v1147
    %v1149 = vrot.slane %v1148, 1
    %v1150 = vadd.f32 %v1148, %v1149
    %v1151 = vrot.slane %v1132, 4
    %v1152 = vadd.f32 %v1132, %v1151
    %v1153 = vrot.slane %v1152, 2
    %v1154 = vadd.f32 %v1152, %v1153
    %v1155 = vrot.slane %v1154, 1
    %v1156 = vadd.f32 %v1154, %v1155
    %v1157 = vmul.f32 %v1138, %v523
    %v1158 = vmul.f32 %v1144, %v523
    %v1159 = vmul.f32 %v1150, %v523
    %v1160 = vmul.f32 %v1156, %v523
    %v1161 = vmul.f32 %v1125, %v1125
    %v1162 = vmul.f32 %v1126, %v1126
    %v1163 = vmul.f32 %v1127, %v1127
    %v1164 = vmul.f32 %v1128, %v1128
    %v1165 = vsub.f32 %v1157, %v1161
    %v1166 = vsub.f32 %v1158, %v1162
    %v1167 = vsub.f32 %v1159, %v1163
    %v1168 = vsub.f32 %v1160, %v1164
    %v1169 = vmax.f32 %v1165, 0.0
    %v1170 = vmax.f32 %v1166, 0.0
    %v1171 = vmax.f32 %v1167, 0.0
    %v1172 = vmax.f32 %v1168, 0.0
    %v1173 = vadd.f32 %v1169, 1e-05
    %v1174 = vadd.f32 %v1170, 1e-05
    %v1175 = vadd.f32 %v1171, 1e-05
    %v1176 = vadd.f32 %v1172, 1e-05
    %v1177 = vrsqrt.pop %v1173
    %v1178 = vmul.f32 %v1177, %v1173
    %v1179 = vmul.f32 %v1178, %v1177
    %v1180 = vmul.f32 0.5, %v1179
    %v1181 = vsub.f32 1.5, %v1180
    %v1182 = vmul.f32 %v1177, %v1181
    %vm1183 = vweird.f32 %v1173
    %vm1184 = vweird.f32 %v1177
    %vm1185 = vmor %vm1183, %vm1184
    %v1186 = vsel %vm1185, %v1177, %v1182
    %v1187 = vrsqrt.pop %v1174
    %v1188 = vmul.f32 %v1187, %v1174
    %v1189 = vmul.f32 %v1188, %v1187
    %v1190 = vmul.f32 0.5, %v1189
    %v1191 = vsub.f32 1.5, %v1190
    %v1192 = vmul.f32 %v1187, %v1191
    %vm1193 = vweird.f32 %v1174
    %vm1194 = vweird.f32 %v1187
    %vm1195 = vmor %vm1193, %vm1194
    %v1196 = vsel %vm1195, %v1187, %v1192
    %v1197 = vrsqrt.pop %v1175
    %v1198 = vmul.f32 %v1197, %v1175
    %v1199 = vmul.f32 %v1198, %v1197
    %v1200 = vmul.f32 0.5, %v1199
    %v1201 = vsub.f32 1.5, %v1200
    %v1202 = vmul.f32 %v1197, %v1201
    %vm1203 = vweird.f32 %v1175
    %vm1204 = vweird.f32 %v1197
    %vm1205 = vmor %vm1203, %vm1204
    %v1206 = vsel %vm1205, %v1197, %v1202
    %v1207 = vrsqrt.pop %v1176
    %v1208 = vmul.f32 %v1207, %v1176
    %v1209 = vmul.f32 %v1208, %v1207
    %v1210 = vmul.f32 0.5, %v1209
    %v1211 = vsub.f32 1.5, %v1210
    %v1212 = vmul.f32 %v1207, %v1211
    %vm1213 = vweird.f32 %v1176
    %vm1214 = vweird.f32 %v1207
    %vm1215 = vmor %vm1213, %vm1214
    %v1216 = vsel %vm1215, %v1207, %v1212
    %v1221 = vrot.slane %v1196, 7
    %v1222 = vrot.slane %v1206, 6
    %v1223 = vrot.slane %v1216, 5
    %v1224 = vsel %vm573, %v1186, %v1221
    %vm1225 = vcmask 1042434
    %v1226 = vsel %vm1225, %v1222, %v1223
    %vm1227 = vcmask 1041408
    %v1228 = vsel %vm1227, %v1224, %v1226
    %v1230 = vmul.f32 %v1099, %v1228
    %v1232 = vperm.slane %v1230, 0
    %v1233 = vperm.slane %v1230, 1
    %v1234 = vperm.slane %v1230, 2
    %v1235 = vperm.slane %v1230, 3
    %v1240 = vmul.f32 %v1125, %v1232
    %v1241 = vmul.f32 %v1126, %v1233
    %v1242 = vmul.f32 %v1127, %v1234
    %v1243 = vmul.f32 %v1128, %v1235
    %v1248 = vrot.slane %v1241, 7
    %v1249 = vrot.slane %v1242, 6
    %v1250 = vrot.slane %v1243, 5
    %v1251 = vsel %vm573, %v1240, %v1248
    %v1252 = vsel %vm1225, %v1249, %v1250
    %v1253 = vsel %vm1227, %v1251, %v1252
    %v1255 = vsub.f32 %v1100, %v1253
    %v1256 = vmul.f32 %v1018, %v1232
    %v1257 = vmul.f32 %v1044, %v1233
    %v1258 = vmul.f32 %v1070, %v1234
    %v1259 = vmul.f32 %v1096, %v1235
    %v1261 = vperm.slane %v1255, 0
    %v1262 = vperm.slane %v1255, 1
    %v1263 = vperm.slane %v1255, 2
    %v1264 = vperm.slane %v1255, 3
    %v1269 = vadd.f32 %v1256, %v1261
    %v1270 = vadd.f32 %v1257, %v1262
    %v1271 = vadd.f32 %v1258, %v1263
    %v1272 = vadd.f32 %v1259, %v1264
    %vm1273 = vcmp.gt.f32.partialorder %v1269, 0.0
    %vm1274 = vcmp.gt.f32.partialorder %v1270, 0.0
    %vm1275 = vcmp.gt.f32.partialorder %v1271, 0.0
    %vm1276 = vcmp.gt.f32.partialorder %v1272, 0.0
    %v1277 = vmul.f32 %v1269, 0.2
    %v1278 = vmul.f32 %v1270, 0.2
    %v1279 = vmul.f32 %v1271, 0.2
    %v1280 = vmul.f32 %v1272, 0.2
    %v1281 = vsel %vm1273, %v1269, %v1277
    %v1282 = vsel %vm1274, %v1270, %v1278
    %v1283 = vsel %vm1275, %v1271, %v1279
    %v1284 = vsel %vm1276, %v1272, %v1280
    %s1285 = smul.u32 4, 64
    %s1286 = smul.u32 %s1285, 8
    %s1287 = sshll.u32 %s1286, 4
    %1288 = dma.done %s202, %s1287
    %v1289 = vpack.c.bf16 %v1281, %v1281
    %v1290 = vpack.c.bf16 %v1282, %v1282
    %v1291 = vpack.c.bf16 %v1283, %v1283
    %v1292 = vpack.c.bf16 %v1284, %v1284
    %v1293 = vld [vmem:[#allocation4] sm:$0xff]
    %v1294 = vld [vmem:[#allocation4 + $0x8] sm:$0xff]
    %v1295 = vld [vmem:[#allocation4 + $0x10] sm:$0xff]
    %v1296 = vld [vmem:[#allocation4 + $0x18] sm:$0xff]
    %v1297 = vld [vmem:[#allocation4 + $0x20] sm:$0xff]
    %v1298 = vld [vmem:[#allocation4 + $0x28] sm:$0xff]
    %v1299 = vld [vmem:[#allocation4 + $0x30] sm:$0xff]
    %v1300 = vld [vmem:[#allocation4 + $0x38] sm:$0xff]
    %v1301 = vld [vmem:[#allocation4 + $0x40] sm:$0xff]
    %v1302 = vld [vmem:[#allocation4 + $0x48] sm:$0xff]
    %v1303 = vld [vmem:[#allocation4 + $0x50] sm:$0xff]
    %v1304 = vld [vmem:[#allocation4 + $0x58] sm:$0xff]
    %v1305 = vld [vmem:[#allocation4 + $0x60] sm:$0xff]
    %v1306 = vld [vmem:[#allocation4 + $0x68] sm:$0xff]
    %v1307 = vld [vmem:[#allocation4 + $0x70] sm:$0xff]
    %v1308 = vld [vmem:[#allocation4 + $0x78] sm:$0xff]
    %v1309 = vld [vmem:[#allocation4 + $0x80] sm:$0xff]
    %v1310 = vld [vmem:[#allocation4 + $0x88] sm:$0xff]
    %v1311 = vld [vmem:[#allocation4 + $0x90] sm:$0xff]
    %v1312 = vld [vmem:[#allocation4 + $0x98] sm:$0xff]
    %v1313 = vld [vmem:[#allocation4 + $0xa0] sm:$0xff]
    %v1314 = vld [vmem:[#allocation4 + $0xa8] sm:$0xff]
    %v1315 = vld [vmem:[#allocation4 + $0xb0] sm:$0xff]
    %v1316 = vld [vmem:[#allocation4 + $0xb8] sm:$0xff]
    %v1317 = vld [vmem:[#allocation4 + $0xc0] sm:$0xff]
    %v1318 = vld [vmem:[#allocation4 + $0xc8] sm:$0xff]
    %v1319 = vld [vmem:[#allocation4 + $0xd0] sm:$0xff]
    %v1320 = vld [vmem:[#allocation4 + $0xd8] sm:$0xff]
    %v1321 = vld [vmem:[#allocation4 + $0xe0] sm:$0xff]
    %v1322 = vld [vmem:[#allocation4 + $0xe8] sm:$0xff]
    %v1323 = vld [vmem:[#allocation4 + $0xf0] sm:$0xff]
    %v1324 = vld [vmem:[#allocation4 + $0xf8] sm:$0xff]
    %v1325 = vld [vmem:[#allocation4 + $0x100] sm:$0xff]
    %v1326 = vld [vmem:[#allocation4 + $0x108] sm:$0xff]
    %v1327 = vld [vmem:[#allocation4 + $0x110] sm:$0xff]
    %v1328 = vld [vmem:[#allocation4 + $0x118] sm:$0xff]
    %v1329 = vld [vmem:[#allocation4 + $0x120] sm:$0xff]
    %v1330 = vld [vmem:[#allocation4 + $0x128] sm:$0xff]
    %v1331 = vld [vmem:[#allocation4 + $0x130] sm:$0xff]
    %v1332 = vld [vmem:[#allocation4 + $0x138] sm:$0xff]
    %v1333 = vld [vmem:[#allocation4 + $0x140] sm:$0xff]
    %v1334 = vld [vmem:[#allocation4 + $0x148] sm:$0xff]
    %v1335 = vld [vmem:[#allocation4 + $0x150] sm:$0xff]
    %v1336 = vld [vmem:[#allocation4 + $0x158] sm:$0xff]
    %v1337 = vld [vmem:[#allocation4 + $0x160] sm:$0xff]
    %v1338 = vld [vmem:[#allocation4 + $0x168] sm:$0xff]
    %v1339 = vld [vmem:[#allocation4 + $0x170] sm:$0xff]
    %v1340 = vld [vmem:[#allocation4 + $0x178] sm:$0xff]
    %v1341 = vld [vmem:[#allocation4 + $0x180] sm:$0xff]
    %v1342 = vld [vmem:[#allocation4 + $0x188] sm:$0xff]
    %v1343 = vld [vmem:[#allocation4 + $0x190] sm:$0xff]
    %v1344 = vld [vmem:[#allocation4 + $0x198] sm:$0xff]
    %v1345 = vld [vmem:[#allocation4 + $0x1a0] sm:$0xff]
    %v1346 = vld [vmem:[#allocation4 + $0x1a8] sm:$0xff]
    %v1347 = vld [vmem:[#allocation4 + $0x1b0] sm:$0xff]
    %v1348 = vld [vmem:[#allocation4 + $0x1b8] sm:$0xff]
    %v1349 = vld [vmem:[#allocation4 + $0x1c0] sm:$0xff]
    %v1350 = vld [vmem:[#allocation4 + $0x1c8] sm:$0xff]
    %v1351 = vld [vmem:[#allocation4 + $0x1d0] sm:$0xff]
    %v1352 = vld [vmem:[#allocation4 + $0x1d8] sm:$0xff]
    %v1353 = vld [vmem:[#allocation4 + $0x1e0] sm:$0xff]
    %v1354 = vld [vmem:[#allocation4 + $0x1e8] sm:$0xff]
    %v1355 = vld [vmem:[#allocation4 + $0x1f0] sm:$0xff]
    %v1356 = vld [vmem:[#allocation4 + $0x1f8] sm:$0xff]
    %v1357 = vld [vmem:[#allocation4 + $0x200] sm:$0xff]
    %v1358 = vld [vmem:[#allocation4 + $0x208] sm:$0xff]
    %v1359 = vld [vmem:[#allocation4 + $0x210] sm:$0xff]
    %v1360 = vld [vmem:[#allocation4 + $0x218] sm:$0xff]
    %v1361 = vld [vmem:[#allocation4 + $0x220] sm:$0xff]
    %v1362 = vld [vmem:[#allocation4 + $0x228] sm:$0xff]
    %v1363 = vld [vmem:[#allocation4 + $0x230] sm:$0xff]
    %v1364 = vld [vmem:[#allocation4 + $0x238] sm:$0xff]
    %v1365 = vld [vmem:[#allocation4 + $0x240] sm:$0xff]
    %v1366 = vld [vmem:[#allocation4 + $0x248] sm:$0xff]
    %v1367 = vld [vmem:[#allocation4 + $0x250] sm:$0xff]
    %v1368 = vld [vmem:[#allocation4 + $0x258] sm:$0xff]
    %v1369 = vld [vmem:[#allocation4 + $0x260] sm:$0xff]
    %v1370 = vld [vmem:[#allocation4 + $0x268] sm:$0xff]
    %v1371 = vld [vmem:[#allocation4 + $0x270] sm:$0xff]
    %v1372 = vld [vmem:[#allocation4 + $0x278] sm:$0xff]
    %v1373 = vld [vmem:[#allocation4 + $0x280] sm:$0xff]
    %v1374 = vld [vmem:[#allocation4 + $0x288] sm:$0xff]
    %v1375 = vld [vmem:[#allocation4 + $0x290] sm:$0xff]
    %v1376 = vld [vmem:[#allocation4 + $0x298] sm:$0xff]
    %v1377 = vld [vmem:[#allocation4 + $0x2a0] sm:$0xff]
    %v1378 = vld [vmem:[#allocation4 + $0x2a8] sm:$0xff]
    %v1379 = vld [vmem:[#allocation4 + $0x2b0] sm:$0xff]
    %v1380 = vld [vmem:[#allocation4 + $0x2b8] sm:$0xff]
    %v1381 = vld [vmem:[#allocation4 + $0x2c0] sm:$0xff]
    %v1382 = vld [vmem:[#allocation4 + $0x2c8] sm:$0xff]
    %v1383 = vld [vmem:[#allocation4 + $0x2d0] sm:$0xff]
    %v1384 = vld [vmem:[#allocation4 + $0x2d8] sm:$0xff]
    %v1385 = vld [vmem:[#allocation4 + $0x2e0] sm:$0xff]
    %v1386 = vld [vmem:[#allocation4 + $0x2e8] sm:$0xff]
    %v1387 = vld [vmem:[#allocation4 + $0x2f0] sm:$0xff]
    %v1388 = vld [vmem:[#allocation4 + $0x2f8] sm:$0xff]
    %v1389 = vld [vmem:[#allocation4 + $0x300] sm:$0xff]
    %v1390 = vld [vmem:[#allocation4 + $0x308] sm:$0xff]
    %v1391 = vld [vmem:[#allocation4 + $0x310] sm:$0xff]
    %v1392 = vld [vmem:[#allocation4 + $0x318] sm:$0xff]
    %v1393 = vld [vmem:[#allocation4 + $0x320] sm:$0xff]
    %v1394 = vld [vmem:[#allocation4 + $0x328] sm:$0xff]
    %v1395 = vld [vmem:[#allocation4 + $0x330] sm:$0xff]
    %v1396 = vld [vmem:[#allocation4 + $0x338] sm:$0xff]
    %v1397 = vld [vmem:[#allocation4 + $0x340] sm:$0xff]
    %v1398 = vld [vmem:[#allocation4 + $0x348] sm:$0xff]
    %v1399 = vld [vmem:[#allocation4 + $0x350] sm:$0xff]
    %v1400 = vld [vmem:[#allocation4 + $0x358] sm:$0xff]
    %v1401 = vld [vmem:[#allocation4 + $0x360] sm:$0xff]
    %v1402 = vld [vmem:[#allocation4 + $0x368] sm:$0xff]
    %v1403 = vld [vmem:[#allocation4 + $0x370] sm:$0xff]
    %v1404 = vld [vmem:[#allocation4 + $0x378] sm:$0xff]
    %v1405 = vld [vmem:[#allocation4 + $0x380] sm:$0xff]
    %v1406 = vld [vmem:[#allocation4 + $0x388] sm:$0xff]
    %v1407 = vld [vmem:[#allocation4 + $0x390] sm:$0xff]
    %v1408 = vld [vmem:[#allocation4 + $0x398] sm:$0xff]
    %v1409 = vld [vmem:[#allocation4 + $0x3a0] sm:$0xff]
    %v1410 = vld [vmem:[#allocation4 + $0x3a8] sm:$0xff]
    %v1411 = vld [vmem:[#allocation4 + $0x3b0] sm:$0xff]
    %v1412 = vld [vmem:[#allocation4 + $0x3b8] sm:$0xff]
    %v1413 = vld [vmem:[#allocation4 + $0x3c0] sm:$0xff]
    %v1414 = vld [vmem:[#allocation4 + $0x3c8] sm:$0xff]
    %v1415 = vld [vmem:[#allocation4 + $0x3d0] sm:$0xff]
    %v1416 = vld [vmem:[#allocation4 + $0x3d8] sm:$0xff]
    %v1417 = vld [vmem:[#allocation4 + $0x3e0] sm:$0xff]
    %v1418 = vld [vmem:[#allocation4 + $0x3e8] sm:$0xff]
    %v1419 = vld [vmem:[#allocation4 + $0x3f0] sm:$0xff]
    %v1420 = vld [vmem:[#allocation4 + $0x3f8] sm:$0xff]
    %v1421 = vld [vmem:[#allocation4 + $0x400] sm:$0xff]
    %v1422 = vld [vmem:[#allocation4 + $0x408] sm:$0xff]
    %v1423 = vld [vmem:[#allocation4 + $0x410] sm:$0xff]
    %v1424 = vld [vmem:[#allocation4 + $0x418] sm:$0xff]
    %v1425 = vld [vmem:[#allocation4 + $0x420] sm:$0xff]
    %v1426 = vld [vmem:[#allocation4 + $0x428] sm:$0xff]
    %v1427 = vld [vmem:[#allocation4 + $0x430] sm:$0xff]
    %v1428 = vld [vmem:[#allocation4 + $0x438] sm:$0xff]
    %v1429 = vld [vmem:[#allocation4 + $0x440] sm:$0xff]
    %v1430 = vld [vmem:[#allocation4 + $0x448] sm:$0xff]
    %v1431 = vld [vmem:[#allocation4 + $0x450] sm:$0xff]
    %v1432 = vld [vmem:[#allocation4 + $0x458] sm:$0xff]
    %v1433 = vld [vmem:[#allocation4 + $0x460] sm:$0xff]
    %v1434 = vld [vmem:[#allocation4 + $0x468] sm:$0xff]
    %v1435 = vld [vmem:[#allocation4 + $0x470] sm:$0xff]
    %v1436 = vld [vmem:[#allocation4 + $0x478] sm:$0xff]
    %v1437 = vld [vmem:[#allocation4 + $0x480] sm:$0xff]
    %v1438 = vld [vmem:[#allocation4 + $0x488] sm:$0xff]
    %v1439 = vld [vmem:[#allocation4 + $0x490] sm:$0xff]
    %v1440 = vld [vmem:[#allocation4 + $0x498] sm:$0xff]
    %v1441 = vld [vmem:[#allocation4 + $0x4a0] sm:$0xff]
    %v1442 = vld [vmem:[#allocation4 + $0x4a8] sm:$0xff]
    %v1443 = vld [vmem:[#allocation4 + $0x4b0] sm:$0xff]
    %v1444 = vld [vmem:[#allocation4 + $0x4b8] sm:$0xff]
    %v1445 = vld [vmem:[#allocation4 + $0x4c0] sm:$0xff]
    %v1446 = vld [vmem:[#allocation4 + $0x4c8] sm:$0xff]
    %v1447 = vld [vmem:[#allocation4 + $0x4d0] sm:$0xff]
    %v1448 = vld [vmem:[#allocation4 + $0x4d8] sm:$0xff]
    %v1449 = vld [vmem:[#allocation4 + $0x4e0] sm:$0xff]
    %v1450 = vld [vmem:[#allocation4 + $0x4e8] sm:$0xff]
    %v1451 = vld [vmem:[#allocation4 + $0x4f0] sm:$0xff]
    %v1452 = vld [vmem:[#allocation4 + $0x4f8] sm:$0xff]
    %v1453 = vld [vmem:[#allocation4 + $0x500] sm:$0xff]
    %v1454 = vld [vmem:[#allocation4 + $0x508] sm:$0xff]
    %v1455 = vld [vmem:[#allocation4 + $0x510] sm:$0xff]
    %v1456 = vld [vmem:[#allocation4 + $0x518] sm:$0xff]
    %v1457 = vld [vmem:[#allocation4 + $0x520] sm:$0xff]
    %v1458 = vld [vmem:[#allocation4 + $0x528] sm:$0xff]
    %v1459 = vld [vmem:[#allocation4 + $0x530] sm:$0xff]
    %v1460 = vld [vmem:[#allocation4 + $0x538] sm:$0xff]
    %v1461 = vld [vmem:[#allocation4 + $0x540] sm:$0xff]
    %v1462 = vld [vmem:[#allocation4 + $0x548] sm:$0xff]
    %v1463 = vld [vmem:[#allocation4 + $0x550] sm:$0xff]
    %v1464 = vld [vmem:[#allocation4 + $0x558] sm:$0xff]
    %v1465 = vld [vmem:[#allocation4 + $0x560] sm:$0xff]
    %v1466 = vld [vmem:[#allocation4 + $0x568] sm:$0xff]
    %v1467 = vld [vmem:[#allocation4 + $0x570] sm:$0xff]
    %v1468 = vld [vmem:[#allocation4 + $0x578] sm:$0xff]
    %v1469 = vld [vmem:[#allocation4 + $0x580] sm:$0xff]
    %v1470 = vld [vmem:[#allocation4 + $0x588] sm:$0xff]
    %v1471 = vld [vmem:[#allocation4 + $0x590] sm:$0xff]
    %v1472 = vld [vmem:[#allocation4 + $0x598] sm:$0xff]
    %v1473 = vld [vmem:[#allocation4 + $0x5a0] sm:$0xff]
    %v1474 = vld [vmem:[#allocation4 + $0x5a8] sm:$0xff]
    %v1475 = vld [vmem:[#allocation4 + $0x5b0] sm:$0xff]
    %v1476 = vld [vmem:[#allocation4 + $0x5b8] sm:$0xff]
    %v1477 = vld [vmem:[#allocation4 + $0x5c0] sm:$0xff]
    %v1478 = vld [vmem:[#allocation4 + $0x5c8] sm:$0xff]
    %v1479 = vld [vmem:[#allocation4 + $0x5d0] sm:$0xff]
    %v1480 = vld [vmem:[#allocation4 + $0x5d8] sm:$0xff]
    %v1481 = vld [vmem:[#allocation4 + $0x5e0] sm:$0xff]
    %v1482 = vld [vmem:[#allocation4 + $0x5e8] sm:$0xff]
    %v1483 = vld [vmem:[#allocation4 + $0x5f0] sm:$0xff]
    %v1484 = vld [vmem:[#allocation4 + $0x5f8] sm:$0xff]
    %v1485 = vld [vmem:[#allocation4 + $0x600] sm:$0xff]
    %v1486 = vld [vmem:[#allocation4 + $0x608] sm:$0xff]
    %v1487 = vld [vmem:[#allocation4 + $0x610] sm:$0xff]
    %v1488 = vld [vmem:[#allocation4 + $0x618] sm:$0xff]
    %v1489 = vld [vmem:[#allocation4 + $0x620] sm:$0xff]
    %v1490 = vld [vmem:[#allocation4 + $0x628] sm:$0xff]
    %v1491 = vld [vmem:[#allocation4 + $0x630] sm:$0xff]
    %v1492 = vld [vmem:[#allocation4 + $0x638] sm:$0xff]
    %v1493 = vld [vmem:[#allocation4 + $0x640] sm:$0xff]
    %v1494 = vld [vmem:[#allocation4 + $0x648] sm:$0xff]
    %v1495 = vld [vmem:[#allocation4 + $0x650] sm:$0xff]
    %v1496 = vld [vmem:[#allocation4 + $0x658] sm:$0xff]
    %v1497 = vld [vmem:[#allocation4 + $0x660] sm:$0xff]
    %v1498 = vld [vmem:[#allocation4 + $0x668] sm:$0xff]
    %v1499 = vld [vmem:[#allocation4 + $0x670] sm:$0xff]
    %v1500 = vld [vmem:[#allocation4 + $0x678] sm:$0xff]
    %v1501 = vld [vmem:[#allocation4 + $0x680] sm:$0xff]
    %v1502 = vld [vmem:[#allocation4 + $0x688] sm:$0xff]
    %v1503 = vld [vmem:[#allocation4 + $0x690] sm:$0xff]
    %v1504 = vld [vmem:[#allocation4 + $0x698] sm:$0xff]
    %v1505 = vld [vmem:[#allocation4 + $0x6a0] sm:$0xff]
    %v1506 = vld [vmem:[#allocation4 + $0x6a8] sm:$0xff]
    %v1507 = vld [vmem:[#allocation4 + $0x6b0] sm:$0xff]
    %v1508 = vld [vmem:[#allocation4 + $0x6b8] sm:$0xff]
    %v1509 = vld [vmem:[#allocation4 + $0x6c0] sm:$0xff]
    %v1510 = vld [vmem:[#allocation4 + $0x6c8] sm:$0xff]
    %v1511 = vld [vmem:[#allocation4 + $0x6d0] sm:$0xff]
    %v1512 = vld [vmem:[#allocation4 + $0x6d8] sm:$0xff]
    %v1513 = vld [vmem:[#allocation4 + $0x6e0] sm:$0xff]
    %v1514 = vld [vmem:[#allocation4 + $0x6e8] sm:$0xff]
    %v1515 = vld [vmem:[#allocation4 + $0x6f0] sm:$0xff]
    %v1516 = vld [vmem:[#allocation4 + $0x6f8] sm:$0xff]
    %v1517 = vld [vmem:[#allocation4 + $0x700] sm:$0xff]
    %v1518 = vld [vmem:[#allocation4 + $0x708] sm:$0xff]
    %v1519 = vld [vmem:[#allocation4 + $0x710] sm:$0xff]
    %v1520 = vld [vmem:[#allocation4 + $0x718] sm:$0xff]
    %v1521 = vld [vmem:[#allocation4 + $0x720] sm:$0xff]
    %v1522 = vld [vmem:[#allocation4 + $0x728] sm:$0xff]
    %v1523 = vld [vmem:[#allocation4 + $0x730] sm:$0xff]
    %v1524 = vld [vmem:[#allocation4 + $0x738] sm:$0xff]
    %v1525 = vld [vmem:[#allocation4 + $0x740] sm:$0xff]
    %v1526 = vld [vmem:[#allocation4 + $0x748] sm:$0xff]
    %v1527 = vld [vmem:[#allocation4 + $0x750] sm:$0xff]
    %v1528 = vld [vmem:[#allocation4 + $0x758] sm:$0xff]
    %v1529 = vld [vmem:[#allocation4 + $0x760] sm:$0xff]
    %v1530 = vld [vmem:[#allocation4 + $0x768] sm:$0xff]
    %v1531 = vld [vmem:[#allocation4 + $0x770] sm:$0xff]
    %v1532 = vld [vmem:[#allocation4 + $0x778] sm:$0xff]
    %v1533 = vld [vmem:[#allocation4 + $0x780] sm:$0xff]
    %v1534 = vld [vmem:[#allocation4 + $0x788] sm:$0xff]
    %v1535 = vld [vmem:[#allocation4 + $0x790] sm:$0xff]
    %v1536 = vld [vmem:[#allocation4 + $0x798] sm:$0xff]
    %v1537 = vld [vmem:[#allocation4 + $0x7a0] sm:$0xff]
    %v1538 = vld [vmem:[#allocation4 + $0x7a8] sm:$0xff]
    %v1539 = vld [vmem:[#allocation4 + $0x7b0] sm:$0xff]
    %v1540 = vld [vmem:[#allocation4 + $0x7b8] sm:$0xff]
    %v1541 = vld [vmem:[#allocation4 + $0x7c0] sm:$0xff]
    %v1542 = vld [vmem:[#allocation4 + $0x7c8] sm:$0xff]
    %v1543 = vld [vmem:[#allocation4 + $0x7d0] sm:$0xff]
    %v1544 = vld [vmem:[#allocation4 + $0x7d8] sm:$0xff]
    %v1545 = vld [vmem:[#allocation4 + $0x7e0] sm:$0xff]
    %v1546 = vld [vmem:[#allocation4 + $0x7e8] sm:$0xff]
    %v1547 = vld [vmem:[#allocation4 + $0x7f0] sm:$0xff]
    %v1548 = vld [vmem:[#allocation4 + $0x7f8] sm:$0xff]
    %v1805 = vunpack.c.l.b16 %v1293
    %v1806 = vunpack.c.h.b16 %v1293
    %v1807 = vunpack.c.l.b16 %v1294
    %v1808 = vunpack.c.h.b16 %v1294
    %v1809 = vunpack.c.l.b16 %v1295
    %v1810 = vunpack.c.h.b16 %v1295
    %v1811 = vunpack.c.l.b16 %v1296
    %v1812 = vunpack.c.h.b16 %v1296
    %v1813 = vunpack.c.l.b16 %v1297
    %v1814 = vunpack.c.h.b16 %v1297
    %v1815 = vunpack.c.l.b16 %v1298
    %v1816 = vunpack.c.h.b16 %v1298
    %v1817 = vunpack.c.l.b16 %v1299
    %v1818 = vunpack.c.h.b16 %v1299
    %v1819 = vunpack.c.l.b16 %v1300
    %v1820 = vunpack.c.h.b16 %v1300
    %v1821 = vunpack.c.l.b16 %v1301
    %v1822 = vunpack.c.h.b16 %v1301
    %v1823 = vunpack.c.l.b16 %v1302
    %v1824 = vunpack.c.h.b16 %v1302
    %v1825 = vunpack.c.l.b16 %v1303
    %v1826 = vunpack.c.h.b16 %v1303
    %v1827 = vunpack.c.l.b16 %v1304
    %v1828 = vunpack.c.h.b16 %v1304
    %v1829 = vunpack.c.l.b16 %v1305
    %v1830 = vunpack.c.h.b16 %v1305
    %v1831 = vunpack.c.l.b16 %v1306
    %v1832 = vunpack.c.h.b16 %v1306
    %v1833 = vunpack.c.l.b16 %v1307
    %v1834 = vunpack.c.h.b16 %v1307
    %v1835 = vunpack.c.l.b16 %v1308
    %v1836 = vunpack.c.h.b16 %v1308
    %v1837 = vunpack.c.l.b16 %v1309
    %v1838 = vunpack.c.h.b16 %v1309
    %v1839 = vunpack.c.l.b16 %v1310
    %v1840 = vunpack.c.h.b16 %v1310
    %v1841 = vunpack.c.l.b16 %v1311
    %v1842 = vunpack.c.h.b16 %v1311
    %v1843 = vunpack.c.l.b16 %v1312
    %v1844 = vunpack.c.h.b16 %v1312
    %v1845 = vunpack.c.l.b16 %v1313
    %v1846 = vunpack.c.h.b16 %v1313
    %v1847 = vunpack.c.l.b16 %v1314
    %v1848 = vunpack.c.h.b16 %v1314
    %v1849 = vunpack.c.l.b16 %v1315
    %v1850 = vunpack.c.h.b16 %v1315
    %v1851 = vunpack.c.l.b16 %v1316
    %v1852 = vunpack.c.h.b16 %v1316
    %v1853 = vunpack.c.l.b16 %v1317
    %v1854 = vunpack.c.h.b16 %v1317
    %v1855 = vunpack.c.l.b16 %v1318
    %v1856 = vunpack.c.h.b16 %v1318
    %v1857 = vunpack.c.l.b16 %v1319
    %v1858 = vunpack.c.h.b16 %v1319
    %v1859 = vunpack.c.l.b16 %v1320
    %v1860 = vunpack.c.h.b16 %v1320
    %v1861 = vunpack.c.l.b16 %v1321
    %v1862 = vunpack.c.h.b16 %v1321
    %v1863 = vunpack.c.l.b16 %v1322
    %v1864 = vunpack.c.h.b16 %v1322
    %v1865 = vunpack.c.l.b16 %v1323
    %v1866 = vunpack.c.h.b16 %v1323
    %v1867 = vunpack.c.l.b16 %v1324
    %v1868 = vunpack.c.h.b16 %v1324
    %v1869 = vunpack.c.l.b16 %v1325
    %v1870 = vunpack.c.h.b16 %v1325
    %v1871 = vunpack.c.l.b16 %v1326
    %v1872 = vunpack.c.h.b16 %v1326
    %v1873 = vunpack.c.l.b16 %v1327
    %v1874 = vunpack.c.h.b16 %v1327
    %v1875 = vunpack.c.l.b16 %v1328
    %v1876 = vunpack.c.h.b16 %v1328
    %v1877 = vunpack.c.l.b16 %v1329
    %v1878 = vunpack.c.h.b16 %v1329
    %v1879 = vunpack.c.l.b16 %v1330
    %v1880 = vunpack.c.h.b16 %v1330
    %v1881 = vunpack.c.l.b16 %v1331
    %v1882 = vunpack.c.h.b16 %v1331
    %v1883 = vunpack.c.l.b16 %v1332
    %v1884 = vunpack.c.h.b16 %v1332
    %v1885 = vunpack.c.l.b16 %v1333
    %v1886 = vunpack.c.h.b16 %v1333
    %v1887 = vunpack.c.l.b16 %v1334
    %v1888 = vunpack.c.h.b16 %v1334
    %v1889 = vunpack.c.l.b16 %v1335
    %v1890 = vunpack.c.h.b16 %v1335
    %v1891 = vunpack.c.l.b16 %v1336
    %v1892 = vunpack.c.h.b16 %v1336
    %v1893 = vunpack.c.l.b16 %v1337
    %v1894 = vunpack.c.h.b16 %v1337
    %v1895 = vunpack.c.l.b16 %v1338
    %v1896 = vunpack.c.h.b16 %v1338
    %v1897 = vunpack.c.l.b16 %v1339
    %v1898 = vunpack.c.h.b16 %v1339
    %v1899 = vunpack.c.l.b16 %v1340
    %v1900 = vunpack.c.h.b16 %v1340
    %v1901 = vunpack.c.l.b16 %v1341
    %v1902 = vunpack.c.h.b16 %v1341
    %v1903 = vunpack.c.l.b16 %v1342
    %v1904 = vunpack.c.h.b16 %v1342
    %v1905 = vunpack.c.l.b16 %v1343
    %v1906 = vunpack.c.h.b16 %v1343
    %v1907 = vunpack.c.l.b16 %v1344
    %v1908 = vunpack.c.h.b16 %v1344
    %v1909 = vunpack.c.l.b16 %v1345
    %v1910 = vunpack.c.h.b16 %v1345
    %v1911 = vunpack.c.l.b16 %v1346
    %v1912 = vunpack.c.h.b16 %v1346
    %v1913 = vunpack.c.l.b16 %v1347
    %v1914 = vunpack.c.h.b16 %v1347
    %v1915 = vunpack.c.l.b16 %v1348
    %v1916 = vunpack.c.h.b16 %v1348
    %v1917 = vunpack.c.l.b16 %v1349
    %v1918 = vunpack.c.h.b16 %v1349
    %v1919 = vunpack.c.l.b16 %v1350
    %v1920 = vunpack.c.h.b16 %v1350
    %v1921 = vunpack.c.l.b16 %v1351
    %v1922 = vunpack.c.h.b16 %v1351
    %v1923 = vunpack.c.l.b16 %v1352
    %v1924 = vunpack.c.h.b16 %v1352
    %v1925 = vunpack.c.l.b16 %v1353
    %v1926 = vunpack.c.h.b16 %v1353
    %v1927 = vunpack.c.l.b16 %v1354
    %v1928 = vunpack.c.h.b16 %v1354
    %v1929 = vunpack.c.l.b16 %v1355
    %v1930 = vunpack.c.h.b16 %v1355
    %v1931 = vunpack.c.l.b16 %v1356
    %v1932 = vunpack.c.h.b16 %v1356
    %v1933 = vunpack.c.l.b16 %v1357
    %v1934 = vunpack.c.h.b16 %v1357
    %v1935 = vunpack.c.l.b16 %v1358
    %v1936 = vunpack.c.h.b16 %v1358
    %v1937 = vunpack.c.l.b16 %v1359
    %v1938 = vunpack.c.h.b16 %v1359
    %v1939 = vunpack.c.l.b16 %v1360
    %v1940 = vunpack.c.h.b16 %v1360
    %v1941 = vunpack.c.l.b16 %v1361
    %v1942 = vunpack.c.h.b16 %v1361
    %v1943 = vunpack.c.l.b16 %v1362
    %v1944 = vunpack.c.h.b16 %v1362
    %v1945 = vunpack.c.l.b16 %v1363
    %v1946 = vunpack.c.h.b16 %v1363
    %v1947 = vunpack.c.l.b16 %v1364
    %v1948 = vunpack.c.h.b16 %v1364
    %v1949 = vunpack.c.l.b16 %v1365
    %v1950 = vunpack.c.h.b16 %v1365
    %v1951 = vunpack.c.l.b16 %v1366
    %v1952 = vunpack.c.h.b16 %v1366
    %v1953 = vunpack.c.l.b16 %v1367
    %v1954 = vunpack.c.h.b16 %v1367
    %v1955 = vunpack.c.l.b16 %v1368
    %v1956 = vunpack.c.h.b16 %v1368
    %v1957 = vunpack.c.l.b16 %v1369
    %v1958 = vunpack.c.h.b16 %v1369
    %v1959 = vunpack.c.l.b16 %v1370
    %v1960 = vunpack.c.h.b16 %v1370
    %v1961 = vunpack.c.l.b16 %v1371
    %v1962 = vunpack.c.h.b16 %v1371
    %v1963 = vunpack.c.l.b16 %v1372
    %v1964 = vunpack.c.h.b16 %v1372
    %v1965 = vunpack.c.l.b16 %v1373
    %v1966 = vunpack.c.h.b16 %v1373
    %v1967 = vunpack.c.l.b16 %v1374
    %v1968 = vunpack.c.h.b16 %v1374
    %v1969 = vunpack.c.l.b16 %v1375
    %v1970 = vunpack.c.h.b16 %v1375
    %v1971 = vunpack.c.l.b16 %v1376
    %v1972 = vunpack.c.h.b16 %v1376
    %v1973 = vunpack.c.l.b16 %v1377
    %v1974 = vunpack.c.h.b16 %v1377
    %v1975 = vunpack.c.l.b16 %v1378
    %v1976 = vunpack.c.h.b16 %v1378
    %v1977 = vunpack.c.l.b16 %v1379
    %v1978 = vunpack.c.h.b16 %v1379
    %v1979 = vunpack.c.l.b16 %v1380
    %v1980 = vunpack.c.h.b16 %v1380
    %v1981 = vunpack.c.l.b16 %v1381
    %v1982 = vunpack.c.h.b16 %v1381
    %v1983 = vunpack.c.l.b16 %v1382
    %v1984 = vunpack.c.h.b16 %v1382
    %v1985 = vunpack.c.l.b16 %v1383
    %v1986 = vunpack.c.h.b16 %v1383
    %v1987 = vunpack.c.l.b16 %v1384
    %v1988 = vunpack.c.h.b16 %v1384
    %v1989 = vunpack.c.l.b16 %v1385
    %v1990 = vunpack.c.h.b16 %v1385
    %v1991 = vunpack.c.l.b16 %v1386
    %v1992 = vunpack.c.h.b16 %v1386
    %v1993 = vunpack.c.l.b16 %v1387
    %v1994 = vunpack.c.h.b16 %v1387
    %v1995 = vunpack.c.l.b16 %v1388
    %v1996 = vunpack.c.h.b16 %v1388
    %v1997 = vunpack.c.l.b16 %v1389
    %v1998 = vunpack.c.h.b16 %v1389
    %v1999 = vunpack.c.l.b16 %v1390
    %v2000 = vunpack.c.h.b16 %v1390
    %v2001 = vunpack.c.l.b16 %v1391
    %v2002 = vunpack.c.h.b16 %v1391
    %v2003 = vunpack.c.l.b16 %v1392
    %v2004 = vunpack.c.h.b16 %v1392
    %v2005 = vunpack.c.l.b16 %v1393
    %v2006 = vunpack.c.h.b16 %v1393
    %v2007 = vunpack.c.l.b16 %v1394
    %v2008 = vunpack.c.h.b16 %v1394
    %v2009 = vunpack.c.l.b16 %v1395
    %v2010 = vunpack.c.h.b16 %v1395
    %v2011 = vunpack.c.l.b16 %v1396
    %v2012 = vunpack.c.h.b16 %v1396
    %v2013 = vunpack.c.l.b16 %v1397
    %v2014 = vunpack.c.h.b16 %v1397
    %v2015 = vunpack.c.l.b16 %v1398
    %v2016 = vunpack.c.h.b16 %v1398
    %v2017 = vunpack.c.l.b16 %v1399
    %v2018 = vunpack.c.h.b16 %v1399
    %v2019 = vunpack.c.l.b16 %v1400
    %v2020 = vunpack.c.h.b16 %v1400
    %v2021 = vunpack.c.l.b16 %v1401
    %v2022 = vunpack.c.h.b16 %v1401
    %v2023 = vunpack.c.l.b16 %v1402
    %v2024 = vunpack.c.h.b16 %v1402
    %v2025 = vunpack.c.l.b16 %v1403
    %v2026 = vunpack.c.h.b16 %v1403
    %v2027 = vunpack.c.l.b16 %v1404
    %v2028 = vunpack.c.h.b16 %v1404
    %v2029 = vunpack.c.l.b16 %v1405
    %v2030 = vunpack.c.h.b16 %v1405
    %v2031 = vunpack.c.l.b16 %v1406
    %v2032 = vunpack.c.h.b16 %v1406
    %v2033 = vunpack.c.l.b16 %v1407
    %v2034 = vunpack.c.h.b16 %v1407
    %v2035 = vunpack.c.l.b16 %v1408
    %v2036 = vunpack.c.h.b16 %v1408
    %v2037 = vunpack.c.l.b16 %v1409
    %v2038 = vunpack.c.h.b16 %v1409
    %v2039 = vunpack.c.l.b16 %v1410
    %v2040 = vunpack.c.h.b16 %v1410
    %v2041 = vunpack.c.l.b16 %v1411
    %v2042 = vunpack.c.h.b16 %v1411
    %v2043 = vunpack.c.l.b16 %v1412
    %v2044 = vunpack.c.h.b16 %v1412
    %v2045 = vunpack.c.l.b16 %v1413
    %v2046 = vunpack.c.h.b16 %v1413
    %v2047 = vunpack.c.l.b16 %v1414
    %v2048 = vunpack.c.h.b16 %v1414
    %v2049 = vunpack.c.l.b16 %v1415
    %v2050 = vunpack.c.h.b16 %v1415
    %v2051 = vunpack.c.l.b16 %v1416
    %v2052 = vunpack.c.h.b16 %v1416
    %v2053 = vunpack.c.l.b16 %v1417
    %v2054 = vunpack.c.h.b16 %v1417
    %v2055 = vunpack.c.l.b16 %v1418
    %v2056 = vunpack.c.h.b16 %v1418
    %v2057 = vunpack.c.l.b16 %v1419
    %v2058 = vunpack.c.h.b16 %v1419
    %v2059 = vunpack.c.l.b16 %v1420
    %v2060 = vunpack.c.h.b16 %v1420
    %v2061 = vunpack.c.l.b16 %v1421
    %v2062 = vunpack.c.h.b16 %v1421
    %v2063 = vunpack.c.l.b16 %v1422
    %v2064 = vunpack.c.h.b16 %v1422
    %v2065 = vunpack.c.l.b16 %v1423
    %v2066 = vunpack.c.h.b16 %v1423
    %v2067 = vunpack.c.l.b16 %v1424
    %v2068 = vunpack.c.h.b16 %v1424
    %v2069 = vunpack.c.l.b16 %v1425
    %v2070 = vunpack.c.h.b16 %v1425
    %v2071 = vunpack.c.l.b16 %v1426
    %v2072 = vunpack.c.h.b16 %v1426
    %v2073 = vunpack.c.l.b16 %v1427
    %v2074 = vunpack.c.h.b16 %v1427
    %v2075 = vunpack.c.l.b16 %v1428
    %v2076 = vunpack.c.h.b16 %v1428
    %v2077 = vunpack.c.l.b16 %v1429
    %v2078 = vunpack.c.h.b16 %v1429
    %v2079 = vunpack.c.l.b16 %v1430
    %v2080 = vunpack.c.h.b16 %v1430
    %v2081 = vunpack.c.l.b16 %v1431
    %v2082 = vunpack.c.h.b16 %v1431
    %v2083 = vunpack.c.l.b16 %v1432
    %v2084 = vunpack.c.h.b16 %v1432
    %v2085 = vunpack.c.l.b16 %v1433
    %v2086 = vunpack.c.h.b16 %v1433
    %v2087 = vunpack.c.l.b16 %v1434
    %v2088 = vunpack.c.h.b16 %v1434
    %v2089 = vunpack.c.l.b16 %v1435
    %v2090 = vunpack.c.h.b16 %v1435
    %v2091 = vunpack.c.l.b16 %v1436
    %v2092 = vunpack.c.h.b16 %v1436
    %v2093 = vunpack.c.l.b16 %v1437
    %v2094 = vunpack.c.h.b16 %v1437
    %v2095 = vunpack.c.l.b16 %v1438
    %v2096 = vunpack.c.h.b16 %v1438
    %v2097 = vunpack.c.l.b16 %v1439
    %v2098 = vunpack.c.h.b16 %v1439
    %v2099 = vunpack.c.l.b16 %v1440
    %v2100 = vunpack.c.h.b16 %v1440
    %v2101 = vunpack.c.l.b16 %v1441
    %v2102 = vunpack.c.h.b16 %v1441
    %v2103 = vunpack.c.l.b16 %v1442
    %v2104 = vunpack.c.h.b16 %v1442
    %v2105 = vunpack.c.l.b16 %v1443
    %v2106 = vunpack.c.h.b16 %v1443
    %v2107 = vunpack.c.l.b16 %v1444
    %v2108 = vunpack.c.h.b16 %v1444
    %v2109 = vunpack.c.l.b16 %v1445
    %v2110 = vunpack.c.h.b16 %v1445
    %v2111 = vunpack.c.l.b16 %v1446
    %v2112 = vunpack.c.h.b16 %v1446
    %v2113 = vunpack.c.l.b16 %v1447
    %v2114 = vunpack.c.h.b16 %v1447
    %v2115 = vunpack.c.l.b16 %v1448
    %v2116 = vunpack.c.h.b16 %v1448
    %v2117 = vunpack.c.l.b16 %v1449
    %v2118 = vunpack.c.h.b16 %v1449
    %v2119 = vunpack.c.l.b16 %v1450
    %v2120 = vunpack.c.h.b16 %v1450
    %v2121 = vunpack.c.l.b16 %v1451
    %v2122 = vunpack.c.h.b16 %v1451
    %v2123 = vunpack.c.l.b16 %v1452
    %v2124 = vunpack.c.h.b16 %v1452
    %v2125 = vunpack.c.l.b16 %v1453
    %v2126 = vunpack.c.h.b16 %v1453
    %v2127 = vunpack.c.l.b16 %v1454
    %v2128 = vunpack.c.h.b16 %v1454
    %v2129 = vunpack.c.l.b16 %v1455
    %v2130 = vunpack.c.h.b16 %v1455
    %v2131 = vunpack.c.l.b16 %v1456
    %v2132 = vunpack.c.h.b16 %v1456
    %v2133 = vunpack.c.l.b16 %v1457
    %v2134 = vunpack.c.h.b16 %v1457
    %v2135 = vunpack.c.l.b16 %v1458
    %v2136 = vunpack.c.h.b16 %v1458
    %v2137 = vunpack.c.l.b16 %v1459
    %v2138 = vunpack.c.h.b16 %v1459
    %v2139 = vunpack.c.l.b16 %v1460
    %v2140 = vunpack.c.h.b16 %v1460
    %v2141 = vunpack.c.l.b16 %v1461
    %v2142 = vunpack.c.h.b16 %v1461
    %v2143 = vunpack.c.l.b16 %v1462
    %v2144 = vunpack.c.h.b16 %v1462
    %v2145 = vunpack.c.l.b16 %v1463
    %v2146 = vunpack.c.h.b16 %v1463
    %v2147 = vunpack.c.l.b16 %v1464
    %v2148 = vunpack.c.h.b16 %v1464
    %v2149 = vunpack.c.l.b16 %v1465
    %v2150 = vunpack.c.h.b16 %v1465
    %v2151 = vunpack.c.l.b16 %v1466
    %v2152 = vunpack.c.h.b16 %v1466
    %v2153 = vunpack.c.l.b16 %v1467
    %v2154 = vunpack.c.h.b16 %v1467
    %v2155 = vunpack.c.l.b16 %v1468
    %v2156 = vunpack.c.h.b16 %v1468
    %v2157 = vunpack.c.l.b16 %v1469
    %v2158 = vunpack.c.h.b16 %v1469
    %v2159 = vunpack.c.l.b16 %v1470
    %v2160 = vunpack.c.h.b16 %v1470
    %v2161 = vunpack.c.l.b16 %v1471
    %v2162 = vunpack.c.h.b16 %v1471
    %v2163 = vunpack.c.l.b16 %v1472
    %v2164 = vunpack.c.h.b16 %v1472
    %v2165 = vunpack.c.l.b16 %v1473
    %v2166 = vunpack.c.h.b16 %v1473
    %v2167 = vunpack.c.l.b16 %v1474
    %v2168 = vunpack.c.h.b16 %v1474
    %v2169 = vunpack.c.l.b16 %v1475
    %v2170 = vunpack.c.h.b16 %v1475
    %v2171 = vunpack.c.l.b16 %v1476
    %v2172 = vunpack.c.h.b16 %v1476
    %v2173 = vunpack.c.l.b16 %v1477
    %v2174 = vunpack.c.h.b16 %v1477
    %v2175 = vunpack.c.l.b16 %v1478
    %v2176 = vunpack.c.h.b16 %v1478
    %v2177 = vunpack.c.l.b16 %v1479
    %v2178 = vunpack.c.h.b16 %v1479
    %v2179 = vunpack.c.l.b16 %v1480
    %v2180 = vunpack.c.h.b16 %v1480
    %v2181 = vunpack.c.l.b16 %v1481
    %v2182 = vunpack.c.h.b16 %v1481
    %v2183 = vunpack.c.l.b16 %v1482
    %v2184 = vunpack.c.h.b16 %v1482
    %v2185 = vunpack.c.l.b16 %v1483
    %v2186 = vunpack.c.h.b16 %v1483
    %v2187 = vunpack.c.l.b16 %v1484
    %v2188 = vunpack.c.h.b16 %v1484
    %v2189 = vunpack.c.l.b16 %v1485
    %v2190 = vunpack.c.h.b16 %v1485
    %v2191 = vunpack.c.l.b16 %v1486
    %v2192 = vunpack.c.h.b16 %v1486
    %v2193 = vunpack.c.l.b16 %v1487
    %v2194 = vunpack.c.h.b16 %v1487
    %v2195 = vunpack.c.l.b16 %v1488
    %v2196 = vunpack.c.h.b16 %v1488
    %v2197 = vunpack.c.l.b16 %v1489
    %v2198 = vunpack.c.h.b16 %v1489
    %v2199 = vunpack.c.l.b16 %v1490
    %v2200 = vunpack.c.h.b16 %v1490
    %v2201 = vunpack.c.l.b16 %v1491
    %v2202 = vunpack.c.h.b16 %v1491
    %v2203 = vunpack.c.l.b16 %v1492
    %v2204 = vunpack.c.h.b16 %v1492
    %v2205 = vunpack.c.l.b16 %v1493
    %v2206 = vunpack.c.h.b16 %v1493
    %v2207 = vunpack.c.l.b16 %v1494
    %v2208 = vunpack.c.h.b16 %v1494
    %v2209 = vunpack.c.l.b16 %v1495
    %v2210 = vunpack.c.h.b16 %v1495
    %v2211 = vunpack.c.l.b16 %v1496
    %v2212 = vunpack.c.h.b16 %v1496
    %v2213 = vunpack.c.l.b16 %v1497
    %v2214 = vunpack.c.h.b16 %v1497
    %v2215 = vunpack.c.l.b16 %v1498
    %v2216 = vunpack.c.h.b16 %v1498
    %v2217 = vunpack.c.l.b16 %v1499
    %v2218 = vunpack.c.h.b16 %v1499
    %v2219 = vunpack.c.l.b16 %v1500
    %v2220 = vunpack.c.h.b16 %v1500
    %v2221 = vunpack.c.l.b16 %v1501
    %v2222 = vunpack.c.h.b16 %v1501
    %v2223 = vunpack.c.l.b16 %v1502
    %v2224 = vunpack.c.h.b16 %v1502
    %v2225 = vunpack.c.l.b16 %v1503
    %v2226 = vunpack.c.h.b16 %v1503
    %v2227 = vunpack.c.l.b16 %v1504
    %v2228 = vunpack.c.h.b16 %v1504
    %v2229 = vunpack.c.l.b16 %v1505
    %v2230 = vunpack.c.h.b16 %v1505
    %v2231 = vunpack.c.l.b16 %v1506
    %v2232 = vunpack.c.h.b16 %v1506
    %v2233 = vunpack.c.l.b16 %v1507
    %v2234 = vunpack.c.h.b16 %v1507
    %v2235 = vunpack.c.l.b16 %v1508
    %v2236 = vunpack.c.h.b16 %v1508
    %v2237 = vunpack.c.l.b16 %v1509
    %v2238 = vunpack.c.h.b16 %v1509
    %v2239 = vunpack.c.l.b16 %v1510
    %v2240 = vunpack.c.h.b16 %v1510
    %v2241 = vunpack.c.l.b16 %v1511
    %v2242 = vunpack.c.h.b16 %v1511
    %v2243 = vunpack.c.l.b16 %v1512
    %v2244 = vunpack.c.h.b16 %v1512
    %v2245 = vunpack.c.l.b16 %v1513
    %v2246 = vunpack.c.h.b16 %v1513
    %v2247 = vunpack.c.l.b16 %v1514
    %v2248 = vunpack.c.h.b16 %v1514
    %v2249 = vunpack.c.l.b16 %v1515
    %v2250 = vunpack.c.h.b16 %v1515
    %v2251 = vunpack.c.l.b16 %v1516
    %v2252 = vunpack.c.h.b16 %v1516
    %v2253 = vunpack.c.l.b16 %v1517
    %v2254 = vunpack.c.h.b16 %v1517
    %v2255 = vunpack.c.l.b16 %v1518
    %v2256 = vunpack.c.h.b16 %v1518
    %v2257 = vunpack.c.l.b16 %v1519
    %v2258 = vunpack.c.h.b16 %v1519
    %v2259 = vunpack.c.l.b16 %v1520
    %v2260 = vunpack.c.h.b16 %v1520
    %v2261 = vunpack.c.l.b16 %v1521
    %v2262 = vunpack.c.h.b16 %v1521
    %v2263 = vunpack.c.l.b16 %v1522
    %v2264 = vunpack.c.h.b16 %v1522
    %v2265 = vunpack.c.l.b16 %v1523
    %v2266 = vunpack.c.h.b16 %v1523
    %v2267 = vunpack.c.l.b16 %v1524
    %v2268 = vunpack.c.h.b16 %v1524
    %v2269 = vunpack.c.l.b16 %v1525
    %v2270 = vunpack.c.h.b16 %v1525
    %v2271 = vunpack.c.l.b16 %v1526
    %v2272 = vunpack.c.h.b16 %v1526
    %v2273 = vunpack.c.l.b16 %v1527
    %v2274 = vunpack.c.h.b16 %v1527
    %v2275 = vunpack.c.l.b16 %v1528
    %v2276 = vunpack.c.h.b16 %v1528
    %v2277 = vunpack.c.l.b16 %v1529
    %v2278 = vunpack.c.h.b16 %v1529
    %v2279 = vunpack.c.l.b16 %v1530
    %v2280 = vunpack.c.h.b16 %v1530
    %v2281 = vunpack.c.l.b16 %v1531
    %v2282 = vunpack.c.h.b16 %v1531
    %v2283 = vunpack.c.l.b16 %v1532
    %v2284 = vunpack.c.h.b16 %v1532
    %v2285 = vunpack.c.l.b16 %v1533
    %v2286 = vunpack.c.h.b16 %v1533
    %v2287 = vunpack.c.l.b16 %v1534
    %v2288 = vunpack.c.h.b16 %v1534
    %v2289 = vunpack.c.l.b16 %v1535
    %v2290 = vunpack.c.h.b16 %v1535
    %v2291 = vunpack.c.l.b16 %v1536
    %v2292 = vunpack.c.h.b16 %v1536
    %v2293 = vunpack.c.l.b16 %v1537
    %v2294 = vunpack.c.h.b16 %v1537
    %v2295 = vunpack.c.l.b16 %v1538
    %v2296 = vunpack.c.h.b16 %v1538
    %v2297 = vunpack.c.l.b16 %v1539
    %v2298 = vunpack.c.h.b16 %v1539
    %v2299 = vunpack.c.l.b16 %v1540
    %v2300 = vunpack.c.h.b16 %v1540
    %v2301 = vunpack.c.l.b16 %v1541
    %v2302 = vunpack.c.h.b16 %v1541
    %v2303 = vunpack.c.l.b16 %v1542
    %v2304 = vunpack.c.h.b16 %v1542
    %v2305 = vunpack.c.l.b16 %v1543
    %v2306 = vunpack.c.h.b16 %v1543
    %v2307 = vunpack.c.l.b16 %v1544
    %v2308 = vunpack.c.h.b16 %v1544
    %v2309 = vunpack.c.l.b16 %v1545
    %v2310 = vunpack.c.h.b16 %v1545
    %v2311 = vunpack.c.l.b16 %v1546
    %v2312 = vunpack.c.h.b16 %v1546
    %v2313 = vunpack.c.l.b16 %v1547
    %v2314 = vunpack.c.h.b16 %v1547
    %v2315 = vunpack.c.l.b16 %v1548
    %v2316 = vunpack.c.h.b16 %v1548
    %v2317 = vpack.c.b16 %v1813, %v1805
    %v2318 = vpack.c.b16 %v1814, %v1806
    %v2319 = vpack.c.b16 %v1815, %v1807
    %v2320 = vpack.c.b16 %v1816, %v1808
    %v2321 = vpack.c.b16 %v1817, %v1809
    %v2322 = vpack.c.b16 %v1818, %v1810
    %v2323 = vpack.c.b16 %v1819, %v1811
    %v2324 = vpack.c.b16 %v1820, %v1812
    %v2325 = vpack.c.b16 %v1829, %v1821
    %v2326 = vpack.c.b16 %v1830, %v1822
    %v2327 = vpack.c.b16 %v1831, %v1823
    %v2328 = vpack.c.b16 %v1832, %v1824
    %v2329 = vpack.c.b16 %v1833, %v1825
    %v2330 = vpack.c.b16 %v1834, %v1826
    %v2331 = vpack.c.b16 %v1835, %v1827
    %v2332 = vpack.c.b16 %v1836, %v1828
    %v2333 = vpack.c.b16 %v1845, %v1837
    %v2334 = vpack.c.b16 %v1846, %v1838
    %v2335 = vpack.c.b16 %v1847, %v1839
    %v2336 = vpack.c.b16 %v1848, %v1840
    %v2337 = vpack.c.b16 %v1849, %v1841
    %v2338 = vpack.c.b16 %v1850, %v1842
    %v2339 = vpack.c.b16 %v1851, %v1843
    %v2340 = vpack.c.b16 %v1852, %v1844
    %v2341 = vpack.c.b16 %v1861, %v1853
    %v2342 = vpack.c.b16 %v1862, %v1854
    %v2343 = vpack.c.b16 %v1863, %v1855
    %v2344 = vpack.c.b16 %v1864, %v1856
    %v2345 = vpack.c.b16 %v1865, %v1857
    %v2346 = vpack.c.b16 %v1866, %v1858
    %v2347 = vpack.c.b16 %v1867, %v1859
    %v2348 = vpack.c.b16 %v1868, %v1860
    %v2349 = vpack.c.b16 %v1877, %v1869
    %v2350 = vpack.c.b16 %v1878, %v1870
    %v2351 = vpack.c.b16 %v1879, %v1871
    %v2352 = vpack.c.b16 %v1880, %v1872
    %v2353 = vpack.c.b16 %v1881, %v1873
    %v2354 = vpack.c.b16 %v1882, %v1874
    %v2355 = vpack.c.b16 %v1883, %v1875
    %v2356 = vpack.c.b16 %v1884, %v1876
    %v2357 = vpack.c.b16 %v1893, %v1885
    %v2358 = vpack.c.b16 %v1894, %v1886
    %v2359 = vpack.c.b16 %v1895, %v1887
    %v2360 = vpack.c.b16 %v1896, %v1888
    %v2361 = vpack.c.b16 %v1897, %v1889
    %v2362 = vpack.c.b16 %v1898, %v1890
    %v2363 = vpack.c.b16 %v1899, %v1891
    %v2364 = vpack.c.b16 %v1900, %v1892
    %v2365 = vpack.c.b16 %v1909, %v1901
    %v2366 = vpack.c.b16 %v1910, %v1902
    %v2367 = vpack.c.b16 %v1911, %v1903
    %v2368 = vpack.c.b16 %v1912, %v1904
    %v2369 = vpack.c.b16 %v1913, %v1905
    %v2370 = vpack.c.b16 %v1914, %v1906
    %v2371 = vpack.c.b16 %v1915, %v1907
    %v2372 = vpack.c.b16 %v1916, %v1908
    %v2373 = vpack.c.b16 %v1925, %v1917
    %v2374 = vpack.c.b16 %v1926, %v1918
    %v2375 = vpack.c.b16 %v1927, %v1919
    %v2376 = vpack.c.b16 %v1928, %v1920
    %v2377 = vpack.c.b16 %v1929, %v1921
    %v2378 = vpack.c.b16 %v1930, %v1922
    %v2379 = vpack.c.b16 %v1931, %v1923
    %v2380 = vpack.c.b16 %v1932, %v1924
    %v2381 = vpack.c.b16 %v1941, %v1933
    %v2382 = vpack.c.b16 %v1942, %v1934
    %v2383 = vpack.c.b16 %v1943, %v1935
    %v2384 = vpack.c.b16 %v1944, %v1936
    %v2385 = vpack.c.b16 %v1945, %v1937
    %v2386 = vpack.c.b16 %v1946, %v1938
    %v2387 = vpack.c.b16 %v1947, %v1939
    %v2388 = vpack.c.b16 %v1948, %v1940
    %v2389 = vpack.c.b16 %v1957, %v1949
    %v2390 = vpack.c.b16 %v1958, %v1950
    %v2391 = vpack.c.b16 %v1959, %v1951
    %v2392 = vpack.c.b16 %v1960, %v1952
    %v2393 = vpack.c.b16 %v1961, %v1953
    %v2394 = vpack.c.b16 %v1962, %v1954
    %v2395 = vpack.c.b16 %v1963, %v1955
    %v2396 = vpack.c.b16 %v1964, %v1956
    %v2397 = vpack.c.b16 %v1973, %v1965
    %v2398 = vpack.c.b16 %v1974, %v1966
    %v2399 = vpack.c.b16 %v1975, %v1967
    %v2400 = vpack.c.b16 %v1976, %v1968
    %v2401 = vpack.c.b16 %v1977, %v1969
    %v2402 = vpack.c.b16 %v1978, %v1970
    %v2403 = vpack.c.b16 %v1979, %v1971
    %v2404 = vpack.c.b16 %v1980, %v1972
    %v2405 = vpack.c.b16 %v1989, %v1981
    %v2406 = vpack.c.b16 %v1990, %v1982
    %v2407 = vpack.c.b16 %v1991, %v1983
    %v2408 = vpack.c.b16 %v1992, %v1984
    %v2409 = vpack.c.b16 %v1993, %v1985
    %v2410 = vpack.c.b16 %v1994, %v1986
    %v2411 = vpack.c.b16 %v1995, %v1987
    %v2412 = vpack.c.b16 %v1996, %v1988
    %v2413 = vpack.c.b16 %v2005, %v1997
    %v2414 = vpack.c.b16 %v2006, %v1998
    %v2415 = vpack.c.b16 %v2007, %v1999
    %v2416 = vpack.c.b16 %v2008, %v2000
    %v2417 = vpack.c.b16 %v2009, %v2001
    %v2418 = vpack.c.b16 %v2010, %v2002
    %v2419 = vpack.c.b16 %v2011, %v2003
    %v2420 = vpack.c.b16 %v2012, %v2004
    %v2421 = vpack.c.b16 %v2021, %v2013
    %v2422 = vpack.c.b16 %v2022, %v2014
    %v2423 = vpack.c.b16 %v2023, %v2015
    %v2424 = vpack.c.b16 %v2024, %v2016
    %v2425 = vpack.c.b16 %v2025, %v2017
    %v2426 = vpack.c.b16 %v2026, %v2018
    %v2427 = vpack.c.b16 %v2027, %v2019
    %v2428 = vpack.c.b16 %v2028, %v2020
    %v2429 = vpack.c.b16 %v2037, %v2029
    %v2430 = vpack.c.b16 %v2038, %v2030
    %v2431 = vpack.c.b16 %v2039, %v2031
    %v2432 = vpack.c.b16 %v2040, %v2032
    %v2433 = vpack.c.b16 %v2041, %v2033
    %v2434 = vpack.c.b16 %v2042, %v2034
    %v2435 = vpack.c.b16 %v2043, %v2035
    %v2436 = vpack.c.b16 %v2044, %v2036
    %v2437 = vpack.c.b16 %v2053, %v2045
    %v2438 = vpack.c.b16 %v2054, %v2046
    %v2439 = vpack.c.b16 %v2055, %v2047
    %v2440 = vpack.c.b16 %v2056, %v2048
    %v2441 = vpack.c.b16 %v2057, %v2049
    %v2442 = vpack.c.b16 %v2058, %v2050
    %v2443 = vpack.c.b16 %v2059, %v2051
    %v2444 = vpack.c.b16 %v2060, %v2052
    %v2445 = vpack.c.b16 %v2069, %v2061
    %v2446 = vpack.c.b16 %v2070, %v2062
    %v2447 = vpack.c.b16 %v2071, %v2063
    %v2448 = vpack.c.b16 %v2072, %v2064
    %v2449 = vpack.c.b16 %v2073, %v2065
    %v2450 = vpack.c.b16 %v2074, %v2066
    %v2451 = vpack.c.b16 %v2075, %v2067
    %v2452 = vpack.c.b16 %v2076, %v2068
    %v2453 = vpack.c.b16 %v2085, %v2077
    %v2454 = vpack.c.b16 %v2086, %v2078
    %v2455 = vpack.c.b16 %v2087, %v2079
    %v2456 = vpack.c.b16 %v2088, %v2080
    %v2457 = vpack.c.b16 %v2089, %v2081
    %v2458 = vpack.c.b16 %v2090, %v2082
    %v2459 = vpack.c.b16 %v2091, %v2083
    %v2460 = vpack.c.b16 %v2092, %v2084
    %v2461 = vpack.c.b16 %v2101, %v2093
    %v2462 = vpack.c.b16 %v2102, %v2094
    %v2463 = vpack.c.b16 %v2103, %v2095
    %v2464 = vpack.c.b16 %v2104, %v2096
    %v2465 = vpack.c.b16 %v2105, %v2097
    %v2466 = vpack.c.b16 %v2106, %v2098
    %v2467 = vpack.c.b16 %v2107, %v2099
    %v2468 = vpack.c.b16 %v2108, %v2100
    %v2469 = vpack.c.b16 %v2117, %v2109
    %v2470 = vpack.c.b16 %v2118, %v2110
    %v2471 = vpack.c.b16 %v2119, %v2111
    %v2472 = vpack.c.b16 %v2120, %v2112
    %v2473 = vpack.c.b16 %v2121, %v2113
    %v2474 = vpack.c.b16 %v2122, %v2114
    %v2475 = vpack.c.b16 %v2123, %v2115
    %v2476 = vpack.c.b16 %v2124, %v2116
    %v2477 = vpack.c.b16 %v2133, %v2125
    %v2478 = vpack.c.b16 %v2134, %v2126
    %v2479 = vpack.c.b16 %v2135, %v2127
    %v2480 = vpack.c.b16 %v2136, %v2128
    %v2481 = vpack.c.b16 %v2137, %v2129
    %v2482 = vpack.c.b16 %v2138, %v2130
    %v2483 = vpack.c.b16 %v2139, %v2131
    %v2484 = vpack.c.b16 %v2140, %v2132
    %v2485 = vpack.c.b16 %v2149, %v2141
    %v2486 = vpack.c.b16 %v2150, %v2142
    %v2487 = vpack.c.b16 %v2151, %v2143
    %v2488 = vpack.c.b16 %v2152, %v2144
    %v2489 = vpack.c.b16 %v2153, %v2145
    %v2490 = vpack.c.b16 %v2154, %v2146
    %v2491 = vpack.c.b16 %v2155, %v2147
    %v2492 = vpack.c.b16 %v2156, %v2148
    %v2493 = vpack.c.b16 %v2165, %v2157
    %v2494 = vpack.c.b16 %v2166, %v2158
    %v2495 = vpack.c.b16 %v2167, %v2159
    %v2496 = vpack.c.b16 %v2168, %v2160
    %v2497 = vpack.c.b16 %v2169, %v2161
    %v2498 = vpack.c.b16 %v2170, %v2162
    %v2499 = vpack.c.b16 %v2171, %v2163
    %v2500 = vpack.c.b16 %v2172, %v2164
    %v2501 = vpack.c.b16 %v2181, %v2173
    %v2502 = vpack.c.b16 %v2182, %v2174
    %v2503 = vpack.c.b16 %v2183, %v2175
    %v2504 = vpack.c.b16 %v2184, %v2176
    %v2505 = vpack.c.b16 %v2185, %v2177
    %v2506 = vpack.c.b16 %v2186, %v2178
    %v2507 = vpack.c.b16 %v2187, %v2179
    %v2508 = vpack.c.b16 %v2188, %v2180
    %v2509 = vpack.c.b16 %v2197, %v2189
    %v2510 = vpack.c.b16 %v2198, %v2190
    %v2511 = vpack.c.b16 %v2199, %v2191
    %v2512 = vpack.c.b16 %v2200, %v2192
    %v2513 = vpack.c.b16 %v2201, %v2193
    %v2514 = vpack.c.b16 %v2202, %v2194
    %v2515 = vpack.c.b16 %v2203, %v2195
    %v2516 = vpack.c.b16 %v2204, %v2196
    %v2517 = vpack.c.b16 %v2213, %v2205
    %v2518 = vpack.c.b16 %v2214, %v2206
    %v2519 = vpack.c.b16 %v2215, %v2207
    %v2520 = vpack.c.b16 %v2216, %v2208
    %v2521 = vpack.c.b16 %v2217, %v2209
    %v2522 = vpack.c.b16 %v2218, %v2210
    %v2523 = vpack.c.b16 %v2219, %v2211
    %v2524 = vpack.c.b16 %v2220, %v2212
    %v2525 = vpack.c.b16 %v2229, %v2221
    %v2526 = vpack.c.b16 %v2230, %v2222
    %v2527 = vpack.c.b16 %v2231, %v2223
    %v2528 = vpack.c.b16 %v2232, %v2224
    %v2529 = vpack.c.b16 %v2233, %v2225
    %v2530 = vpack.c.b16 %v2234, %v2226
    %v2531 = vpack.c.b16 %v2235, %v2227
    %v2532 = vpack.c.b16 %v2236, %v2228
    %v2533 = vpack.c.b16 %v2245, %v2237
    %v2534 = vpack.c.b16 %v2246, %v2238
    %v2535 = vpack.c.b16 %v2247, %v2239
    %v2536 = vpack.c.b16 %v2248, %v2240
    %v2537 = vpack.c.b16 %v2249, %v2241
    %v2538 = vpack.c.b16 %v2250, %v2242
    %v2539 = vpack.c.b16 %v2251, %v2243
    %v2540 = vpack.c.b16 %v2252, %v2244
    %v2541 = vpack.c.b16 %v2261, %v2253
    %v2542 = vpack.c.b16 %v2262, %v2254
    %v2543 = vpack.c.b16 %v2263, %v2255
    %v2544 = vpack.c.b16 %v2264, %v2256
    %v2545 = vpack.c.b16 %v2265, %v2257
    %v2546 = vpack.c.b16 %v2266, %v2258
    %v2547 = vpack.c.b16 %v2267, %v2259
    %v2548 = vpack.c.b16 %v2268, %v2260
    %v2549 = vpack.c.b16 %v2277, %v2269
    %v2550 = vpack.c.b16 %v2278, %v2270
    %v2551 = vpack.c.b16 %v2279, %v2271
    %v2552 = vpack.c.b16 %v2280, %v2272
    %v2553 = vpack.c.b16 %v2281, %v2273
    %v2554 = vpack.c.b16 %v2282, %v2274
    %v2555 = vpack.c.b16 %v2283, %v2275
    %v2556 = vpack.c.b16 %v2284, %v2276
    %v2557 = vpack.c.b16 %v2293, %v2285
    %v2558 = vpack.c.b16 %v2294, %v2286
    %v2559 = vpack.c.b16 %v2295, %v2287
    %v2560 = vpack.c.b16 %v2296, %v2288
    %v2561 = vpack.c.b16 %v2297, %v2289
    %v2562 = vpack.c.b16 %v2298, %v2290
    %v2563 = vpack.c.b16 %v2299, %v2291
    %v2564 = vpack.c.b16 %v2300, %v2292
    %v2565 = vpack.c.b16 %v2309, %v2301
    %v2566 = vpack.c.b16 %v2310, %v2302
    %v2567 = vpack.c.b16 %v2311, %v2303
    %v2568 = vpack.c.b16 %v2312, %v2304
    %v2569 = vpack.c.b16 %v2313, %v2305
    %v2570 = vpack.c.b16 %v2314, %v2306
    %v2571 = vpack.c.b16 %v2315, %v2307
    %v2572 = vpack.c.b16 %v2316, %v2308
    %2829 = vmatpush.bf16.msra.mxu0 %v2373
    %2830 = vmatpush.bf16.msra.mxu0 %v2365
    %2831 = vmatpush.bf16.msra.mxu0 %v2357
    %2832 = vmatpush.bf16.msra.mxu0 %v2349
    %2833 = vmatpush.bf16.msra.mxu0 %v2341
    %2834 = vmatpush.bf16.msra.mxu0 %v2333
    %2835 = vmatpush.bf16.msra.mxu0 %v2325
    %2836 = vmatpush.bf16.msra.mxu0 %v2317
    %2837 = vmatmul.bf16.gmra.mxu0 %v1289
    %v2838 = vpop.f32.mrf.mxu0
    %v2839 = vadd.f32 0.0, %v2838
    %v2840 = vpop.f32.mrf.mxu0
    %2841 = vdwg.mxu0
    %2842 = vmatpush.bf16.msra.mxu0 %v2437
    %2843 = vmatpush.bf16.msra.mxu0 %v2429
    %2844 = vmatpush.bf16.msra.mxu0 %v2421
    %2845 = vmatpush.bf16.msra.mxu0 %v2413
    %2846 = vmatpush.bf16.msra.mxu0 %v2405
    %2847 = vmatpush.bf16.msra.mxu0 %v2397
    %2848 = vmatpush.bf16.msra.mxu0 %v2389
    %2849 = vmatpush.bf16.msra.mxu0 %v2381
    %2850 = vmatmul.bf16.gmra.mxu0 %v1290
    %v2851 = vpop.f32.mrf.mxu0
    %v2852 = vadd.f32 %v2839, %v2851
    %v2853 = vpop.f32.mrf.mxu0
    %2854 = vdwg.mxu0
    %2855 = vmatpush.bf16.msra.mxu0 %v2501
    %2856 = vmatpush.bf16.msra.mxu0 %v2493
    %2857 = vmatpush.bf16.msra.mxu0 %v2485
    %2858 = vmatpush.bf16.msra.mxu0 %v2477
    %2859 = vmatpush.bf16.msra.mxu0 %v2469
    %2860 = vmatpush.bf16.msra.mxu0 %v2461
    %2861 = vmatpush.bf16.msra.mxu0 %v2453
    %2862 = vmatpush.bf16.msra.mxu0 %v2445
    %2863 = vmatmul.bf16.gmra.mxu0 %v1291
    %v2864 = vpop.f32.mrf.mxu0
    %v2865 = vadd.f32 %v2852, %v2864
    %v2866 = vpop.f32.mrf.mxu0
    %2867 = vdwg.mxu0
    %2868 = vmatpush.bf16.msra.mxu0 %v2565
    %2869 = vmatpush.bf16.msra.mxu0 %v2557
    %2870 = vmatpush.bf16.msra.mxu0 %v2549
    %2871 = vmatpush.bf16.msra.mxu0 %v2541
    %2872 = vmatpush.bf16.msra.mxu0 %v2533
    %2873 = vmatpush.bf16.msra.mxu0 %v2525
    %2874 = vmatpush.bf16.msra.mxu0 %v2517
    %2875 = vmatpush.bf16.msra.mxu0 %v2509
    %2876 = vmatmul.bf16.gmra.mxu0 %v1292
    %v2877 = vpop.f32.mrf.mxu0
    %v2878 = vadd.f32 %v2865, %v2877
    %v2879 = vpop.f32.mrf.mxu0
    %2880 = vdwg.mxu0
    %2881 = vmatpush.bf16.msra.mxu0 %v2374
    %2882 = vmatpush.bf16.msra.mxu0 %v2366
    %2883 = vmatpush.bf16.msra.mxu0 %v2358
    %2884 = vmatpush.bf16.msra.mxu0 %v2350
    %2885 = vmatpush.bf16.msra.mxu0 %v2342
    %2886 = vmatpush.bf16.msra.mxu0 %v2334
    %2887 = vmatpush.bf16.msra.mxu0 %v2326
    %2888 = vmatpush.bf16.msra.mxu0 %v2318
    %2889 = vmatmul.bf16.gmra.mxu0 %v1289
    %v2890 = vpop.f32.mrf.mxu0
    %v2891 = vadd.f32 0.0, %v2890
    %v2892 = vpop.f32.mrf.mxu0
    %2893 = vdwg.mxu0
    %2894 = vmatpush.bf16.msra.mxu0 %v2438
    %2895 = vmatpush.bf16.msra.mxu0 %v2430
    %2896 = vmatpush.bf16.msra.mxu0 %v2422
    %2897 = vmatpush.bf16.msra.mxu0 %v2414
    %2898 = vmatpush.bf16.msra.mxu0 %v2406
    %2899 = vmatpush.bf16.msra.mxu0 %v2398
    %2900 = vmatpush.bf16.msra.mxu0 %v2390
    %2901 = vmatpush.bf16.msra.mxu0 %v2382
    %2902 = vmatmul.bf16.gmra.mxu0 %v1290
    %v2903 = vpop.f32.mrf.mxu0
    %v2904 = vadd.f32 %v2891, %v2903
    %v2905 = vpop.f32.mrf.mxu0
    %2906 = vdwg.mxu0
    %2907 = vmatpush.bf16.msra.mxu0 %v2502
    %2908 = vmatpush.bf16.msra.mxu0 %v2494
    %2909 = vmatpush.bf16.msra.mxu0 %v2486
    %2910 = vmatpush.bf16.msra.mxu0 %v2478
    %2911 = vmatpush.bf16.msra.mxu0 %v2470
    %2912 = vmatpush.bf16.msra.mxu0 %v2462
    %2913 = vmatpush.bf16.msra.mxu0 %v2454
    %2914 = vmatpush.bf16.msra.mxu0 %v2446
    %2915 = vmatmul.bf16.gmra.mxu0 %v1291
    %v2916 = vpop.f32.mrf.mxu0
    %v2917 = vadd.f32 %v2904, %v2916
    %v2918 = vpop.f32.mrf.mxu0
    %2919 = vdwg.mxu0
    %2920 = vmatpush.bf16.msra.mxu0 %v2566
    %2921 = vmatpush.bf16.msra.mxu0 %v2558
    %2922 = vmatpush.bf16.msra.mxu0 %v2550
    %2923 = vmatpush.bf16.msra.mxu0 %v2542
    %2924 = vmatpush.bf16.msra.mxu0 %v2534
    %2925 = vmatpush.bf16.msra.mxu0 %v2526
    %2926 = vmatpush.bf16.msra.mxu0 %v2518
    %2927 = vmatpush.bf16.msra.mxu0 %v2510
    %2928 = vmatmul.bf16.gmra.mxu0 %v1292
    %v2929 = vpop.f32.mrf.mxu0
    %v2930 = vadd.f32 %v2917, %v2929
    %v2931 = vpop.f32.mrf.mxu0
    %2932 = vdwg.mxu0
    %2933 = vmatpush.bf16.msra.mxu0 %v2375
    %2934 = vmatpush.bf16.msra.mxu0 %v2367
    %2935 = vmatpush.bf16.msra.mxu0 %v2359
    %2936 = vmatpush.bf16.msra.mxu0 %v2351
    %2937 = vmatpush.bf16.msra.mxu0 %v2343
    %2938 = vmatpush.bf16.msra.mxu0 %v2335
    %2939 = vmatpush.bf16.msra.mxu0 %v2327
    %2940 = vmatpush.bf16.msra.mxu0 %v2319
    %2941 = vmatmul.bf16.gmra.mxu0 %v1289
    %v2942 = vpop.f32.mrf.mxu0
    %v2943 = vadd.f32 0.0, %v2942
    %v2944 = vpop.f32.mrf.mxu0
    %2945 = vdwg.mxu0
    %2946 = vmatpush.bf16.msra.mxu0 %v2439
    %2947 = vmatpush.bf16.msra.mxu0 %v2431
    %2948 = vmatpush.bf16.msra.mxu0 %v2423
    %2949 = vmatpush.bf16.msra.mxu0 %v2415
    %2950 = vmatpush.bf16.msra.mxu0 %v2407
    %2951 = vmatpush.bf16.msra.mxu0 %v2399
    %2952 = vmatpush.bf16.msra.mxu0 %v2391
    %2953 = vmatpush.bf16.msra.mxu0 %v2383
    %2954 = vmatmul.bf16.gmra.mxu0 %v1290
    %v2955 = vpop.f32.mrf.mxu0
    %v2956 = vadd.f32 %v2943, %v2955
    %v2957 = vpop.f32.mrf.mxu0
    %2958 = vdwg.mxu0
    %2959 = vmatpush.bf16.msra.mxu0 %v2503
    %2960 = vmatpush.bf16.msra.mxu0 %v2495
    %2961 = vmatpush.bf16.msra.mxu0 %v2487
    %2962 = vmatpush.bf16.msra.mxu0 %v2479
    %2963 = vmatpush.bf16.msra.mxu0 %v2471
    %2964 = vmatpush.bf16.msra.mxu0 %v2463
    %2965 = vmatpush.bf16.msra.mxu0 %v2455
    %2966 = vmatpush.bf16.msra.mxu0 %v2447
    %2967 = vmatmul.bf16.gmra.mxu0 %v1291
    %v2968 = vpop.f32.mrf.mxu0
    %v2969 = vadd.f32 %v2956, %v2968
    %v2970 = vpop.f32.mrf.mxu0
    %2971 = vdwg.mxu0
    %2972 = vmatpush.bf16.msra.mxu0 %v2567
    %2973 = vmatpush.bf16.msra.mxu0 %v2559
    %2974 = vmatpush.bf16.msra.mxu0 %v2551
    %2975 = vmatpush.bf16.msra.mxu0 %v2543
    %2976 = vmatpush.bf16.msra.mxu0 %v2535
    %2977 = vmatpush.bf16.msra.mxu0 %v2527
    %2978 = vmatpush.bf16.msra.mxu0 %v2519
    %2979 = vmatpush.bf16.msra.mxu0 %v2511
    %2980 = vmatmul.bf16.gmra.mxu0 %v1292
    %v2981 = vpop.f32.mrf.mxu0
    %v2982 = vadd.f32 %v2969, %v2981
    %v2983 = vpop.f32.mrf.mxu0
    %2984 = vdwg.mxu0
    %2985 = vmatpush.bf16.msra.mxu0 %v2376
    %2986 = vmatpush.bf16.msra.mxu0 %v2368
    %2987 = vmatpush.bf16.msra.mxu0 %v2360
    %2988 = vmatpush.bf16.msra.mxu0 %v2352
    %2989 = vmatpush.bf16.msra.mxu0 %v2344
    %2990 = vmatpush.bf16.msra.mxu0 %v2336
    %2991 = vmatpush.bf16.msra.mxu0 %v2328
    %2992 = vmatpush.bf16.msra.mxu0 %v2320
    %2993 = vmatmul.bf16.gmra.mxu0 %v1289
    %v2994 = vpop.f32.mrf.mxu0
    %v2995 = vadd.f32 0.0, %v2994
    %v2996 = vpop.f32.mrf.mxu0
    %2997 = vdwg.mxu0
    %2998 = vmatpush.bf16.msra.mxu0 %v2440
    %2999 = vmatpush.bf16.msra.mxu0 %v2432
    %3000 = vmatpush.bf16.msra.mxu0 %v2424
    %3001 = vmatpush.bf16.msra.mxu0 %v2416
    %3002 = vmatpush.bf16.msra.mxu0 %v2408
    %3003 = vmatpush.bf16.msra.mxu0 %v2400
    %3004 = vmatpush.bf16.msra.mxu0 %v2392
    %3005 = vmatpush.bf16.msra.mxu0 %v2384
    %3006 = vmatmul.bf16.gmra.mxu0 %v1290
    %v3007 = vpop.f32.mrf.mxu0
    %v3008 = vadd.f32 %v2995, %v3007
    %v3009 = vpop.f32.mrf.mxu0
    %3010 = vdwg.mxu0
    %3011 = vmatpush.bf16.msra.mxu0 %v2504
    %3012 = vmatpush.bf16.msra.mxu0 %v2496
    %3013 = vmatpush.bf16.msra.mxu0 %v2488
    %3014 = vmatpush.bf16.msra.mxu0 %v2480
    %3015 = vmatpush.bf16.msra.mxu0 %v2472
    %3016 = vmatpush.bf16.msra.mxu0 %v2464
    %3017 = vmatpush.bf16.msra.mxu0 %v2456
    %3018 = vmatpush.bf16.msra.mxu0 %v2448
    %3019 = vmatmul.bf16.gmra.mxu0 %v1291
    %v3020 = vpop.f32.mrf.mxu0
    %v3021 = vadd.f32 %v3008, %v3020
    %v3022 = vpop.f32.mrf.mxu0
    %3023 = vdwg.mxu0
    %3024 = vmatpush.bf16.msra.mxu0 %v2568
    %3025 = vmatpush.bf16.msra.mxu0 %v2560
    %3026 = vmatpush.bf16.msra.mxu0 %v2552
    %3027 = vmatpush.bf16.msra.mxu0 %v2544
    %3028 = vmatpush.bf16.msra.mxu0 %v2536
    %3029 = vmatpush.bf16.msra.mxu0 %v2528
    %3030 = vmatpush.bf16.msra.mxu0 %v2520
    %3031 = vmatpush.bf16.msra.mxu0 %v2512
    %3032 = vmatmul.bf16.gmra.mxu0 %v1292
    %v3033 = vpop.f32.mrf.mxu0
    %v3034 = vadd.f32 %v3021, %v3033
    %v3035 = vpop.f32.mrf.mxu0
    %3036 = vdwg.mxu0
    %3037 = vmatpush.bf16.msra.mxu0 %v2377
    %3038 = vmatpush.bf16.msra.mxu0 %v2369
    %3039 = vmatpush.bf16.msra.mxu0 %v2361
    %3040 = vmatpush.bf16.msra.mxu0 %v2353
    %3041 = vmatpush.bf16.msra.mxu0 %v2345
    %3042 = vmatpush.bf16.msra.mxu0 %v2337
    %3043 = vmatpush.bf16.msra.mxu0 %v2329
    %3044 = vmatpush.bf16.msra.mxu0 %v2321
    %3045 = vmatmul.bf16.gmra.mxu0 %v1289
    %v3046 = vpop.f32.mrf.mxu0
    %v3047 = vadd.f32 0.0, %v3046
    %v3048 = vpop.f32.mrf.mxu0
    %3049 = vdwg.mxu0
    %3050 = vmatpush.bf16.msra.mxu0 %v2441
    %3051 = vmatpush.bf16.msra.mxu0 %v2433
    %3052 = vmatpush.bf16.msra.mxu0 %v2425
    %3053 = vmatpush.bf16.msra.mxu0 %v2417
    %3054 = vmatpush.bf16.msra.mxu0 %v2409
    %3055 = vmatpush.bf16.msra.mxu0 %v2401
    %3056 = vmatpush.bf16.msra.mxu0 %v2393
    %3057 = vmatpush.bf16.msra.mxu0 %v2385
    %3058 = vmatmul.bf16.gmra.mxu0 %v1290
    %v3059 = vpop.f32.mrf.mxu0
    %v3060 = vadd.f32 %v3047, %v3059
    %v3061 = vpop.f32.mrf.mxu0
    %3062 = vdwg.mxu0
    %3063 = vmatpush.bf16.msra.mxu0 %v2505
    %3064 = vmatpush.bf16.msra.mxu0 %v2497
    %3065 = vmatpush.bf16.msra.mxu0 %v2489
    %3066 = vmatpush.bf16.msra.mxu0 %v2481
    %3067 = vmatpush.bf16.msra.mxu0 %v2473
    %3068 = vmatpush.bf16.msra.mxu0 %v2465
    %3069 = vmatpush.bf16.msra.mxu0 %v2457
    %3070 = vmatpush.bf16.msra.mxu0 %v2449
    %3071 = vmatmul.bf16.gmra.mxu0 %v1291
    %v3072 = vpop.f32.mrf.mxu0
    %v3073 = vadd.f32 %v3060, %v3072
    %v3074 = vpop.f32.mrf.mxu0
    %3075 = vdwg.mxu0
    %3076 = vmatpush.bf16.msra.mxu0 %v2569
    %3077 = vmatpush.bf16.msra.mxu0 %v2561
    %3078 = vmatpush.bf16.msra.mxu0 %v2553
    %3079 = vmatpush.bf16.msra.mxu0 %v2545
    %3080 = vmatpush.bf16.msra.mxu0 %v2537
    %3081 = vmatpush.bf16.msra.mxu0 %v2529
    %3082 = vmatpush.bf16.msra.mxu0 %v2521
    %3083 = vmatpush.bf16.msra.mxu0 %v2513
    %3084 = vmatmul.bf16.gmra.mxu0 %v1292
    %v3085 = vpop.f32.mrf.mxu0
    %v3086 = vadd.f32 %v3073, %v3085
    %v3087 = vpop.f32.mrf.mxu0
    %3088 = vdwg.mxu0
    %3089 = vmatpush.bf16.msra.mxu0 %v2378
    %3090 = vmatpush.bf16.msra.mxu0 %v2370
    %3091 = vmatpush.bf16.msra.mxu0 %v2362
    %3092 = vmatpush.bf16.msra.mxu0 %v2354
    %3093 = vmatpush.bf16.msra.mxu0 %v2346
    %3094 = vmatpush.bf16.msra.mxu0 %v2338
    %3095 = vmatpush.bf16.msra.mxu0 %v2330
    %3096 = vmatpush.bf16.msra.mxu0 %v2322
    %3097 = vmatmul.bf16.gmra.mxu0 %v1289
    %v3098 = vpop.f32.mrf.mxu0
    %v3099 = vadd.f32 0.0, %v3098
    %v3100 = vpop.f32.mrf.mxu0
    %3101 = vdwg.mxu0
    %3102 = vmatpush.bf16.msra.mxu0 %v2442
    %3103 = vmatpush.bf16.msra.mxu0 %v2434
    %3104 = vmatpush.bf16.msra.mxu0 %v2426
    %3105 = vmatpush.bf16.msra.mxu0 %v2418
    %3106 = vmatpush.bf16.msra.mxu0 %v2410
    %3107 = vmatpush.bf16.msra.mxu0 %v2402
    %3108 = vmatpush.bf16.msra.mxu0 %v2394
    %3109 = vmatpush.bf16.msra.mxu0 %v2386
    %3110 = vmatmul.bf16.gmra.mxu0 %v1290
    %v3111 = vpop.f32.mrf.mxu0
    %v3112 = vadd.f32 %v3099, %v3111
    %v3113 = vpop.f32.mrf.mxu0
    %3114 = vdwg.mxu0
    %3115 = vmatpush.bf16.msra.mxu0 %v2506
    %3116 = vmatpush.bf16.msra.mxu0 %v2498
    %3117 = vmatpush.bf16.msra.mxu0 %v2490
    %3118 = vmatpush.bf16.msra.mxu0 %v2482
    %3119 = vmatpush.bf16.msra.mxu0 %v2474
    %3120 = vmatpush.bf16.msra.mxu0 %v2466
    %3121 = vmatpush.bf16.msra.mxu0 %v2458
    %3122 = vmatpush.bf16.msra.mxu0 %v2450
    %3123 = vmatmul.bf16.gmra.mxu0 %v1291
    %v3124 = vpop.f32.mrf.mxu0
    %v3125 = vadd.f32 %v3112, %v3124
    %v3126 = vpop.f32.mrf.mxu0
    %3127 = vdwg.mxu0
    %3128 = vmatpush.bf16.msra.mxu0 %v2570
    %3129 = vmatpush.bf16.msra.mxu0 %v2562
    %3130 = vmatpush.bf16.msra.mxu0 %v2554
    %3131 = vmatpush.bf16.msra.mxu0 %v2546
    %3132 = vmatpush.bf16.msra.mxu0 %v2538
    %3133 = vmatpush.bf16.msra.mxu0 %v2530
    %3134 = vmatpush.bf16.msra.mxu0 %v2522
    %3135 = vmatpush.bf16.msra.mxu0 %v2514
    %3136 = vmatmul.bf16.gmra.mxu0 %v1292
    %v3137 = vpop.f32.mrf.mxu0
    %v3138 = vadd.f32 %v3125, %v3137
    %v3139 = vpop.f32.mrf.mxu0
    %3140 = vdwg.mxu0
    %3141 = vmatpush.bf16.msra.mxu0 %v2379
    %3142 = vmatpush.bf16.msra.mxu0 %v2371
    %3143 = vmatpush.bf16.msra.mxu0 %v2363
    %3144 = vmatpush.bf16.msra.mxu0 %v2355
    %3145 = vmatpush.bf16.msra.mxu0 %v2347
    %3146 = vmatpush.bf16.msra.mxu0 %v2339
    %3147 = vmatpush.bf16.msra.mxu0 %v2331
    %3148 = vmatpush.bf16.msra.mxu0 %v2323
    %3149 = vmatmul.bf16.gmra.mxu0 %v1289
    %v3150 = vpop.f32.mrf.mxu0
    %v3151 = vadd.f32 0.0, %v3150
    %v3152 = vpop.f32.mrf.mxu0
    %3153 = vdwg.mxu0
    %3154 = vmatpush.bf16.msra.mxu0 %v2443
    %3155 = vmatpush.bf16.msra.mxu0 %v2435
    %3156 = vmatpush.bf16.msra.mxu0 %v2427
    %3157 = vmatpush.bf16.msra.mxu0 %v2419
    %3158 = vmatpush.bf16.msra.mxu0 %v2411
    %3159 = vmatpush.bf16.msra.mxu0 %v2403
    %3160 = vmatpush.bf16.msra.mxu0 %v2395
    %3161 = vmatpush.bf16.msra.mxu0 %v2387
    %3162 = vmatmul.bf16.gmra.mxu0 %v1290
    %v3163 = vpop.f32.mrf.mxu0
    %v3164 = vadd.f32 %v3151, %v3163
    %v3165 = vpop.f32.mrf.mxu0
    %3166 = vdwg.mxu0
    %3167 = vmatpush.bf16.msra.mxu0 %v2507
    %3168 = vmatpush.bf16.msra.mxu0 %v2499
    %3169 = vmatpush.bf16.msra.mxu0 %v2491
    %3170 = vmatpush.bf16.msra.mxu0 %v2483
    %3171 = vmatpush.bf16.msra.mxu0 %v2475
    %3172 = vmatpush.bf16.msra.mxu0 %v2467
    %3173 = vmatpush.bf16.msra.mxu0 %v2459
    %3174 = vmatpush.bf16.msra.mxu0 %v2451
    %3175 = vmatmul.bf16.gmra.mxu0 %v1291
    %v3176 = vpop.f32.mrf.mxu0
    %v3177 = vadd.f32 %v3164, %v3176
    %v3178 = vpop.f32.mrf.mxu0
    %3179 = vdwg.mxu0
    %3180 = vmatpush.bf16.msra.mxu0 %v2571
    %3181 = vmatpush.bf16.msra.mxu0 %v2563
    %3182 = vmatpush.bf16.msra.mxu0 %v2555
    %3183 = vmatpush.bf16.msra.mxu0 %v2547
    %3184 = vmatpush.bf16.msra.mxu0 %v2539
    %3185 = vmatpush.bf16.msra.mxu0 %v2531
    %3186 = vmatpush.bf16.msra.mxu0 %v2523
    %3187 = vmatpush.bf16.msra.mxu0 %v2515
    %3188 = vmatmul.bf16.gmra.mxu0 %v1292
    %v3189 = vpop.f32.mrf.mxu0
    %v3190 = vadd.f32 %v3177, %v3189
    %v3191 = vpop.f32.mrf.mxu0
    %3192 = vdwg.mxu0
    %3193 = vmatpush.bf16.msra.mxu0 %v2380
    %3194 = vmatpush.bf16.msra.mxu0 %v2372
    %3195 = vmatpush.bf16.msra.mxu0 %v2364
    %3196 = vmatpush.bf16.msra.mxu0 %v2356
    %3197 = vmatpush.bf16.msra.mxu0 %v2348
    %3198 = vmatpush.bf16.msra.mxu0 %v2340
    %3199 = vmatpush.bf16.msra.mxu0 %v2332
    %3200 = vmatpush.bf16.msra.mxu0 %v2324
    %3201 = vmatmul.bf16.gmra.mxu0 %v1289
    %v3202 = vpop.f32.mrf.mxu0
    %v3203 = vadd.f32 0.0, %v3202
    %v3204 = vpop.f32.mrf.mxu0
    %3205 = vdwg.mxu0
    %3206 = vmatpush.bf16.msra.mxu0 %v2444
    %3207 = vmatpush.bf16.msra.mxu0 %v2436
    %3208 = vmatpush.bf16.msra.mxu0 %v2428
    %3209 = vmatpush.bf16.msra.mxu0 %v2420
    %3210 = vmatpush.bf16.msra.mxu0 %v2412
    %3211 = vmatpush.bf16.msra.mxu0 %v2404
    %3212 = vmatpush.bf16.msra.mxu0 %v2396
    %3213 = vmatpush.bf16.msra.mxu0 %v2388
    %3214 = vmatmul.bf16.gmra.mxu0 %v1290
    %v3215 = vpop.f32.mrf.mxu0
    %v3216 = vadd.f32 %v3203, %v3215
    %v3217 = vpop.f32.mrf.mxu0
    %3218 = vdwg.mxu0
    %3219 = vmatpush.bf16.msra.mxu0 %v2508
    %3220 = vmatpush.bf16.msra.mxu0 %v2500
    %3221 = vmatpush.bf16.msra.mxu0 %v2492
    %3222 = vmatpush.bf16.msra.mxu0 %v2484
    %3223 = vmatpush.bf16.msra.mxu0 %v2476
    %3224 = vmatpush.bf16.msra.mxu0 %v2468
    %3225 = vmatpush.bf16.msra.mxu0 %v2460
    %3226 = vmatpush.bf16.msra.mxu0 %v2452
    %3227 = vmatmul.bf16.gmra.mxu0 %v1291
    %v3228 = vpop.f32.mrf.mxu0
    %v3229 = vadd.f32 %v3216, %v3228
    %v3230 = vpop.f32.mrf.mxu0
    %3231 = vdwg.mxu0
    %3232 = vmatpush.bf16.msra.mxu0 %v2572
    %3233 = vmatpush.bf16.msra.mxu0 %v2564
    %3234 = vmatpush.bf16.msra.mxu0 %v2556
    %3235 = vmatpush.bf16.msra.mxu0 %v2548
    %3236 = vmatpush.bf16.msra.mxu0 %v2540
    %3237 = vmatpush.bf16.msra.mxu0 %v2532
    %3238 = vmatpush.bf16.msra.mxu0 %v2524
    %3239 = vmatpush.bf16.msra.mxu0 %v2516
    %3240 = vmatmul.bf16.gmra.mxu0 %v1292
    %v3241 = vpop.f32.mrf.mxu0
    %v3242 = vadd.f32 %v3229, %v3241
    %v3243 = vpop.f32.mrf.mxu0
    %3244 = vdwg.mxu0
    %v3245 = vld [vmem:[%s12] sm:$0xff]
    %v3246 = vld [vmem:[#allocation22] sm:$0xff]
    %v3247 = vrot.slane %v2878, 4
    %v3248 = vadd.f32 %v2878, %v3247
    %v3249 = vrot.slane %v3248, 2
    %v3250 = vadd.f32 %v3248, %v3249
    %v3251 = vrot.slane %v3250, 1
    %v3252 = vadd.f32 %v3250, %v3251
    %v3253 = vrot.slane %v2930, 4
    %v3254 = vadd.f32 %v2930, %v3253
    %v3255 = vrot.slane %v3254, 2
    %v3256 = vadd.f32 %v3254, %v3255
    %v3257 = vrot.slane %v3256, 1
    %v3258 = vadd.f32 %v3256, %v3257
    %v3259 = vrot.slane %v2982, 4
    %v3260 = vadd.f32 %v2982, %v3259
    %v3261 = vrot.slane %v3260, 2
    %v3262 = vadd.f32 %v3260, %v3261
    %v3263 = vrot.slane %v3262, 1
    %v3264 = vadd.f32 %v3262, %v3263
    %v3265 = vrot.slane %v3034, 4
    %v3266 = vadd.f32 %v3034, %v3265
    %v3267 = vrot.slane %v3266, 2
    %v3268 = vadd.f32 %v3266, %v3267
    %v3269 = vrot.slane %v3268, 1
    %v3270 = vadd.f32 %v3268, %v3269
    %v3271 = vrot.slane %v3086, 4
    %v3272 = vadd.f32 %v3086, %v3271
    %v3273 = vrot.slane %v3272, 2
    %v3274 = vadd.f32 %v3272, %v3273
    %v3275 = vrot.slane %v3274, 1
    %v3276 = vadd.f32 %v3274, %v3275
    %v3277 = vrot.slane %v3138, 4
    %v3278 = vadd.f32 %v3138, %v3277
    %v3279 = vrot.slane %v3278, 2
    %v3280 = vadd.f32 %v3278, %v3279
    %v3281 = vrot.slane %v3280, 1
    %v3282 = vadd.f32 %v3280, %v3281
    %v3283 = vrot.slane %v3190, 4
    %v3284 = vadd.f32 %v3190, %v3283
    %v3285 = vrot.slane %v3284, 2
    %v3286 = vadd.f32 %v3284, %v3285
    %v3287 = vrot.slane %v3286, 1
    %v3288 = vadd.f32 %v3286, %v3287
    %v3289 = vrot.slane %v3242, 4
    %v3290 = vadd.f32 %v3242, %v3289
    %v3291 = vrot.slane %v3290, 2
    %v3292 = vadd.f32 %v3290, %v3291
    %v3293 = vrot.slane %v3292, 1
    %v3294 = vadd.f32 %v3292, %v3293
    %v3295 = vmul.f32 %v3252, %v523
    %v3296 = vmul.f32 %v3258, %v523
    %v3297 = vmul.f32 %v3264, %v523
    %v3298 = vmul.f32 %v3270, %v523
    %v3299 = vmul.f32 %v3276, %v523
    %v3300 = vmul.f32 %v3282, %v523
    %v3301 = vmul.f32 %v3288, %v523
    %v3302 = vmul.f32 %v3294, %v523
    %v3303 = vmul.f32 %v2878, %v2878
    %v3304 = vmul.f32 %v2930, %v2930
    %v3305 = vmul.f32 %v2982, %v2982
    %v3306 = vmul.f32 %v3034, %v3034
    %v3307 = vmul.f32 %v3086, %v3086
    %v3308 = vmul.f32 %v3138, %v3138
    %v3309 = vmul.f32 %v3190, %v3190
    %v3310 = vmul.f32 %v3242, %v3242
    %v3311 = vrot.slane %v3303, 4
    %v3312 = vadd.f32 %v3303, %v3311
    %v3313 = vrot.slane %v3312, 2
    %v3314 = vadd.f32 %v3312, %v3313
    %v3315 = vrot.slane %v3314, 1
    %v3316 = vadd.f32 %v3314, %v3315
    %v3317 = vrot.slane %v3304, 4
    %v3318 = vadd.f32 %v3304, %v3317
    %v3319 = vrot.slane %v3318, 2
    %v3320 = vadd.f32 %v3318, %v3319
    %v3321 = vrot.slane %v3320, 1
    %v3322 = vadd.f32 %v3320, %v3321
    %v3323 = vrot.slane %v3305, 4
    %v3324 = vadd.f32 %v3305, %v3323
    %v3325 = vrot.slane %v3324, 2
    %v3326 = vadd.f32 %v3324, %v3325
    %v3327 = vrot.slane %v3326, 1
    %v3328 = vadd.f32 %v3326, %v3327
    %v3329 = vrot.slane %v3306, 4
    %v3330 = vadd.f32 %v3306, %v3329
    %v3331 = vrot.slane %v3330, 2
    %v3332 = vadd.f32 %v3330, %v3331
    %v3333 = vrot.slane %v3332, 1
    %v3334 = vadd.f32 %v3332, %v3333
    %v3335 = vrot.slane %v3307, 4
    %v3336 = vadd.f32 %v3307, %v3335
    %v3337 = vrot.slane %v3336, 2
    %v3338 = vadd.f32 %v3336, %v3337
    %v3339 = vrot.slane %v3338, 1
    %v3340 = vadd.f32 %v3338, %v3339
    %v3341 = vrot.slane %v3308, 4
    %v3342 = vadd.f32 %v3308, %v3341
    %v3343 = vrot.slane %v3342, 2
    %v3344 = vadd.f32 %v3342, %v3343
    %v3345 = vrot.slane %v3344, 1
    %v3346 = vadd.f32 %v3344, %v3345
    %v3347 = vrot.slane %v3309, 4
    %v3348 = vadd.f32 %v3309, %v3347
    %v3349 = vrot.slane %v3348, 2
    %v3350 = vadd.f32 %v3348, %v3349
    %v3351 = vrot.slane %v3350, 1
    %v3352 = vadd.f32 %v3350, %v3351
    %v3353 = vrot.slane %v3310, 4
    %v3354 = vadd.f32 %v3310, %v3353
    %v3355 = vrot.slane %v3354, 2
    %v3356 = vadd.f32 %v3354, %v3355
    %v3357 = vrot.slane %v3356, 1
    %v3358 = vadd.f32 %v3356, %v3357
    %v3359 = vmul.f32 %v3316, %v523
    %v3360 = vmul.f32 %v3322, %v523
    %v3361 = vmul.f32 %v3328, %v523
    %v3362 = vmul.f32 %v3334, %v523
    %v3363 = vmul.f32 %v3340, %v523
    %v3364 = vmul.f32 %v3346, %v523
    %v3365 = vmul.f32 %v3352, %v523
    %v3366 = vmul.f32 %v3358, %v523
    %v3367 = vmul.f32 %v3295, %v3295
    %v3368 = vmul.f32 %v3296, %v3296
    %v3369 = vmul.f32 %v3297, %v3297
    %v3370 = vmul.f32 %v3298, %v3298
    %v3371 = vmul.f32 %v3299, %v3299
    %v3372 = vmul.f32 %v3300, %v3300
    %v3373 = vmul.f32 %v3301, %v3301
    %v3374 = vmul.f32 %v3302, %v3302
    %v3375 = vsub.f32 %v3359, %v3367
    %v3376 = vsub.f32 %v3360, %v3368
    %v3377 = vsub.f32 %v3361, %v3369
    %v3378 = vsub.f32 %v3362, %v3370
    %v3379 = vsub.f32 %v3363, %v3371
    %v3380 = vsub.f32 %v3364, %v3372
    %v3381 = vsub.f32 %v3365, %v3373
    %v3382 = vsub.f32 %v3366, %v3374
    %v3383 = vmax.f32 %v3375, 0.0
    %v3384 = vmax.f32 %v3376, 0.0
    %v3385 = vmax.f32 %v3377, 0.0
    %v3386 = vmax.f32 %v3378, 0.0
    %v3387 = vmax.f32 %v3379, 0.0
    %v3388 = vmax.f32 %v3380, 0.0
    %v3389 = vmax.f32 %v3381, 0.0
    %v3390 = vmax.f32 %v3382, 0.0
    %v3391 = vadd.f32 %v3383, 1e-05
    %v3392 = vadd.f32 %v3384, 1e-05
    %v3393 = vadd.f32 %v3385, 1e-05
    %v3394 = vadd.f32 %v3386, 1e-05
    %v3395 = vadd.f32 %v3387, 1e-05
    %v3396 = vadd.f32 %v3388, 1e-05
    %v3397 = vadd.f32 %v3389, 1e-05
    %v3398 = vadd.f32 %v3390, 1e-05
    %v3399 = vrsqrt.pop %v3391
    %v3400 = vmul.f32 %v3399, %v3391
    %v3401 = vmul.f32 %v3400, %v3399
    %v3402 = vmul.f32 0.5, %v3401
    %v3403 = vsub.f32 1.5, %v3402
    %v3404 = vmul.f32 %v3399, %v3403
    %vm3405 = vweird.f32 %v3391
    %vm3406 = vweird.f32 %v3399
    %vm3407 = vmor %vm3405, %vm3406
    %v3408 = vsel %vm3407, %v3399, %v3404
    %v3409 = vrsqrt.pop %v3392
    %v3410 = vmul.f32 %v3409, %v3392
    %v3411 = vmul.f32 %v3410, %v3409
    %v3412 = vmul.f32 0.5, %v3411
    %v3413 = vsub.f32 1.5, %v3412
    %v3414 = vmul.f32 %v3409, %v3413
    %vm3415 = vweird.f32 %v3392
    %vm3416 = vweird.f32 %v3409
    %vm3417 = vmor %vm3415, %vm3416
    %v3418 = vsel %vm3417, %v3409, %v3414
    %v3419 = vrsqrt.pop %v3393
    %v3420 = vmul.f32 %v3419, %v3393
    %v3421 = vmul.f32 %v3420, %v3419
    %v3422 = vmul.f32 0.5, %v3421
    %v3423 = vsub.f32 1.5, %v3422
    %v3424 = vmul.f32 %v3419, %v3423
    %vm3425 = vweird.f32 %v3393
    %vm3426 = vweird.f32 %v3419
    %vm3427 = vmor %vm3425, %vm3426
    %v3428 = vsel %vm3427, %v3419, %v3424
    %v3429 = vrsqrt.pop %v3394
    %v3430 = vmul.f32 %v3429, %v3394
    %v3431 = vmul.f32 %v3430, %v3429
    %v3432 = vmul.f32 0.5, %v3431
    %v3433 = vsub.f32 1.5, %v3432
    %v3434 = vmul.f32 %v3429, %v3433
    %vm3435 = vweird.f32 %v3394
    %vm3436 = vweird.f32 %v3429
    %vm3437 = vmor %vm3435, %vm3436
    %v3438 = vsel %vm3437, %v3429, %v3434
    %v3439 = vrsqrt.pop %v3395
    %v3440 = vmul.f32 %v3439, %v3395
    %v3441 = vmul.f32 %v3440, %v3439
    %v3442 = vmul.f32 0.5, %v3441
    %v3443 = vsub.f32 1.5, %v3442
    %v3444 = vmul.f32 %v3439, %v3443
    %vm3445 = vweird.f32 %v3395
    %vm3446 = vweird.f32 %v3439
    %vm3447 = vmor %vm3445, %vm3446
    %v3448 = vsel %vm3447, %v3439, %v3444
    %v3449 = vrsqrt.pop %v3396
    %v3450 = vmul.f32 %v3449, %v3396
    %v3451 = vmul.f32 %v3450, %v3449
    %v3452 = vmul.f32 0.5, %v3451
    %v3453 = vsub.f32 1.5, %v3452
    %v3454 = vmul.f32 %v3449, %v3453
    %vm3455 = vweird.f32 %v3396
    %vm3456 = vweird.f32 %v3449
    %vm3457 = vmor %vm3455, %vm3456
    %v3458 = vsel %vm3457, %v3449, %v3454
    %v3459 = vrsqrt.pop %v3397
    %v3460 = vmul.f32 %v3459, %v3397
    %v3461 = vmul.f32 %v3460, %v3459
    %v3462 = vmul.f32 0.5, %v3461
    %v3463 = vsub.f32 1.5, %v3462
    %v3464 = vmul.f32 %v3459, %v3463
    %vm3465 = vweird.f32 %v3397
    %vm3466 = vweird.f32 %v3459
    %vm3467 = vmor %vm3465, %vm3466
    %v3468 = vsel %vm3467, %v3459, %v3464
    %v3469 = vrsqrt.pop %v3398
    %v3470 = vmul.f32 %v3469, %v3398
    %v3471 = vmul.f32 %v3470, %v3469
    %v3472 = vmul.f32 0.5, %v3471
    %v3473 = vsub.f32 1.5, %v3472
    %v3474 = vmul.f32 %v3469, %v3473
    %vm3475 = vweird.f32 %v3398
    %vm3476 = vweird.f32 %v3469
    %vm3477 = vmor %vm3475, %vm3476
    %v3478 = vsel %vm3477, %v3469, %v3474
    %v3487 = vrot.slane %v3418, 7
    %v3488 = vrot.slane %v3428, 6
    %v3489 = vrot.slane %v3438, 5
    %v3490 = vrot.slane %v3448, 4
    %v3491 = vrot.slane %v3458, 3
    %v3492 = vrot.slane %v3468, 2
    %v3493 = vrot.slane %v3478, 1
    %v3494 = vsel %vm573, %v3408, %v3487
    %v3495 = vsel %vm1225, %v3488, %v3489
    %v3496 = vsel %vm1227, %v3494, %v3495
    %vm3497 = vcmask 1044484
    %v3498 = vsel %vm3497, %v3490, %v3491
    %vm3499 = vcmask 1046534
    %v3500 = vsel %vm3499, %v3492, %v3493
    %vm3501 = vcmask 1045508
    %v3502 = vsel %vm3501, %v3498, %v3500
    %vm3503 = vcmask 1043456
    %v3504 = vsel %vm3503, %v3496, %v3502
    %v3506 = vmul.f32 %v3245, %v3504
    %v3508 = vperm.slane %v3506, 0
    %v3509 = vperm.slane %v3506, 1
    %v3510 = vperm.slane %v3506, 2
    %v3511 = vperm.slane %v3506, 3
    %v3512 = vperm.slane %v3506, 4
    %v3513 = vperm.slane %v3506, 5
    %v3514 = vperm.slane %v3506, 6
    %v3515 = vperm.slane %v3506, 7
    %v3524 = vmul.f32 %v3295, %v3508
    %v3525 = vmul.f32 %v3296, %v3509
    %v3526 = vmul.f32 %v3297, %v3510
    %v3527 = vmul.f32 %v3298, %v3511
    %v3528 = vmul.f32 %v3299, %v3512
    %v3529 = vmul.f32 %v3300, %v3513
    %v3530 = vmul.f32 %v3301, %v3514
    %v3531 = vmul.f32 %v3302, %v3515
    %v3540 = vrot.slane %v3525, 7
    %v3541 = vrot.slane %v3526, 6
    %v3542 = vrot.slane %v3527, 5
    %v3543 = vrot.slane %v3528, 4
    %v3544 = vrot.slane %v3529, 3
    %v3545 = vrot.slane %v3530, 2
    %v3546 = vrot.slane %v3531, 1
    %v3547 = vsel %vm573, %v3524, %v3540
    %v3548 = vsel %vm1225, %v3541, %v3542
    %v3549 = vsel %vm1227, %v3547, %v3548
    %v3550 = vsel %vm3497, %v3543, %v3544
    %v3551 = vsel %vm3499, %v3545, %v3546
    %v3552 = vsel %vm3501, %v3550, %v3551
    %v3553 = vsel %vm3503, %v3549, %v3552
    %v3555 = vsub.f32 %v3246, %v3553
    %v3556 = vmul.f32 %v2878, %v3508
    %v3557 = vmul.f32 %v2930, %v3509
    %v3558 = vmul.f32 %v2982, %v3510
    %v3559 = vmul.f32 %v3034, %v3511
    %v3560 = vmul.f32 %v3086, %v3512
    %v3561 = vmul.f32 %v3138, %v3513
    %v3562 = vmul.f32 %v3190, %v3514
    %v3563 = vmul.f32 %v3242, %v3515
    %v3565 = vperm.slane %v3555, 0
    %v3566 = vperm.slane %v3555, 1
    %v3567 = vperm.slane %v3555, 2
    %v3568 = vperm.slane %v3555, 3
    %v3569 = vperm.slane %v3555, 4
    %v3570 = vperm.slane %v3555, 5
    %v3571 = vperm.slane %v3555, 6
    %v3572 = vperm.slane %v3555, 7
    %v3581 = vadd.f32 %v3556, %v3565
    %v3582 = vadd.f32 %v3557, %v3566
    %v3583 = vadd.f32 %v3558, %v3567
    %v3584 = vadd.f32 %v3559, %v3568
    %v3585 = vadd.f32 %v3560, %v3569
    %v3586 = vadd.f32 %v3561, %v3570
    %v3587 = vadd.f32 %v3562, %v3571
    %v3588 = vadd.f32 %v3563, %v3572
    %vm3589 = vcmp.gt.f32.partialorder %v3581, 0.0
    %vm3590 = vcmp.gt.f32.partialorder %v3582, 0.0
    %vm3591 = vcmp.gt.f32.partialorder %v3583, 0.0
    %vm3592 = vcmp.gt.f32.partialorder %v3584, 0.0
    %vm3593 = vcmp.gt.f32.partialorder %v3585, 0.0
    %vm3594 = vcmp.gt.f32.partialorder %v3586, 0.0
    %vm3595 = vcmp.gt.f32.partialorder %v3587, 0.0
    %vm3596 = vcmp.gt.f32.partialorder %v3588, 0.0
    %v3597 = vmul.f32 %v3581, 0.2
    %v3598 = vmul.f32 %v3582, 0.2
    %v3599 = vmul.f32 %v3583, 0.2
    %v3600 = vmul.f32 %v3584, 0.2
    %v3601 = vmul.f32 %v3585, 0.2
    %v3602 = vmul.f32 %v3586, 0.2
    %v3603 = vmul.f32 %v3587, 0.2
    %v3604 = vmul.f32 %v3588, 0.2
    %v3605 = vsel %vm3589, %v3581, %v3597
    %v3606 = vsel %vm3590, %v3582, %v3598
    %v3607 = vsel %vm3591, %v3583, %v3599
    %v3608 = vsel %vm3592, %v3584, %v3600
    %v3609 = vsel %vm3593, %v3585, %v3601
    %v3610 = vsel %vm3594, %v3586, %v3602
    %v3611 = vsel %vm3595, %v3587, %v3603
    %v3612 = vsel %vm3596, %v3588, %v3604
    %s3613 = smul.u32 4, 128
    %s3614 = smul.u32 %s3613, 2
    %s3615 = sshll.u32 %s3614, 4
    %3616 = dma.done %s216, %s3615
    %v3617 = vpack.c.bf16 %v3605, %v3605
    %v3618 = vpack.c.bf16 %v3606, %v3606
    %v3619 = vpack.c.bf16 %v3607, %v3607
    %v3620 = vpack.c.bf16 %v3608, %v3608
    %v3621 = vpack.c.bf16 %v3609, %v3609
    %v3622 = vpack.c.bf16 %v3610, %v3610
    %v3623 = vpack.c.bf16 %v3611, %v3611
    %v3624 = vpack.c.bf16 %v3612, %v3612
    %v3625 = vld [vmem:[#allocation5] sm:$0xff]
    %v3626 = vld [vmem:[#allocation5 + $0x8] sm:$0xff]
    %v3627 = vld [vmem:[#allocation5 + $0x10] sm:$0xff]
    %v3628 = vld [vmem:[#allocation5 + $0x18] sm:$0xff]
    %v3629 = vld [vmem:[#allocation5 + $0x20] sm:$0xff]
    %v3630 = vld [vmem:[#allocation5 + $0x28] sm:$0xff]
    %v3631 = vld [vmem:[#allocation5 + $0x30] sm:$0xff]
    %v3632 = vld [vmem:[#allocation5 + $0x38] sm:$0xff]
    %v3633 = vld [vmem:[#allocation5 + $0x40] sm:$0xff]
    %v3634 = vld [vmem:[#allocation5 + $0x48] sm:$0xff]
    %v3635 = vld [vmem:[#allocation5 + $0x50] sm:$0xff]
    %v3636 = vld [vmem:[#allocation5 + $0x58] sm:$0xff]
    %v3637 = vld [vmem:[#allocation5 + $0x60] sm:$0xff]
    %v3638 = vld [vmem:[#allocation5 + $0x68] sm:$0xff]
    %v3639 = vld [vmem:[#allocation5 + $0x70] sm:$0xff]
    %v3640 = vld [vmem:[#allocation5 + $0x78] sm:$0xff]
    %v3641 = vld [vmem:[#allocation5 + $0x80] sm:$0xff]
    %v3642 = vld [vmem:[#allocation5 + $0x88] sm:$0xff]
    %v3643 = vld [vmem:[#allocation5 + $0x90] sm:$0xff]
    %v3644 = vld [vmem:[#allocation5 + $0x98] sm:$0xff]
    %v3645 = vld [vmem:[#allocation5 + $0xa0] sm:$0xff]
    %v3646 = vld [vmem:[#allocation5 + $0xa8] sm:$0xff]
    %v3647 = vld [vmem:[#allocation5 + $0xb0] sm:$0xff]
    %v3648 = vld [vmem:[#allocation5 + $0xb8] sm:$0xff]
    %v3649 = vld [vmem:[#allocation5 + $0xc0] sm:$0xff]
    %v3650 = vld [vmem:[#allocation5 + $0xc8] sm:$0xff]
    %v3651 = vld [vmem:[#allocation5 + $0xd0] sm:$0xff]
    %v3652 = vld [vmem:[#allocation5 + $0xd8] sm:$0xff]
    %v3653 = vld [vmem:[#allocation5 + $0xe0] sm:$0xff]
    %v3654 = vld [vmem:[#allocation5 + $0xe8] sm:$0xff]
    %v3655 = vld [vmem:[#allocation5 + $0xf0] sm:$0xff]
    %v3656 = vld [vmem:[#allocation5 + $0xf8] sm:$0xff]
    %v3657 = vld [vmem:[#allocation5 + $0x100] sm:$0xff]
    %v3658 = vld [vmem:[#allocation5 + $0x108] sm:$0xff]
    %v3659 = vld [vmem:[#allocation5 + $0x110] sm:$0xff]
    %v3660 = vld [vmem:[#allocation5 + $0x118] sm:$0xff]
    %v3661 = vld [vmem:[#allocation5 + $0x120] sm:$0xff]
    %v3662 = vld [vmem:[#allocation5 + $0x128] sm:$0xff]
    %v3663 = vld [vmem:[#allocation5 + $0x130] sm:$0xff]
    %v3664 = vld [vmem:[#allocation5 + $0x138] sm:$0xff]
    %v3665 = vld [vmem:[#allocation5 + $0x140] sm:$0xff]
    %v3666 = vld [vmem:[#allocation5 + $0x148] sm:$0xff]
    %v3667 = vld [vmem:[#allocation5 + $0x150] sm:$0xff]
    %v3668 = vld [vmem:[#allocation5 + $0x158] sm:$0xff]
    %v3669 = vld [vmem:[#allocation5 + $0x160] sm:$0xff]
    %v3670 = vld [vmem:[#allocation5 + $0x168] sm:$0xff]
    %v3671 = vld [vmem:[#allocation5 + $0x170] sm:$0xff]
    %v3672 = vld [vmem:[#allocation5 + $0x178] sm:$0xff]
    %v3673 = vld [vmem:[#allocation5 + $0x180] sm:$0xff]
    %v3674 = vld [vmem:[#allocation5 + $0x188] sm:$0xff]
    %v3675 = vld [vmem:[#allocation5 + $0x190] sm:$0xff]
    %v3676 = vld [vmem:[#allocation5 + $0x198] sm:$0xff]
    %v3677 = vld [vmem:[#allocation5 + $0x1a0] sm:$0xff]
    %v3678 = vld [vmem:[#allocation5 + $0x1a8] sm:$0xff]
    %v3679 = vld [vmem:[#allocation5 + $0x1b0] sm:$0xff]
    %v3680 = vld [vmem:[#allocation5 + $0x1b8] sm:$0xff]
    %v3681 = vld [vmem:[#allocation5 + $0x1c0] sm:$0xff]
    %v3682 = vld [vmem:[#allocation5 + $0x1c8] sm:$0xff]
    %v3683 = vld [vmem:[#allocation5 + $0x1d0] sm:$0xff]
    %v3684 = vld [vmem:[#allocation5 + $0x1d8] sm:$0xff]
    %v3685 = vld [vmem:[#allocation5 + $0x1e0] sm:$0xff]
    %v3686 = vld [vmem:[#allocation5 + $0x1e8] sm:$0xff]
    %v3687 = vld [vmem:[#allocation5 + $0x1f0] sm:$0xff]
    %v3688 = vld [vmem:[#allocation5 + $0x1f8] sm:$0xff]
    %v3689 = vld [vmem:[#allocation5 + $0x200] sm:$0xff]
    %v3690 = vld [vmem:[#allocation5 + $0x208] sm:$0xff]
    %v3691 = vld [vmem:[#allocation5 + $0x210] sm:$0xff]
    %v3692 = vld [vmem:[#allocation5 + $0x218] sm:$0xff]
    %v3693 = vld [vmem:[#allocation5 + $0x220] sm:$0xff]
    %v3694 = vld [vmem:[#allocation5 + $0x228] sm:$0xff]
    %v3695 = vld [vmem:[#allocation5 + $0x230] sm:$0xff]
    %v3696 = vld [vmem:[#allocation5 + $0x238] sm:$0xff]
    %v3697 = vld [vmem:[#allocation5 + $0x240] sm:$0xff]
    %v3698 = vld [vmem:[#allocation5 + $0x248] sm:$0xff]
    %v3699 = vld [vmem:[#allocation5 + $0x250] sm:$0xff]
    %v3700 = vld [vmem:[#allocation5 + $0x258] sm:$0xff]
    %v3701 = vld [vmem:[#allocation5 + $0x260] sm:$0xff]
    %v3702 = vld [vmem:[#allocation5 + $0x268] sm:$0xff]
    %v3703 = vld [vmem:[#allocation5 + $0x270] sm:$0xff]
    %v3704 = vld [vmem:[#allocation5 + $0x278] sm:$0xff]
    %v3705 = vld [vmem:[#allocation5 + $0x280] sm:$0xff]
    %v3706 = vld [vmem:[#allocation5 + $0x288] sm:$0xff]
    %v3707 = vld [vmem:[#allocation5 + $0x290] sm:$0xff]
    %v3708 = vld [vmem:[#allocation5 + $0x298] sm:$0xff]
    %v3709 = vld [vmem:[#allocation5 + $0x2a0] sm:$0xff]
    %v3710 = vld [vmem:[#allocation5 + $0x2a8] sm:$0xff]
    %v3711 = vld [vmem:[#allocation5 + $0x2b0] sm:$0xff]
    %v3712 = vld [vmem:[#allocation5 + $0x2b8] sm:$0xff]
    %v3713 = vld [vmem:[#allocation5 + $0x2c0] sm:$0xff]
    %v3714 = vld [vmem:[#allocation5 + $0x2c8] sm:$0xff]
    %v3715 = vld [vmem:[#allocation5 + $0x2d0] sm:$0xff]
    %v3716 = vld [vmem:[#allocation5 + $0x2d8] sm:$0xff]
    %v3717 = vld [vmem:[#allocation5 + $0x2e0] sm:$0xff]
    %v3718 = vld [vmem:[#allocation5 + $0x2e8] sm:$0xff]
    %v3719 = vld [vmem:[#allocation5 + $0x2f0] sm:$0xff]
    %v3720 = vld [vmem:[#allocation5 + $0x2f8] sm:$0xff]
    %v3721 = vld [vmem:[#allocation5 + $0x300] sm:$0xff]
    %v3722 = vld [vmem:[#allocation5 + $0x308] sm:$0xff]
    %v3723 = vld [vmem:[#allocation5 + $0x310] sm:$0xff]
    %v3724 = vld [vmem:[#allocation5 + $0x318] sm:$0xff]
    %v3725 = vld [vmem:[#allocation5 + $0x320] sm:$0xff]
    %v3726 = vld [vmem:[#allocation5 + $0x328] sm:$0xff]
    %v3727 = vld [vmem:[#allocation5 + $0x330] sm:$0xff]
    %v3728 = vld [vmem:[#allocation5 + $0x338] sm:$0xff]
    %v3729 = vld [vmem:[#allocation5 + $0x340] sm:$0xff]
    %v3730 = vld [vmem:[#allocation5 + $0x348] sm:$0xff]
    %v3731 = vld [vmem:[#allocation5 + $0x350] sm:$0xff]
    %v3732 = vld [vmem:[#allocation5 + $0x358] sm:$0xff]
    %v3733 = vld [vmem:[#allocation5 + $0x360] sm:$0xff]
    %v3734 = vld [vmem:[#allocation5 + $0x368] sm:$0xff]
    %v3735 = vld [vmem:[#allocation5 + $0x370] sm:$0xff]
    %v3736 = vld [vmem:[#allocation5 + $0x378] sm:$0xff]
    %v3737 = vld [vmem:[#allocation5 + $0x380] sm:$0xff]
    %v3738 = vld [vmem:[#allocation5 + $0x388] sm:$0xff]
    %v3739 = vld [vmem:[#allocation5 + $0x390] sm:$0xff]
    %v3740 = vld [vmem:[#allocation5 + $0x398] sm:$0xff]
    %v3741 = vld [vmem:[#allocation5 + $0x3a0] sm:$0xff]
    %v3742 = vld [vmem:[#allocation5 + $0x3a8] sm:$0xff]
    %v3743 = vld [vmem:[#allocation5 + $0x3b0] sm:$0xff]
    %v3744 = vld [vmem:[#allocation5 + $0x3b8] sm:$0xff]
    %v3745 = vld [vmem:[#allocation5 + $0x3c0] sm:$0xff]
    %v3746 = vld [vmem:[#allocation5 + $0x3c8] sm:$0xff]
    %v3747 = vld [vmem:[#allocation5 + $0x3d0] sm:$0xff]
    %v3748 = vld [vmem:[#allocation5 + $0x3d8] sm:$0xff]
    %v3749 = vld [vmem:[#allocation5 + $0x3e0] sm:$0xff]
    %v3750 = vld [vmem:[#allocation5 + $0x3e8] sm:$0xff]
    %v3751 = vld [vmem:[#allocation5 + $0x3f0] sm:$0xff]
    %v3752 = vld [vmem:[#allocation5 + $0x3f8] sm:$0xff]
    %v3753 = vld [vmem:[%s15] sm:$0x3]
    %v3755 = vperm.slane %v3753, 0
    %v3756 = vperm.slane %v3753, 1
    %v3887 = vunpack.c.l.b16 %v3625
    %v3888 = vunpack.c.h.b16 %v3625
    %v3889 = vunpack.c.l.b16 %v3626
    %v3890 = vunpack.c.h.b16 %v3626
    %v3891 = vunpack.c.l.b16 %v3627
    %v3892 = vunpack.c.h.b16 %v3627
    %v3893 = vunpack.c.l.b16 %v3628
    %v3894 = vunpack.c.h.b16 %v3628
    %v3895 = vunpack.c.l.b16 %v3629
    %v3896 = vunpack.c.h.b16 %v3629
    %v3897 = vunpack.c.l.b16 %v3630
    %v3898 = vunpack.c.h.b16 %v3630
    %v3899 = vunpack.c.l.b16 %v3631
    %v3900 = vunpack.c.h.b16 %v3631
    %v3901 = vunpack.c.l.b16 %v3632
    %v3902 = vunpack.c.h.b16 %v3632
    %v3903 = vunpack.c.l.b16 %v3633
    %v3904 = vunpack.c.h.b16 %v3633
    %v3905 = vunpack.c.l.b16 %v3634
    %v3906 = vunpack.c.h.b16 %v3634
    %v3907 = vunpack.c.l.b16 %v3635
    %v3908 = vunpack.c.h.b16 %v3635
    %v3909 = vunpack.c.l.b16 %v3636
    %v3910 = vunpack.c.h.b16 %v3636
    %v3911 = vunpack.c.l.b16 %v3637
    %v3912 = vunpack.c.h.b16 %v3637
    %v3913 = vunpack.c.l.b16 %v3638
    %v3914 = vunpack.c.h.b16 %v3638
    %v3915 = vunpack.c.l.b16 %v3639
    %v3916 = vunpack.c.h.b16 %v3639
    %v3917 = vunpack.c.l.b16 %v3640
    %v3918 = vunpack.c.h.b16 %v3640
    %v3919 = vunpack.c.l.b16 %v3641
    %v3920 = vunpack.c.h.b16 %v3641
    %v3921 = vunpack.c.l.b16 %v3642
    %v3922 = vunpack.c.h.b16 %v3642
    %v3923 = vunpack.c.l.b16 %v3643
    %v3924 = vunpack.c.h.b16 %v3643
    %v3925 = vunpack.c.l.b16 %v3644
    %v3926 = vunpack.c.h.b16 %v3644
    %v3927 = vunpack.c.l.b16 %v3645
    %v3928 = vunpack.c.h.b16 %v3645
    %v3929 = vunpack.c.l.b16 %v3646
    %v3930 = vunpack.c.h.b16 %v3646
    %v3931 = vunpack.c.l.b16 %v3647
    %v3932 = vunpack.c.h.b16 %v3647
    %v3933 = vunpack.c.l.b16 %v3648
    %v3934 = vunpack.c.h.b16 %v3648
    %v3935 = vunpack.c.l.b16 %v3649
    %v3936 = vunpack.c.h.b16 %v3649
    %v3937 = vunpack.c.l.b16 %v3650
    %v3938 = vunpack.c.h.b16 %v3650
    %v3939 = vunpack.c.l.b16 %v3651
    %v3940 = vunpack.c.h.b16 %v3651
    %v3941 = vunpack.c.l.b16 %v3652
    %v3942 = vunpack.c.h.b16 %v3652
    %v3943 = vunpack.c.l.b16 %v3653
    %v3944 = vunpack.c.h.b16 %v3653
    %v3945 = vunpack.c.l.b16 %v3654
    %v3946 = vunpack.c.h.b16 %v3654
    %v3947 = vunpack.c.l.b16 %v3655
    %v3948 = vunpack.c.h.b16 %v3655
    %v3949 = vunpack.c.l.b16 %v3656
    %v3950 = vunpack.c.h.b16 %v3656
    %v3951 = vunpack.c.l.b16 %v3657
    %v3952 = vunpack.c.h.b16 %v3657
    %v3953 = vunpack.c.l.b16 %v3658
    %v3954 = vunpack.c.h.b16 %v3658
    %v3955 = vunpack.c.l.b16 %v3659
    %v3956 = vunpack.c.h.b16 %v3659
    %v3957 = vunpack.c.l.b16 %v3660
    %v3958 = vunpack.c.h.b16 %v3660
    %v3959 = vunpack.c.l.b16 %v3661
    %v3960 = vunpack.c.h.b16 %v3661
    %v3961 = vunpack.c.l.b16 %v3662
    %v3962 = vunpack.c.h.b16 %v3662
    %v3963 = vunpack.c.l.b16 %v3663
    %v3964 = vunpack.c.h.b16 %v3663
    %v3965 = vunpack.c.l.b16 %v3664
    %v3966 = vunpack.c.h.b16 %v3664
    %v3967 = vunpack.c.l.b16 %v3665
    %v3968 = vunpack.c.h.b16 %v3665
    %v3969 = vunpack.c.l.b16 %v3666
    %v3970 = vunpack.c.h.b16 %v3666
    %v3971 = vunpack.c.l.b16 %v3667
    %v3972 = vunpack.c.h.b16 %v3667
    %v3973 = vunpack.c.l.b16 %v3668
    %v3974 = vunpack.c.h.b16 %v3668
    %v3975 = vunpack.c.l.b16 %v3669
    %v3976 = vunpack.c.h.b16 %v3669
    %v3977 = vunpack.c.l.b16 %v3670
    %v3978 = vunpack.c.h.b16 %v3670
    %v3979 = vunpack.c.l.b16 %v3671
    %v3980 = vunpack.c.h.b16 %v3671
    %v3981 = vunpack.c.l.b16 %v3672
    %v3982 = vunpack.c.h.b16 %v3672
    %v3983 = vunpack.c.l.b16 %v3673
    %v3984 = vunpack.c.h.b16 %v3673
    %v3985 = vunpack.c.l.b16 %v3674
    %v3986 = vunpack.c.h.b16 %v3674
    %v3987 = vunpack.c.l.b16 %v3675
    %v3988 = vunpack.c.h.b16 %v3675
    %v3989 = vunpack.c.l.b16 %v3676
    %v3990 = vunpack.c.h.b16 %v3676
    %v3991 = vunpack.c.l.b16 %v3677
    %v3992 = vunpack.c.h.b16 %v3677
    %v3993 = vunpack.c.l.b16 %v3678
    %v3994 = vunpack.c.h.b16 %v3678
    %v3995 = vunpack.c.l.b16 %v3679
    %v3996 = vunpack.c.h.b16 %v3679
    %v3997 = vunpack.c.l.b16 %v3680
    %v3998 = vunpack.c.h.b16 %v3680
    %v3999 = vunpack.c.l.b16 %v3681
    %v4000 = vunpack.c.h.b16 %v3681
    %v4001 = vunpack.c.l.b16 %v3682
    %v4002 = vunpack.c.h.b16 %v3682
    %v4003 = vunpack.c.l.b16 %v3683
    %v4004 = vunpack.c.h.b16 %v3683
    %v4005 = vunpack.c.l.b16 %v3684
    %v4006 = vunpack.c.h.b16 %v3684
    %v4007 = vunpack.c.l.b16 %v3685
    %v4008 = vunpack.c.h.b16 %v3685
    %v4009 = vunpack.c.l.b16 %v3686
    %v4010 = vunpack.c.h.b16 %v3686
    %v4011 = vunpack.c.l.b16 %v3687
    %v4012 = vunpack.c.h.b16 %v3687
    %v4013 = vunpack.c.l.b16 %v3688
    %v4014 = vunpack.c.h.b16 %v3688
    %v4015 = vunpack.c.l.b16 %v3689
    %v4016 = vunpack.c.h.b16 %v3689
    %v4017 = vunpack.c.l.b16 %v3690
    %v4018 = vunpack.c.h.b16 %v3690
    %v4019 = vunpack.c.l.b16 %v3691
    %v4020 = vunpack.c.h.b16 %v3691
    %v4021 = vunpack.c.l.b16 %v3692
    %v4022 = vunpack.c.h.b16 %v3692
    %v4023 = vunpack.c.l.b16 %v3693
    %v4024 = vunpack.c.h.b16 %v3693
    %v4025 = vunpack.c.l.b16 %v3694
    %v4026 = vunpack.c.h.b16 %v3694
    %v4027 = vunpack.c.l.b16 %v3695
    %v4028 = vunpack.c.h.b16 %v3695
    %v4029 = vunpack.c.l.b16 %v3696
    %v4030 = vunpack.c.h.b16 %v3696
    %v4031 = vunpack.c.l.b16 %v3697
    %v4032 = vunpack.c.h.b16 %v3697
    %v4033 = vunpack.c.l.b16 %v3698
    %v4034 = vunpack.c.h.b16 %v3698
    %v4035 = vunpack.c.l.b16 %v3699
    %v4036 = vunpack.c.h.b16 %v3699
    %v4037 = vunpack.c.l.b16 %v3700
    %v4038 = vunpack.c.h.b16 %v3700
    %v4039 = vunpack.c.l.b16 %v3701
    %v4040 = vunpack.c.h.b16 %v3701
    %v4041 = vunpack.c.l.b16 %v3702
    %v4042 = vunpack.c.h.b16 %v3702
    %v4043 = vunpack.c.l.b16 %v3703
    %v4044 = vunpack.c.h.b16 %v3703
    %v4045 = vunpack.c.l.b16 %v3704
    %v4046 = vunpack.c.h.b16 %v3704
    %v4047 = vunpack.c.l.b16 %v3705
    %v4048 = vunpack.c.h.b16 %v3705
    %v4049 = vunpack.c.l.b16 %v3706
    %v4050 = vunpack.c.h.b16 %v3706
    %v4051 = vunpack.c.l.b16 %v3707
    %v4052 = vunpack.c.h.b16 %v3707
    %v4053 = vunpack.c.l.b16 %v3708
    %v4054 = vunpack.c.h.b16 %v3708
    %v4055 = vunpack.c.l.b16 %v3709
    %v4056 = vunpack.c.h.b16 %v3709
    %v4057 = vunpack.c.l.b16 %v3710
    %v4058 = vunpack.c.h.b16 %v3710
    %v4059 = vunpack.c.l.b16 %v3711
    %v4060 = vunpack.c.h.b16 %v3711
    %v4061 = vunpack.c.l.b16 %v3712
    %v4062 = vunpack.c.h.b16 %v3712
    %v4063 = vunpack.c.l.b16 %v3713
    %v4064 = vunpack.c.h.b16 %v3713
    %v4065 = vunpack.c.l.b16 %v3714
    %v4066 = vunpack.c.h.b16 %v3714
    %v4067 = vunpack.c.l.b16 %v3715
    %v4068 = vunpack.c.h.b16 %v3715
    %v4069 = vunpack.c.l.b16 %v3716
    %v4070 = vunpack.c.h.b16 %v3716
    %v4071 = vunpack.c.l.b16 %v3717
    %v4072 = vunpack.c.h.b16 %v3717
    %v4073 = vunpack.c.l.b16 %v3718
    %v4074 = vunpack.c.h.b16 %v3718
    %v4075 = vunpack.c.l.b16 %v3719
    %v4076 = vunpack.c.h.b16 %v3719
    %v4077 = vunpack.c.l.b16 %v3720
    %v4078 = vunpack.c.h.b16 %v3720
    %v4079 = vunpack.c.l.b16 %v3721
    %v4080 = vunpack.c.h.b16 %v3721
    %v4081 = vunpack.c.l.b16 %v3722
    %v4082 = vunpack.c.h.b16 %v3722
    %v4083 = vunpack.c.l.b16 %v3723
    %v4084 = vunpack.c.h.b16 %v3723
    %v4085 = vunpack.c.l.b16 %v3724
    %v4086 = vunpack.c.h.b16 %v3724
    %v4087 = vunpack.c.l.b16 %v3725
    %v4088 = vunpack.c.h.b16 %v3725
    %v4089 = vunpack.c.l.b16 %v3726
    %v4090 = vunpack.c.h.b16 %v3726
    %v4091 = vunpack.c.l.b16 %v3727
    %v4092 = vunpack.c.h.b16 %v3727
    %v4093 = vunpack.c.l.b16 %v3728
    %v4094 = vunpack.c.h.b16 %v3728
    %v4095 = vunpack.c.l.b16 %v3729
    %v4096 = vunpack.c.h.b16 %v3729
    %v4097 = vunpack.c.l.b16 %v3730
    %v4098 = vunpack.c.h.b16 %v3730
    %v4099 = vunpack.c.l.b16 %v3731
    %v4100 = vunpack.c.h.b16 %v3731
    %v4101 = vunpack.c.l.b16 %v3732
    %v4102 = vunpack.c.h.b16 %v3732
    %v4103 = vunpack.c.l.b16 %v3733
    %v4104 = vunpack.c.h.b16 %v3733
    %v4105 = vunpack.c.l.b16 %v3734
    %v4106 = vunpack.c.h.b16 %v3734
    %v4107 = vunpack.c.l.b16 %v3735
    %v4108 = vunpack.c.h.b16 %v3735
    %v4109 = vunpack.c.l.b16 %v3736
    %v4110 = vunpack.c.h.b16 %v3736
    %v4111 = vunpack.c.l.b16 %v3737
    %v4112 = vunpack.c.h.b16 %v3737
    %v4113 = vunpack.c.l.b16 %v3738
    %v4114 = vunpack.c.h.b16 %v3738
    %v4115 = vunpack.c.l.b16 %v3739
    %v4116 = vunpack.c.h.b16 %v3739
    %v4117 = vunpack.c.l.b16 %v3740
    %v4118 = vunpack.c.h.b16 %v3740
    %v4119 = vunpack.c.l.b16 %v3741
    %v4120 = vunpack.c.h.b16 %v3741
    %v4121 = vunpack.c.l.b16 %v3742
    %v4122 = vunpack.c.h.b16 %v3742
    %v4123 = vunpack.c.l.b16 %v3743
    %v4124 = vunpack.c.h.b16 %v3743
    %v4125 = vunpack.c.l.b16 %v3744
    %v4126 = vunpack.c.h.b16 %v3744
    %v4127 = vunpack.c.l.b16 %v3745
    %v4128 = vunpack.c.h.b16 %v3745
    %v4129 = vunpack.c.l.b16 %v3746
    %v4130 = vunpack.c.h.b16 %v3746
    %v4131 = vunpack.c.l.b16 %v3747
    %v4132 = vunpack.c.h.b16 %v3747
    %v4133 = vunpack.c.l.b16 %v3748
    %v4134 = vunpack.c.h.b16 %v3748
    %v4135 = vunpack.c.l.b16 %v3749
    %v4136 = vunpack.c.h.b16 %v3749
    %v4137 = vunpack.c.l.b16 %v3750
    %v4138 = vunpack.c.h.b16 %v3750
    %v4139 = vunpack.c.l.b16 %v3751
    %v4140 = vunpack.c.h.b16 %v3751
    %v4141 = vunpack.c.l.b16 %v3752
    %v4142 = vunpack.c.h.b16 %v3752
    %v4143 = vpack.c.b16 %v3889, %v3887
    %v4144 = vpack.c.b16 %v3890, %v3888
    %v4145 = vpack.c.b16 %v3893, %v3891
    %v4146 = vpack.c.b16 %v3894, %v3892
    %v4147 = vpack.c.b16 %v3897, %v3895
    %v4148 = vpack.c.b16 %v3898, %v3896
    %v4149 = vpack.c.b16 %v3901, %v3899
    %v4150 = vpack.c.b16 %v3902, %v3900
    %v4151 = vpack.c.b16 %v3905, %v3903
    %v4152 = vpack.c.b16 %v3906, %v3904
    %v4153 = vpack.c.b16 %v3909, %v3907
    %v4154 = vpack.c.b16 %v3910, %v3908
    %v4155 = vpack.c.b16 %v3913, %v3911
    %v4156 = vpack.c.b16 %v3914, %v3912
    %v4157 = vpack.c.b16 %v3917, %v3915
    %v4158 = vpack.c.b16 %v3918, %v3916
    %v4159 = vpack.c.b16 %v3921, %v3919
    %v4160 = vpack.c.b16 %v3922, %v3920
    %v4161 = vpack.c.b16 %v3925, %v3923
    %v4162 = vpack.c.b16 %v3926, %v3924
    %v4163 = vpack.c.b16 %v3929, %v3927
    %v4164 = vpack.c.b16 %v3930, %v3928
    %v4165 = vpack.c.b16 %v3933, %v3931
    %v4166 = vpack.c.b16 %v3934, %v3932
    %v4167 = vpack.c.b16 %v3937, %v3935
    %v4168 = vpack.c.b16 %v3938, %v3936
    %v4169 = vpack.c.b16 %v3941, %v3939
    %v4170 = vpack.c.b16 %v3942, %v3940
    %v4171 = vpack.c.b16 %v3945, %v3943
    %v4172 = vpack.c.b16 %v3946, %v3944
    %v4173 = vpack.c.b16 %v3949, %v3947
    %v4174 = vpack.c.b16 %v3950, %v3948
    %v4175 = vpack.c.b16 %v3953, %v3951
    %v4176 = vpack.c.b16 %v3954, %v3952
    %v4177 = vpack.c.b16 %v3957, %v3955
    %v4178 = vpack.c.b16 %v3958, %v3956
    %v4179 = vpack.c.b16 %v3961, %v3959
    %v4180 = vpack.c.b16 %v3962, %v3960
    %v4181 = vpack.c.b16 %v3965, %v3963
    %v4182 = vpack.c.b16 %v3966, %v3964
    %v4183 = vpack.c.b16 %v3969, %v3967
    %v4184 = vpack.c.b16 %v3970, %v3968
    %v4185 = vpack.c.b16 %v3973, %v3971
    %v4186 = vpack.c.b16 %v3974, %v3972
    %v4187 = vpack.c.b16 %v3977, %v3975
    %v4188 = vpack.c.b16 %v3978, %v3976
    %v4189 = vpack.c.b16 %v3981, %v3979
    %v4190 = vpack.c.b16 %v3982, %v3980
    %v4191 = vpack.c.b16 %v3985, %v3983
    %v4192 = vpack.c.b16 %v3986, %v3984
    %v4193 = vpack.c.b16 %v3989, %v3987
    %v4194 = vpack.c.b16 %v3990, %v3988
    %v4195 = vpack.c.b16 %v3993, %v3991
    %v4196 = vpack.c.b16 %v3994, %v3992
    %v4197 = vpack.c.b16 %v3997, %v3995
    %v4198 = vpack.c.b16 %v3998, %v3996
    %v4199 = vpack.c.b16 %v4001, %v3999
    %v4200 = vpack.c.b16 %v4002, %v4000
    %v4201 = vpack.c.b16 %v4005, %v4003
    %v4202 = vpack.c.b16 %v4006, %v4004
    %v4203 = vpack.c.b16 %v4009, %v4007
    %v4204 = vpack.c.b16 %v4010, %v4008
    %v4205 = vpack.c.b16 %v4013, %v4011
    %v4206 = vpack.c.b16 %v4014, %v4012
    %v4207 = vpack.c.b16 %v4017, %v4015
    %v4208 = vpack.c.b16 %v4018, %v4016
    %v4209 = vpack.c.b16 %v4021, %v4019
    %v4210 = vpack.c.b16 %v4022, %v4020
    %v4211 = vpack.c.b16 %v4025, %v4023
    %v4212 = vpack.c.b16 %v4026, %v4024
    %v4213 = vpack.c.b16 %v4029, %v4027
    %v4214 = vpack.c.b16 %v4030, %v4028
    %v4215 = vpack.c.b16 %v4033, %v4031
    %v4216 = vpack.c.b16 %v4034, %v4032
    %v4217 = vpack.c.b16 %v4037, %v4035
    %v4218 = vpack.c.b16 %v4038, %v4036
    %v4219 = vpack.c.b16 %v4041, %v4039
    %v4220 = vpack.c.b16 %v4042, %v4040
    %v4221 = vpack.c.b16 %v4045, %v4043
    %v4222 = vpack.c.b16 %v4046, %v4044
    %v4223 = vpack.c.b16 %v4049, %v4047
    %v4224 = vpack.c.b16 %v4050, %v4048
    %v4225 = vpack.c.b16 %v4053, %v4051
    %v4226 = vpack.c.b16 %v4054, %v4052
    %v4227 = vpack.c.b16 %v4057, %v4055
    %v4228 = vpack.c.b16 %v4058, %v4056
    %v4229 = vpack.c.b16 %v4061, %v4059
    %v4230 = vpack.c.b16 %v4062, %v4060
    %v4231 = vpack.c.b16 %v4065, %v4063
    %v4232 = vpack.c.b16 %v4066, %v4064
    %v4233 = vpack.c.b16 %v4069, %v4067
    %v4234 = vpack.c.b16 %v4070, %v4068
    %v4235 = vpack.c.b16 %v4073, %v4071
    %v4236 = vpack.c.b16 %v4074, %v4072
    %v4237 = vpack.c.b16 %v4077, %v4075
    %v4238 = vpack.c.b16 %v4078, %v4076
    %v4239 = vpack.c.b16 %v4081, %v4079
    %v4240 = vpack.c.b16 %v4082, %v4080
    %v4241 = vpack.c.b16 %v4085, %v4083
    %v4242 = vpack.c.b16 %v4086, %v4084
    %v4243 = vpack.c.b16 %v4089, %v4087
    %v4244 = vpack.c.b16 %v4090, %v4088
    %v4245 = vpack.c.b16 %v4093, %v4091
    %v4246 = vpack.c.b16 %v4094, %v4092
    %v4247 = vpack.c.b16 %v4097, %v4095
    %v4248 = vpack.c.b16 %v4098, %v4096
    %v4249 = vpack.c.b16 %v4101, %v4099
    %v4250 = vpack.c.b16 %v4102, %v4100
    %v4251 = vpack.c.b16 %v4105, %v4103
    %v4252 = vpack.c.b16 %v4106, %v4104
    %v4253 = vpack.c.b16 %v4109, %v4107
    %v4254 = vpack.c.b16 %v4110, %v4108
    %v4255 = vpack.c.b16 %v4113, %v4111
    %v4256 = vpack.c.b16 %v4114, %v4112
    %v4257 = vpack.c.b16 %v4117, %v4115
    %v4258 = vpack.c.b16 %v4118, %v4116
    %v4259 = vpack.c.b16 %v4121, %v4119
    %v4260 = vpack.c.b16 %v4122, %v4120
    %v4261 = vpack.c.b16 %v4125, %v4123
    %v4262 = vpack.c.b16 %v4126, %v4124
    %v4263 = vpack.c.b16 %v4129, %v4127
    %v4264 = vpack.c.b16 %v4130, %v4128
    %v4265 = vpack.c.b16 %v4133, %v4131
    %v4266 = vpack.c.b16 %v4134, %v4132
    %v4267 = vpack.c.b16 %v4137, %v4135
    %v4268 = vpack.c.b16 %v4138, %v4136
    %v4269 = vpack.c.b16 %v4141, %v4139
    %v4270 = vpack.c.b16 %v4142, %v4140
    %4399 = vmatpush.bf16.msra.mxu0 %v4157
    %4400 = vmatpush.bf16.msra.mxu0 %v4155
    %4401 = vmatpush.bf16.msra.mxu0 %v4153
    %4402 = vmatpush.bf16.msra.mxu0 %v4151
    %4403 = vmatpush.bf16.msra.mxu0 %v4149
    %4404 = vmatpush.bf16.msra.mxu0 %v4147
    %4405 = vmatpush.bf16.msra.mxu0 %v4145
    %4406 = vmatpush.bf16.msra.mxu0 %v4143
    %4407 = vmatmul.bf16.gmra.mxu0 %v3617
    %v4408 = vpop.f32.mrf.mxu0
    %v4409 = vadd.f32 %v3755, %v4408
    %v4410 = vpop.f32.mrf.mxu0
    %4411 = vdwg.mxu0
    %4412 = vmatpush.bf16.msra.mxu0 %v4173
    %4413 = vmatpush.bf16.msra.mxu0 %v4171
    %4414 = vmatpush.bf16.msra.mxu0 %v4169
    %4415 = vmatpush.bf16.msra.mxu0 %v4167
    %4416 = vmatpush.bf16.msra.mxu0 %v4165
    %4417 = vmatpush.bf16.msra.mxu0 %v4163
    %4418 = vmatpush.bf16.msra.mxu0 %v4161
    %4419 = vmatpush.bf16.msra.mxu0 %v4159
    %4420 = vmatmul.bf16.gmra.mxu0 %v3618
    %v4421 = vpop.f32.mrf.mxu0
    %v4422 = vadd.f32 %v4409, %v4421
    %v4423 = vpop.f32.mrf.mxu0
    %4424 = vdwg.mxu0
    %4425 = vmatpush.bf16.msra.mxu0 %v4189
    %4426 = vmatpush.bf16.msra.mxu0 %v4187
    %4427 = vmatpush.bf16.msra.mxu0 %v4185
    %4428 = vmatpush.bf16.msra.mxu0 %v4183
    %4429 = vmatpush.bf16.msra.mxu0 %v4181
    %4430 = vmatpush.bf16.msra.mxu0 %v4179
    %4431 = vmatpush.bf16.msra.mxu0 %v4177
    %4432 = vmatpush.bf16.msra.mxu0 %v4175
    %4433 = vmatmul.bf16.gmra.mxu0 %v3619
    %v4434 = vpop.f32.mrf.mxu0
    %v4435 = vadd.f32 %v4422, %v4434
    %v4436 = vpop.f32.mrf.mxu0
    %4437 = vdwg.mxu0
    %4438 = vmatpush.bf16.msra.mxu0 %v4205
    %4439 = vmatpush.bf16.msra.mxu0 %v4203
    %4440 = vmatpush.bf16.msra.mxu0 %v4201
    %4441 = vmatpush.bf16.msra.mxu0 %v4199
    %4442 = vmatpush.bf16.msra.mxu0 %v4197
    %4443 = vmatpush.bf16.msra.mxu0 %v4195
    %4444 = vmatpush.bf16.msra.mxu0 %v4193
    %4445 = vmatpush.bf16.msra.mxu0 %v4191
    %4446 = vmatmul.bf16.gmra.mxu0 %v3620
    %v4447 = vpop.f32.mrf.mxu0
    %v4448 = vadd.f32 %v4435, %v4447
    %v4449 = vpop.f32.mrf.mxu0
    %4450 = vdwg.mxu0
    %4451 = vmatpush.bf16.msra.mxu0 %v4221
    %4452 = vmatpush.bf16.msra.mxu0 %v4219
    %4453 = vmatpush.bf16.msra.mxu0 %v4217
    %4454 = vmatpush.bf16.msra.mxu0 %v4215
    %4455 = vmatpush.bf16.msra.mxu0 %v4213
    %4456 = vmatpush.bf16.msra.mxu0 %v4211
    %4457 = vmatpush.bf16.msra.mxu0 %v4209
    %4458 = vmatpush.bf16.msra.mxu0 %v4207
    %4459 = vmatmul.bf16.gmra.mxu0 %v3621
    %v4460 = vpop.f32.mrf.mxu0
    %v4461 = vadd.f32 %v4448, %v4460
    %v4462 = vpop.f32.mrf.mxu0
    %4463 = vdwg.mxu0
    %4464 = vmatpush.bf16.msra.mxu0 %v4237
    %4465 = vmatpush.bf16.msra.mxu0 %v4235
    %4466 = vmatpush.bf16.msra.mxu0 %v4233
    %4467 = vmatpush.bf16.msra.mxu0 %v4231
    %4468 = vmatpush.bf16.msra.mxu0 %v4229
    %4469 = vmatpush.bf16.msra.mxu0 %v4227
    %4470 = vmatpush.bf16.msra.mxu0 %v4225
    %4471 = vmatpush.bf16.msra.mxu0 %v4223
    %4472 = vmatmul.bf16.gmra.mxu0 %v3622
    %v4473 = vpop.f32.mrf.mxu0
    %v4474 = vadd.f32 %v4461, %v4473
    %v4475 = vpop.f32.mrf.mxu0
    %4476 = vdwg.mxu0
    %4477 = vmatpush.bf16.msra.mxu0 %v4253
    %4478 = vmatpush.bf16.msra.mxu0 %v4251
    %4479 = vmatpush.bf16.msra.mxu0 %v4249
    %4480 = vmatpush.bf16.msra.mxu0 %v4247
    %4481 = vmatpush.bf16.msra.mxu0 %v4245
    %4482 = vmatpush.bf16.msra.mxu0 %v4243
    %4483 = vmatpush.bf16.msra.mxu0 %v4241
    %4484 = vmatpush.bf16.msra.mxu0 %v4239
    %4485 = vmatmul.bf16.gmra.mxu0 %v3623
    %v4486 = vpop.f32.mrf.mxu0
    %v4487 = vadd.f32 %v4474, %v4486
    %v4488 = vpop.f32.mrf.mxu0
    %4489 = vdwg.mxu0
    %4490 = vmatpush.bf16.msra.mxu0 %v4269
    %4491 = vmatpush.bf16.msra.mxu0 %v4267
    %4492 = vmatpush.bf16.msra.mxu0 %v4265
    %4493 = vmatpush.bf16.msra.mxu0 %v4263
    %4494 = vmatpush.bf16.msra.mxu0 %v4261
    %4495 = vmatpush.bf16.msra.mxu0 %v4259
    %4496 = vmatpush.bf16.msra.mxu0 %v4257
    %4497 = vmatpush.bf16.msra.mxu0 %v4255
    %4498 = vmatmul.bf16.gmra.mxu0 %v3624
    %v4499 = vpop.f32.mrf.mxu0
    %v4500 = vadd.f32 %v4487, %v4499
    %v4501 = vpop.f32.mrf.mxu0
    %4502 = vdwg.mxu0
    %4503 = vmatpush.bf16.msra.mxu0 %v4158
    %4504 = vmatpush.bf16.msra.mxu0 %v4156
    %4505 = vmatpush.bf16.msra.mxu0 %v4154
    %4506 = vmatpush.bf16.msra.mxu0 %v4152
    %4507 = vmatpush.bf16.msra.mxu0 %v4150
    %4508 = vmatpush.bf16.msra.mxu0 %v4148
    %4509 = vmatpush.bf16.msra.mxu0 %v4146
    %4510 = vmatpush.bf16.msra.mxu0 %v4144
    %4511 = vmatmul.bf16.gmra.mxu0 %v3617
    %v4512 = vpop.f32.mrf.mxu0
    %v4513 = vadd.f32 %v3756, %v4512
    %v4514 = vpop.f32.mrf.mxu0
    %4515 = vdwg.mxu0
    %4516 = vmatpush.bf16.msra.mxu0 %v4174
    %4517 = vmatpush.bf16.msra.mxu0 %v4172
    %4518 = vmatpush.bf16.msra.mxu0 %v4170
    %4519 = vmatpush.bf16.msra.mxu0 %v4168
    %4520 = vmatpush.bf16.msra.mxu0 %v4166
    %4521 = vmatpush.bf16.msra.mxu0 %v4164
    %4522 = vmatpush.bf16.msra.mxu0 %v4162
    %4523 = vmatpush.bf16.msra.mxu0 %v4160
    %4524 = vmatmul.bf16.gmra.mxu0 %v3618
    %v4525 = vpop.f32.mrf.mxu0
    %v4526 = vadd.f32 %v4513, %v4525
    %v4527 = vpop.f32.mrf.mxu0
    %4528 = vdwg.mxu0
    %4529 = vmatpush.bf16.msra.mxu0 %v4190
    %4530 = vmatpush.bf16.msra.mxu0 %v4188
    %4531 = vmatpush.bf16.msra.mxu0 %v4186
    %4532 = vmatpush.bf16.msra.mxu0 %v4184
    %4533 = vmatpush.bf16.msra.mxu0 %v4182
    %4534 = vmatpush.bf16.msra.mxu0 %v4180
    %4535 = vmatpush.bf16.msra.mxu0 %v4178
    %4536 = vmatpush.bf16.msra.mxu0 %v4176
    %4537 = vmatmul.bf16.gmra.mxu0 %v3619
    %v4538 = vpop.f32.mrf.mxu0
    %v4539 = vadd.f32 %v4526, %v4538
    %v4540 = vpop.f32.mrf.mxu0
    %4541 = vdwg.mxu0
    %4542 = vmatpush.bf16.msra.mxu0 %v4206
    %4543 = vmatpush.bf16.msra.mxu0 %v4204
    %4544 = vmatpush.bf16.msra.mxu0 %v4202
    %4545 = vmatpush.bf16.msra.mxu0 %v4200
    %4546 = vmatpush.bf16.msra.mxu0 %v4198
    %4547 = vmatpush.bf16.msra.mxu0 %v4196
    %4548 = vmatpush.bf16.msra.mxu0 %v4194
    %4549 = vmatpush.bf16.msra.mxu0 %v4192
    %4550 = vmatmul.bf16.gmra.mxu0 %v3620
    %v4551 = vpop.f32.mrf.mxu0
    %v4552 = vadd.f32 %v4539, %v4551
    %v4553 = vpop.f32.mrf.mxu0
    %4554 = vdwg.mxu0
    %4555 = vmatpush.bf16.msra.mxu0 %v4222
    %4556 = vmatpush.bf16.msra.mxu0 %v4220
    %4557 = vmatpush.bf16.msra.mxu0 %v4218
    %4558 = vmatpush.bf16.msra.mxu0 %v4216
    %4559 = vmatpush.bf16.msra.mxu0 %v4214
    %4560 = vmatpush.bf16.msra.mxu0 %v4212
    %4561 = vmatpush.bf16.msra.mxu0 %v4210
    %4562 = vmatpush.bf16.msra.mxu0 %v4208
    %4563 = vmatmul.bf16.gmra.mxu0 %v3621
    %v4564 = vpop.f32.mrf.mxu0
    %v4565 = vadd.f32 %v4552, %v4564
    %v4566 = vpop.f32.mrf.mxu0
    %4567 = vdwg.mxu0
    %4568 = vmatpush.bf16.msra.mxu0 %v4238
    %4569 = vmatpush.bf16.msra.mxu0 %v4236
    %4570 = vmatpush.bf16.msra.mxu0 %v4234
    %4571 = vmatpush.bf16.msra.mxu0 %v4232
    %4572 = vmatpush.bf16.msra.mxu0 %v4230
    %4573 = vmatpush.bf16.msra.mxu0 %v4228
    %4574 = vmatpush.bf16.msra.mxu0 %v4226
    %4575 = vmatpush.bf16.msra.mxu0 %v4224
    %4576 = vmatmul.bf16.gmra.mxu0 %v3622
    %v4577 = vpop.f32.mrf.mxu0
    %v4578 = vadd.f32 %v4565, %v4577
    %v4579 = vpop.f32.mrf.mxu0
    %4580 = vdwg.mxu0
    %4581 = vmatpush.bf16.msra.mxu0 %v4254
    %4582 = vmatpush.bf16.msra.mxu0 %v4252
    %4583 = vmatpush.bf16.msra.mxu0 %v4250
    %4584 = vmatpush.bf16.msra.mxu0 %v4248
    %4585 = vmatpush.bf16.msra.mxu0 %v4246
    %4586 = vmatpush.bf16.msra.mxu0 %v4244
    %4587 = vmatpush.bf16.msra.mxu0 %v4242
    %4588 = vmatpush.bf16.msra.mxu0 %v4240
    %4589 = vmatmul.bf16.gmra.mxu0 %v3623
    %v4590 = vpop.f32.mrf.mxu0
    %v4591 = vadd.f32 %v4578, %v4590
    %v4592 = vpop.f32.mrf.mxu0
    %4593 = vdwg.mxu0
    %4594 = vmatpush.bf16.msra.mxu0 %v4270
    %4595 = vmatpush.bf16.msra.mxu0 %v4268
    %4596 = vmatpush.bf16.msra.mxu0 %v4266
    %4597 = vmatpush.bf16.msra.mxu0 %v4264
    %4598 = vmatpush.bf16.msra.mxu0 %v4262
    %4599 = vmatpush.bf16.msra.mxu0 %v4260
    %4600 = vmatpush.bf16.msra.mxu0 %v4258
    %4601 = vmatpush.bf16.msra.mxu0 %v4256
    %4602 = vmatmul.bf16.gmra.mxu0 %v3624
    %v4603 = vpop.f32.mrf.mxu0
    %v4604 = vadd.f32 %v4591, %v4603
    %v4605 = vpop.f32.mrf.mxu0
    %4606 = vdwg.mxu0
    %v4607 = vtanh.pop %v4500
    %v4608 = vtanh.pop %v4604
    %4609 = vst [vmem:[%s16] sm:$0xff] %v4607
    %4610 = vst [vmem:[%s16 + $0x8] sm:$0xff] %v4608
    // Predicated region
    $region106: #{conditional_num_g_forward.1} parent=1 // pred_check
      _
    $region107: #{conditional_num_g_forward.1} parent=1 // pred_check_branch
      %4612 = sbr.rel (0) target = $region109
    $region108: #{conditional_num_g_forward.1} parent=1 // pred_region
      _
    $region109: #{conditional_num_g_forward.1} parent=1 // pred_fallthru
      _
    // Predicated region
    $region110: #{conditional_num_g_forward.1} parent=1 // pred_check
      _
    $region111: #{conditional_num_g_forward.1} parent=1 // pred_check_branch
      %4614 = sbr.rel (0) target = $region113
    $region112: #{conditional_num_g_forward.1} parent=1 // pred_region
      _
    $region113: #{conditional_num_g_forward.1} parent=1 // pred_fallthru
      _
    %4615 = vsyncpa [#allocation8], 1
    %4616 = vsyncpa [#allocation12], 1
    %4617 = vsyncpa [#allocation15], 1
    %4618 = vsyncpa [#allocation18], 1
    %4619 = vsyncpa [#allocation21], 1
    %4620 = vsyncpa [#allocation9], 1
  %4621 = vsyncmov [#allocation6]
  %s4622 = vpop.sfrf %4621
  %p4623 = scmp.eq.s32.totalorder %s4622, 0
  %p4624 = pneg %p4623
  %4626 = shalt.err (%p4624)
  %s4627 = scalar_lea.sflag [#allocation6], 1
  %4628 = vsyncmov %s4627
  %s4629 = vpop.sfrf %4628
  %p4630 = scmp.eq.s32.totalorder %s4629, 0
  %p4631 = pneg %p4630
  %4633 = shalt.err (%p4631)
  %s4634 = scalar_lea.sflag [#allocation6], 2
  %4635 = vsyncmov %s4634
  %s4636 = vpop.sfrf %4635
  %p4637 = scmp.eq.s32.totalorder %s4636, 0
  %p4638 = pneg %p4637
  %4640 = shalt.err (%p4638)

</llo_original>
